<compile_context>
chip_gen: v7x
topology: tpu7x:2x2x1
jax: 0.10.0
libtpu: 0.0.40
codegen_flags: <defaults>
</compile_context>

<pallas_src>
import jax
import jax.numpy as jnp
from jax import lax
from jax.experimental import pallas as pl
from jax.experimental.pallas import tpu as pltpu


# ---------------------------------------------------------------------------
# Model hyper-parameters (small, consistent with the module constructor)
# ---------------------------------------------------------------------------
HID_DIM = 32          # embed_dim
N_HEADS = 4
HEAD_DIM = HID_DIM // N_HEADS
PF_DIM = 64           # feed-forward dim
SEQ = 8               # tgt_len == src_len
BATCH = 2
LN_EPS = 1e-5


# ---------------------------------------------------------------------------
# Pallas kernel: whole encoder layer, whole batch, one grid step
# ---------------------------------------------------------------------------
def _encoder_layer_kernel(
    x_ref,        # (B*S, E)        flattened src, rows ordered (b, s)
    w_all_ref,    # (4, H, D, E)    [wq*scale, wk, wv, w_out^T] per-head weights
    b_qkv_ref,    # (3, H, B*S, D)  in-proj biases, pre-broadcast over rows
    w1_t_ref,     # (E, PF)         ff_linear1.weight.T
    w2_t_ref,     # (PF, E)         ff_linear2.weight.T
    vec_ref,      # (8, 128)        packed row vectors:
                  #   0: b_out  1: b1  2: b2  3: g1  4: be1  5: g2  6: be2
    out_ref,      # (B*S, E + H*S)  lanes [0:E) = encoder out, [E:) = attn weights
):
    M, E = x_ref.shape
    H, D, S = N_HEADS, HEAD_DIM, SEQ
    B = M // S
    PF = PF_DIM

    x = x_ref[...]                                    # (M, E) f32
    xh = jnp.broadcast_to(x[None], (H, M, E))         # (H, M, E)

    # ---- self-attention: per-head in-projection, batched over heads ----
    def in_proj(idx):
        # (H,M,E) x (H,D,E), contracting E on both minors -> (H,M,D)
        r = lax.dot_general(xh, w_all_ref[idx],
                            (((2,), (2,)), ((0,), (0,))),
                            preferred_element_type=jnp.float32)
        return r + b_qkv_ref[idx]

    q = in_proj(0)      # scaling already folded into wq / bq by the wrapper
    k = in_proj(1)
    v = in_proj(2)
    w_out3 = w_all_ref[3]                             # (H, D, E)

    src2_blocks = []    # per-b (S, E)  attention output (pre out-proj bias)
    attn_blocks = []    # per-b (S, H*S) packed attention weights
    for b in range(B):
        qb = q[:, b * S:(b + 1) * S, :]               # (H, S, D)
        kb = k[:, b * S:(b + 1) * S, :]
        vb = v[:, b * S:(b + 1) * S, :]

        # scores = q @ k^T per head, no transpose (contract D on both minors)
        s = lax.dot_general(qb, kb, (((2,), (2,)), ((0,), (0,))),
                            preferred_element_type=jnp.float32)   # (H, S, S)
        s = s - jnp.max(s, axis=-1, keepdims=True)
        p = jnp.exp(s)
        p = p / jnp.sum(p, axis=-1, keepdims=True)    # exact softmax

        # context: (H,S,S) x (H,S,D) -> (H,S,D)
        o = lax.dot_general(p, vb, (((2,), (1,)), ((0,), (0,))),
                            preferred_element_type=jnp.float32)
        # out-projection per head, then reduce over heads:
        # (H,S,D) x (H,D,E) -> (H,S,E) -> sum_h -> (S,E)
        so = lax.dot_general(o, w_out3, (((2,), (1,)), ((0,), (0,))),
                             preferred_element_type=jnp.float32)
        src2_blocks.append(jnp.sum(so, axis=0))

        # pack attention weights lane-dense: (S, H*S), lanes ordered (h, j)
        attn_blocks.append(jnp.concatenate([p[h] for h in range(H)], axis=1))

    src2 = jnp.concatenate(src2_blocks, axis=0) + vec_ref[0:1, 0:E]   # (M, E)
    attn_packed = jnp.concatenate(attn_blocks, axis=0)                # (M, H*S)

    # ---- residual + LayerNorm 1 ----
    y = x + src2
    mu = jnp.mean(y, axis=-1, keepdims=True)
    var = jnp.mean((y - mu) ** 2, axis=-1, keepdims=True)
    yn = ((y - mu) * lax.rsqrt(var + LN_EPS) * vec_ref[3:4, 0:E]
          + vec_ref[4:5, 0:E])

    # ---- position-wise feed-forward (whole flattened batch) ----
    h1 = jnp.dot(yn, w1_t_ref[...], preferred_element_type=jnp.float32)
    h1 = jnp.maximum(h1 + vec_ref[1:2, 0:PF], 0.0)                    # (M, PF)
    ff = (jnp.dot(h1, w2_t_ref[...], preferred_element_type=jnp.float32)
          + vec_ref[2:3, 0:E])                                        # (M, E)

    # ---- residual + LayerNorm 2 ----
    z = yn + ff
    mu2 = jnp.mean(z, axis=-1, keepdims=True)
    var2 = jnp.mean((z - mu2) ** 2, axis=-1, keepdims=True)
    zn = ((z - mu2) * lax.rsqrt(var2 + LN_EPS) * vec_ref[5:6, 0:E]
          + vec_ref[6:7, 0:E])                                        # (M, E)

    # single merged, lane-dense store of both results
    out_ref[...] = jnp.concatenate([zn, attn_packed], axis=1)


# ---------------------------------------------------------------------------
# Wrapper: PyTorch layout (S, B, E) in / out, returns (src, attn_weights)
# ---------------------------------------------------------------------------
@jax.jit
def transformer_encoder_layer(src, params):
    S, B, E = src.shape
    H, D, PF = N_HEADS, HEAD_DIM, PF_DIM
    M = B * S
    scaling = float(D) ** -0.5

    # ---- one-time layout plumbing (all outside the kernel) ----
    # src (S,B,E) -> (B*S, E), rows ordered (b, s)
    x_flat = jnp.transpose(src, (1, 0, 2)).reshape(M, E).astype(jnp.float32)

    w_in = params["w_in"]                  # (3E, E)
    b_in = params["b_in"][0]               # (3E,)
    wq, wk, wv = w_in[0:E], w_in[E:2 * E], w_in[2 * E:3 * E]
    bq, bk, bv = b_in[0:E], b_in[E:2 * E], b_in[2 * E:3 * E]
    wq = wq * scaling                      # fold q-scaling into constant weights
    bq = bq * scaling

    # per-head weights (H, D, E); out_proj^T reshaped the same way
    w_all = jnp.stack(
        [wq.reshape(H, D, E), wk.reshape(H, D, E), wv.reshape(H, D, E),
         jnp.transpose(params["w_out"]).reshape(H, D, E)], axis=0)     # (4,H,D,E)

    b_qkv = jnp.stack([bq, bk, bv], axis=0).reshape(3, H, 1, D)
    b_qkv = jnp.broadcast_to(b_qkv, (3, H, M, D)).astype(jnp.float32)

    w1_t = jnp.transpose(params["w1"])     # (E, PF)
    w2_t = jnp.transpose(params["w2"])     # (PF, E)

    def row(v):
        return jnp.pad(v, (0, 128 - v.shape[0]))
    vec = jnp.stack([row(params["b_out"][0]), row(params["b1"][0]),
                     row(params["b2"][0]), row(params["g1"][0]),
                     row(params["be1"][0]), row(params["g2"][0]),
                     row(params["be2"][0]), jnp.zeros((128,), jnp.float32)],
                    axis=0)                # (8, 128) parameter slab

    def full(shape):
        return pl.BlockSpec(shape, lambda i: (0,) * len(shape))

    grid_spec = pltpu.PrefetchScalarGridSpec(
        num_scalar_prefetch=0,
        grid=(1,),                          # latency-bound toy size: single step
        in_specs=[
            full((M, E)),                   # x_flat
            full((4, H, D, E)),             # w_all
            full((3, H, M, D)),             # b_qkv
            full((E, PF)),                  # w1.T
            full((PF, E)),                  # w2.T
            full((8, 128)),                 # packed small-vector slab
        ],
        out_specs=full((M, E + H * S)),     # merged output slab
    )

    packed = pl.pallas_call(
        _encoder_layer_kernel,
        grid_spec=grid_spec,
        out_shape=jax.ShapeDtypeStruct((M, E + H * S), jnp.float32),
        compiler_params=pltpu.CompilerParams(
            dimension_semantics=("arbitrary",)),
    )(x_flat, w_all, b_qkv, w1_t, w2_t, vec)

    # split + unpack outside the kernel (cheap layout plumbing)
    out = packed[:, :E].reshape(B, S, E).transpose(1, 0, 2)            # (S,B,E)
    attn = packed[:, E:].reshape(B, S, H, S).transpose(0, 2, 1, 3)     # (B,H,S,S)
    return out, attn


# ---------------------------------------------------------------------------
# Pure-JAX reference (mirrors the PyTorch forward, eval mode)
# ---------------------------------------------------------------------------
def reference_forward(src, p):
    S, B, E = src.shape
    H, D = N_HEADS, HEAD_DIM

    def ln(x, g, b):
        mu = jnp.mean(x, axis=-1, keepdims=True)
        var = jnp.mean((x - mu) ** 2, axis=-1, keepdims=True)
        return (x - mu) * jax.lax.rsqrt(var + LN_EPS) * g[0] + b[0]

    qkv = src @ p["w_in"].T + p["b_in"][0]
    q, k, v = jnp.split(qkv, 3, axis=-1)
    q = q * (float(D) ** -0.5)

    def to_heads(t):
        return t.reshape(S, B * H, D).transpose(1, 0, 2)

    qh, kh, vh = to_heads(q), to_heads(k), to_heads(v)
    w = jax.nn.softmax(qh @ kh.transpose(0, 2, 1), axis=-1)      # (B*H, S, S)
    ao = (w @ vh).transpose(1, 0, 2).reshape(S, B, E)
    src2 = ao @ p["w_out"].T + p["b_out"][0]
    x = ln(src + src2, p["g1"], p["be1"])
    ff = jax.nn.relu(x @ p["w1"].T + p["b1"][0]) @ p["w2"].T + p["b2"][0]
    out = ln(x + ff, p["g2"], p["be2"])
    return out, w.reshape(B, H, S, S)


# ---------------------------------------------------------------------------
# Deterministic parameter init + demo
# ---------------------------------------------------------------------------
def make_params(key):
    E, PF = HID_DIM, PF_DIM
    ks = jax.random.split(key, 6)

    def xavier(k, shape):
        fan_in, fan_out = shape[1], shape[0]
        bound = (6.0 / (fan_in + fan_out)) ** 0.5
        return jax.random.uniform(k, shape, jnp.float32, -bound, bound)

    return {
        "w_in": xavier(ks[0], (3 * E, E)),
        "b_in": jnp.zeros((1, 3 * E), jnp.float32),
        "w_out": xavier(ks[1], (E, E)),
        "b_out": jnp.zeros((1, E), jnp.float32),
        "w1": xavier(ks[2], (PF, E)),
        "b1": 0.01 * jax.random.normal(ks[3], (1, PF), jnp.float32),
        "w2": xavier(ks[4], (E, PF)),
        "b2": 0.01 * jax.random.normal(ks[5], (1, E), jnp.float32),
        "g1": jnp.ones((1, E), jnp.float32),
        "be1": jnp.zeros((1, E), jnp.float32),
        "g2": jnp.ones((1, E), jnp.float32),
        "be2": jnp.zeros((1, E), jnp.float32),
    }


if __name__ == "__main__":
    key = jax.random.PRNGKey(0)
    k_src, k_par = jax.random.split(key)

    # src in PyTorch MultiheadAttention layout: (tgt_len, bsz, embed_dim)
    src = jax.random.normal(k_src, (SEQ, BATCH, HID_DIM), jnp.float32)
    params = make_params(k_par)

    out, attn = transformer_encoder_layer(src, params)
    out = jax.block_until_ready(out)
    attn = jax.block_until_ready(attn)

    ref_out, ref_attn = reference_forward(src, params)
    assert out.shape == (SEQ, BATCH, HID_DIM)
    assert attn.shape == (BATCH, N_HEADS, SEQ, SEQ)
    assert jnp.allclose(out, ref_out, rtol=1e-2, atol=1e-2)
    assert jnp.allclose(attn, ref_attn, rtol=1e-2, atol=1e-2)

    print("KERNEL_OK")
</pallas_src>

<mosaic_0001>
module attributes {stable_mosaic.version = 11 : i64} {
  func.func @_encoder_layer_kernel(%arg0: i32, %arg1: memref<16x32xf32, #tpu.memory_space<vmem>>, %arg2: memref<4x4x8x32xf32, #tpu.memory_space<vmem>>, %arg3: memref<3x4x16x8xf32, #tpu.memory_space<vmem>>, %arg4: memref<32x64xf32, #tpu.memory_space<vmem>>, %arg5: memref<64x32xf32, #tpu.memory_space<vmem>>, %arg6: memref<8x128xf32, #tpu.memory_space<vmem>>, %arg7: memref<16x64xf32, #tpu.memory_space<vmem>>) attributes {dimension_semantics = [#tpu.dimension_semantics<arbitrary>], iteration_bounds = array<i64: 1>, scalar_prefetch = 0 : i64, scratch_operands = 0 : i64, tpu.core_type = #tpu.core_type<tc>, window_params = [{pipeline_mode = #tpu.pipeline_mode<synchronous>, transform_indices = @transform_0, window_bounds = array<i64: 16, 32>}, {pipeline_mode = #tpu.pipeline_mode<synchronous>, transform_indices = @transform_1, window_bounds = array<i64: 4, 4, 8, 32>}, {pipeline_mode = #tpu.pipeline_mode<synchronous>, transform_indices = @transform_2, window_bounds = array<i64: 3, 4, 16, 8>}, {pipeline_mode = #tpu.pipeline_mode<synchronous>, transform_indices = @transform_3, window_bounds = array<i64: 32, 64>}, {pipeline_mode = #tpu.pipeline_mode<synchronous>, transform_indices = @transform_4, window_bounds = array<i64: 64, 32>}, {pipeline_mode = #tpu.pipeline_mode<synchronous>, transform_indices = @transform_5, window_bounds = array<i64: 8, 128>}, {pipeline_mode = #tpu.pipeline_mode<synchronous>, transform_indices = @transform_6, window_bounds = array<i64: 16, 64>}]} {
    %c0 = arith.constant 0 : index
    %c0_0 = arith.constant 0 : index
    %0 = vector.load %arg1[%c0, %c0_0] : memref<16x32xf32, #tpu.memory_space<vmem>>, vector<16x32xf32>
    %1 = vector.shape_cast %0 : vector<16x32xf32> to vector<1x16x32xf32>
    %2 = vector.shape_cast %1 : vector<1x16x32xf32> to vector<1x16x32xf32>
    %3 = vector.broadcast %2 : vector<1x16x32xf32> to vector<4x16x32xf32>
    %c0_1 = arith.constant 0 : index
    %c0_2 = arith.constant 0 : index
    %c0_3 = arith.constant 0 : index
    %c0_4 = arith.constant 0 : index
    %4 = vector.load %arg2[%c0_1, %c0_2, %c0_3, %c0_4] : memref<4x4x8x32xf32, #tpu.memory_space<vmem>>, vector<1x4x8x32xf32>
    %5 = vector.shape_cast %4 : vector<1x4x8x32xf32> to vector<4x8x32xf32>
    %cst = arith.constant dense<0.000000e+00> : vector<4x16x8xf32>
    %6 = tpu.matmul %3, %5, %cst {dimension_numbers = #tpu.dot_dimension_numbers<[2], [2], [1], [1], [0, 0, 0, 1, 1, 1], [0], [0]>} : vector<4x16x32xf32>, vector<4x8x32xf32>, vector<4x16x8xf32> -> vector<4x16x8xf32>
    %c0_5 = arith.constant 0 : index
    %c0_6 = arith.constant 0 : index
    %c0_7 = arith.constant 0 : index
    %c0_8 = arith.constant 0 : index
    %7 = vector.load %arg3[%c0_5, %c0_6, %c0_7, %c0_8] : memref<3x4x16x8xf32, #tpu.memory_space<vmem>>, vector<1x4x16x8xf32>
    %8 = vector.shape_cast %7 : vector<1x4x16x8xf32> to vector<4x16x8xf32>
    %9 = arith.addf %6, %8 : vector<4x16x8xf32>
    %c1 = arith.constant 1 : index
    %c0_9 = arith.constant 0 : index
    %c0_10 = arith.constant 0 : index
    %c0_11 = arith.constant 0 : index
    %10 = vector.load %arg2[%c1, %c0_9, %c0_10, %c0_11] : memref<4x4x8x32xf32, #tpu.memory_space<vmem>>, vector<1x4x8x32xf32>
    %11 = vector.shape_cast %10 : vector<1x4x8x32xf32> to vector<4x8x32xf32>
    %cst_12 = arith.constant dense<0.000000e+00> : vector<4x16x8xf32>
    %12 = tpu.matmul %3, %11, %cst_12 {dimension_numbers = #tpu.dot_dimension_numbers<[2], [2], [1], [1], [0, 0, 0, 1, 1, 1], [0], [0]>} : vector<4x16x32xf32>, vector<4x8x32xf32>, vector<4x16x8xf32> -> vector<4x16x8xf32>
    %c1_13 = arith.constant 1 : index
    %c0_14 = arith.constant 0 : index
    %c0_15 = arith.constant 0 : index
    %c0_16 = arith.constant 0 : index
    %13 = vector.load %arg3[%c1_13, %c0_14, %c0_15, %c0_16] : memref<3x4x16x8xf32, #tpu.memory_space<vmem>>, vector<1x4x16x8xf32>
    %14 = vector.shape_cast %13 : vector<1x4x16x8xf32> to vector<4x16x8xf32>
    %15 = arith.addf %12, %14 : vector<4x16x8xf32>
    %c2 = arith.constant 2 : index
    %c0_17 = arith.constant 0 : index
    %c0_18 = arith.constant 0 : index
    %c0_19 = arith.constant 0 : index
    %16 = vector.load %arg2[%c2, %c0_17, %c0_18, %c0_19] : memref<4x4x8x32xf32, #tpu.memory_space<vmem>>, vector<1x4x8x32xf32>
    %17 = vector.shape_cast %16 : vector<1x4x8x32xf32> to vector<4x8x32xf32>
    %cst_20 = arith.constant dense<0.000000e+00> : vector<4x16x8xf32>
    %18 = tpu.matmul %3, %17, %cst_20 {dimension_numbers = #tpu.dot_dimension_numbers<[2], [2], [1], [1], [0, 0, 0, 1, 1, 1], [0], [0]>} : vector<4x16x32xf32>, vector<4x8x32xf32>, vector<4x16x8xf32> -> vector<4x16x8xf32>
    %c2_21 = arith.constant 2 : index
    %c0_22 = arith.constant 0 : index
    %c0_23 = arith.constant 0 : index
    %c0_24 = arith.constant 0 : index
    %19 = vector.load %arg3[%c2_21, %c0_22, %c0_23, %c0_24] : memref<3x4x16x8xf32, #tpu.memory_space<vmem>>, vector<1x4x16x8xf32>
    %20 = vector.shape_cast %19 : vector<1x4x16x8xf32> to vector<4x16x8xf32>
    %21 = arith.addf %18, %20 : vector<4x16x8xf32>
    %c3 = arith.constant 3 : index
    %c0_25 = arith.constant 0 : index
    %c0_26 = arith.constant 0 : index
    %c0_27 = arith.constant 0 : index
    %22 = vector.load %arg2[%c3, %c0_25, %c0_26, %c0_27] : memref<4x4x8x32xf32, #tpu.memory_space<vmem>>, vector<1x4x8x32xf32>
    %23 = vector.shape_cast %22 : vector<1x4x8x32xf32> to vector<4x8x32xf32>
    %24 = vector.extract_strided_slice %9 {offsets = [0, 0, 0], sizes = [4, 8, 8], strides = [1, 1, 1]} : vector<4x16x8xf32> to vector<4x8x8xf32>
    %25 = vector.extract_strided_slice %15 {offsets = [0, 0, 0], sizes = [4, 8, 8], strides = [1, 1, 1]} : vector<4x16x8xf32> to vector<4x8x8xf32>
    %26 = vector.extract_strided_slice %21 {offsets = [0, 0, 0], sizes = [4, 8, 8], strides = [1, 1, 1]} : vector<4x16x8xf32> to vector<4x8x8xf32>
    %cst_28 = arith.constant dense<0.000000e+00> : vector<4x8x8xf32>
    %27 = tpu.matmul %24, %25, %cst_28 {dimension_numbers = #tpu.dot_dimension_numbers<[2], [2], [1], [1], [0, 0, 0, 1, 1, 1], [0], [0]>} : vector<4x8x8xf32>, vector<4x8x8xf32>, vector<4x8x8xf32> -> vector<4x8x8xf32>
    %cst_29 = arith.constant dense<0xFF800000> : vector<4x8xf32>
    %28 = vector.multi_reduction <maximumf>, %27, %cst_29 [2] : vector<4x8x8xf32> to vector<4x8xf32>
    %29 = vector.shape_cast %28 : vector<4x8xf32> to vector<4x8x1xf32>
    %30 = vector.broadcast %29 : vector<4x8x1xf32> to vector<4x8x8xf32>
    %31 = arith.subf %27, %30 : vector<4x8x8xf32>
    %32 = math.exp %31 : vector<4x8x8xf32>
    %cst_30 = arith.constant dense<0.000000e+00> : vector<4x8xf32>
    %33 = vector.multi_reduction <add>, %32, %cst_30 [2] : vector<4x8x8xf32> to vector<4x8xf32>
    %34 = vector.shape_cast %33 : vector<4x8xf32> to vector<4x8x1xf32>
    %35 = vector.broadcast %34 : vector<4x8x1xf32> to vector<4x8x8xf32>
    %36 = arith.divf %32, %35 : vector<4x8x8xf32>
    %cst_31 = arith.constant dense<0.000000e+00> : vector<4x8x8xf32>
    %37 = tpu.matmul %36, %26, %cst_31 {dimension_numbers = #tpu.dot_dimension_numbers<[2], [1], [1], [2], [0, 0, 0, 1, 1, 2], [0], [0]>} : vector<4x8x8xf32>, vector<4x8x8xf32>, vector<4x8x8xf32> -> vector<4x8x8xf32>
    %cst_32 = arith.constant dense<0.000000e+00> : vector<4x8x32xf32>
    %38 = tpu.matmul %37, %23, %cst_32 {dimension_numbers = #tpu.dot_dimension_numbers<[2], [1], [1], [2], [0, 0, 0, 1, 1, 2], [0], [0]>} : vector<4x8x8xf32>, vector<4x8x32xf32>, vector<4x8x32xf32> -> vector<4x8x32xf32>
    %cst_33 = arith.constant dense<0.000000e+00> : vector<8x32xf32>
    %39 = vector.multi_reduction <add>, %38, %cst_33 [0] : vector<4x8x32xf32> to vector<8x32xf32>
    %40 = vector.extract_strided_slice %36 {offsets = [0, 0, 0], sizes = [1, 8, 8], strides = [1, 1, 1]} : vector<4x8x8xf32> to vector<1x8x8xf32>
    %41 = vector.shape_cast %40 : vector<1x8x8xf32> to vector<8x8xf32>
    %42 = vector.extract_strided_slice %36 {offsets = [1, 0, 0], sizes = [1, 8, 8], strides = [1, 1, 1]} : vector<4x8x8xf32> to vector<1x8x8xf32>
    %43 = vector.shape_cast %42 : vector<1x8x8xf32> to vector<8x8xf32>
    %44 = vector.extract_strided_slice %36 {offsets = [2, 0, 0], sizes = [1, 8, 8], strides = [1, 1, 1]} : vector<4x8x8xf32> to vector<1x8x8xf32>
    %45 = vector.shape_cast %44 : vector<1x8x8xf32> to vector<8x8xf32>
    %46 = vector.extract_strided_slice %36 {offsets = [3, 0, 0], sizes = [1, 8, 8], strides = [1, 1, 1]} : vector<4x8x8xf32> to vector<1x8x8xf32>
    %47 = vector.shape_cast %46 : vector<1x8x8xf32> to vector<8x8xf32>
    %48 = tpu.concatenate %41, %43, %45, %47 in 1 : vector<8x8xf32>, vector<8x8xf32>, vector<8x8xf32>, vector<8x8xf32> -> vector<8x32xf32>
    %49 = vector.extract_strided_slice %9 {offsets = [0, 8, 0], sizes = [4, 8, 8], strides = [1, 1, 1]} : vector<4x16x8xf32> to vector<4x8x8xf32>
    %50 = vector.extract_strided_slice %15 {offsets = [0, 8, 0], sizes = [4, 8, 8], strides = [1, 1, 1]} : vector<4x16x8xf32> to vector<4x8x8xf32>
    %51 = vector.extract_strided_slice %21 {offsets = [0, 8, 0], sizes = [4, 8, 8], strides = [1, 1, 1]} : vector<4x16x8xf32> to vector<4x8x8xf32>
    %cst_34 = arith.constant dense<0.000000e+00> : vector<4x8x8xf32>
    %52 = tpu.matmul %49, %50, %cst_34 {dimension_numbers = #tpu.dot_dimension_numbers<[2], [2], [1], [1], [0, 0, 0, 1, 1, 1], [0], [0]>} : vector<4x8x8xf32>, vector<4x8x8xf32>, vector<4x8x8xf32> -> vector<4x8x8xf32>
    %cst_35 = arith.constant dense<0xFF800000> : vector<4x8xf32>
    %53 = vector.multi_reduction <maximumf>, %52, %cst_35 [2] : vector<4x8x8xf32> to vector<4x8xf32>
    %54 = vector.shape_cast %53 : vector<4x8xf32> to vector<4x8x1xf32>
    %55 = vector.broadcast %54 : vector<4x8x1xf32> to vector<4x8x8xf32>
    %56 = arith.subf %52, %55 : vector<4x8x8xf32>
    %57 = math.exp %56 : vector<4x8x8xf32>
    %cst_36 = arith.constant dense<0.000000e+00> : vector<4x8xf32>
    %58 = vector.multi_reduction <add>, %57, %cst_36 [2] : vector<4x8x8xf32> to vector<4x8xf32>
    %59 = vector.shape_cast %58 : vector<4x8xf32> to vector<4x8x1xf32>
    %60 = vector.broadcast %59 : vector<4x8x1xf32> to vector<4x8x8xf32>
    %61 = arith.divf %57, %60 : vector<4x8x8xf32>
    %cst_37 = arith.constant dense<0.000000e+00> : vector<4x8x8xf32>
    %62 = tpu.matmul %61, %51, %cst_37 {dimension_numbers = #tpu.dot_dimension_numbers<[2], [1], [1], [2], [0, 0, 0, 1, 1, 2], [0], [0]>} : vector<4x8x8xf32>, vector<4x8x8xf32>, vector<4x8x8xf32> -> vector<4x8x8xf32>
    %cst_38 = arith.constant dense<0.000000e+00> : vector<4x8x32xf32>
    %63 = tpu.matmul %62, %23, %cst_38 {dimension_numbers = #tpu.dot_dimension_numbers<[2], [1], [1], [2], [0, 0, 0, 1, 1, 2], [0], [0]>} : vector<4x8x8xf32>, vector<4x8x32xf32>, vector<4x8x32xf32> -> vector<4x8x32xf32>
    %cst_39 = arith.constant dense<0.000000e+00> : vector<8x32xf32>
    %64 = vector.multi_reduction <add>, %63, %cst_39 [0] : vector<4x8x32xf32> to vector<8x32xf32>
    %65 = vector.extract_strided_slice %61 {offsets = [0, 0, 0], sizes = [1, 8, 8], strides = [1, 1, 1]} : vector<4x8x8xf32> to vector<1x8x8xf32>
    %66 = vector.shape_cast %65 : vector<1x8x8xf32> to vector<8x8xf32>
    %67 = vector.extract_strided_slice %61 {offsets = [1, 0, 0], sizes = [1, 8, 8], strides = [1, 1, 1]} : vector<4x8x8xf32> to vector<1x8x8xf32>
    %68 = vector.shape_cast %67 : vector<1x8x8xf32> to vector<8x8xf32>
    %69 = vector.extract_strided_slice %61 {offsets = [2, 0, 0], sizes = [1, 8, 8], strides = [1, 1, 1]} : vector<4x8x8xf32> to vector<1x8x8xf32>
    %70 = vector.shape_cast %69 : vector<1x8x8xf32> to vector<8x8xf32>
    %71 = vector.extract_strided_slice %61 {offsets = [3, 0, 0], sizes = [1, 8, 8], strides = [1, 1, 1]} : vector<4x8x8xf32> to vector<1x8x8xf32>
    %72 = vector.shape_cast %71 : vector<1x8x8xf32> to vector<8x8xf32>
    %73 = tpu.concatenate %66, %68, %70, %72 in 1 : vector<8x8xf32>, vector<8x8xf32>, vector<8x8xf32>, vector<8x8xf32> -> vector<8x32xf32>
    %74 = tpu.concatenate %39, %64 in 0 : vector<8x32xf32>, vector<8x32xf32> -> vector<16x32xf32>
    %c0_40 = arith.constant 0 : index
    %c0_41 = arith.constant 0 : index
    %75 = vector.load %arg6[%c0_40, %c0_41] : memref<8x128xf32, #tpu.memory_space<vmem>>, vector<1x32xf32>
    %76 = vector.broadcast %75 : vector<1x32xf32> to vector<16x32xf32>
    %77 = arith.addf %74, %76 : vector<16x32xf32>
    %78 = tpu.concatenate %48, %73 in 0 : vector<8x32xf32>, vector<8x32xf32> -> vector<16x32xf32>
    %79 = arith.addf %0, %77 : vector<16x32xf32>
    %cst_42 = arith.constant dense<0.000000e+00> : vector<16xf32>
    %80 = vector.multi_reduction <add>, %79, %cst_42 [1] : vector<16x32xf32> to vector<16xf32>
    %81 = vector.shape_cast %80 : vector<16xf32> to vector<16x1xf32>
    %cst_43 = arith.constant 3.200000e+01 : f32
    %82 = vector.broadcast %cst_43 : f32 to vector<16x1xf32>
    %83 = arith.divf %81, %82 : vector<16x1xf32>
    %84 = vector.broadcast %83 : vector<16x1xf32> to vector<16x32xf32>
    %85 = arith.subf %79, %84 : vector<16x32xf32>
    %86 = arith.mulf %85, %85 : vector<16x32xf32>
    %cst_44 = arith.constant dense<0.000000e+00> : vector<16xf32>
    %87 = vector.multi_reduction <add>, %86, %cst_44 [1] : vector<16x32xf32> to vector<16xf32>
    %88 = vector.shape_cast %87 : vector<16xf32> to vector<16x1xf32>
    %cst_45 = arith.constant 3.200000e+01 : f32
    %89 = vector.broadcast %cst_45 : f32 to vector<16x1xf32>
    %90 = arith.divf %88, %89 : vector<16x1xf32>
    %91 = vector.broadcast %83 : vector<16x1xf32> to vector<16x32xf32>
    %92 = arith.subf %79, %91 : vector<16x32xf32>
    %cst_46 = arith.constant 9.99999974E-6 : f32
    %93 = vector.broadcast %cst_46 : f32 to vector<16x1xf32>
    %94 = arith.addf %90, %93 : vector<16x1xf32>
    %95 = math.rsqrt %94 : vector<16x1xf32>
    %96 = vector.broadcast %95 : vector<16x1xf32> to vector<16x32xf32>
    %97 = arith.mulf %92, %96 : vector<16x32xf32>
    %c3_47 = arith.constant 3 : index
    %c0_48 = arith.constant 0 : index
    %98 = vector.load %arg6[%c3_47, %c0_48] : memref<8x128xf32, #tpu.memory_space<vmem>>, vector<1x32xf32>
    %99 = vector.broadcast %98 : vector<1x32xf32> to vector<16x32xf32>
    %100 = arith.mulf %97, %99 : vector<16x32xf32>
    %c4 = arith.constant 4 : index
    %c0_49 = arith.constant 0 : index
    %101 = vector.load %arg6[%c4, %c0_49] : memref<8x128xf32, #tpu.memory_space<vmem>>, vector<1x32xf32>
    %102 = vector.broadcast %101 : vector<1x32xf32> to vector<16x32xf32>
    %103 = arith.addf %100, %102 : vector<16x32xf32>
    %c0_50 = arith.constant 0 : index
    %c0_51 = arith.constant 0 : index
    %104 = vector.load %arg4[%c0_50, %c0_51] : memref<32x64xf32, #tpu.memory_space<vmem>>, vector<32x64xf32>
    %cst_52 = arith.constant dense<0.000000e+00> : vector<16x64xf32>
    %105 = tpu.matmul %103, %104, %cst_52 {dimension_numbers = #tpu.dot_dimension_numbers<[1], [0], [0], [1], [0, 0, 1, 1], [], []>} : vector<16x32xf32>, vector<32x64xf32>, vector<16x64xf32> -> vector<16x64xf32>
    %c1_53 = arith.constant 1 : index
    %c0_54 = arith.constant 0 : index
    %106 = vector.load %arg6[%c1_53, %c0_54] : memref<8x128xf32, #tpu.memory_space<vmem>>, vector<1x64xf32>
    %107 = vector.broadcast %106 : vector<1x64xf32> to vector<16x64xf32>
    %108 = arith.addf %105, %107 : vector<16x64xf32>
    %cst_55 = arith.constant 0.000000e+00 : f32
    %109 = vector.broadcast %cst_55 : f32 to vector<16x64xf32>
    %110 = arith.maximumf %108, %109 : vector<16x64xf32>
    %c0_56 = arith.constant 0 : index
    %c0_57 = arith.constant 0 : index
    %111 = vector.load %arg5[%c0_56, %c0_57] : memref<64x32xf32, #tpu.memory_space<vmem>>, vector<64x32xf32>
    %cst_58 = arith.constant dense<0.000000e+00> : vector<16x32xf32>
    %112 = tpu.matmul %110, %111, %cst_58 {dimension_numbers = #tpu.dot_dimension_numbers<[1], [0], [0], [1], [0, 0, 1, 1], [], []>} : vector<16x64xf32>, vector<64x32xf32>, vector<16x32xf32> -> vector<16x32xf32>
    %c2_59 = arith.constant 2 : index
    %c0_60 = arith.constant 0 : index
    %113 = vector.load %arg6[%c2_59, %c0_60] : memref<8x128xf32, #tpu.memory_space<vmem>>, vector<1x32xf32>
    %114 = vector.broadcast %113 : vector<1x32xf32> to vector<16x32xf32>
    %115 = arith.addf %112, %114 : vector<16x32xf32>
    %116 = arith.addf %103, %115 : vector<16x32xf32>
    %cst_61 = arith.constant dense<0.000000e+00> : vector<16xf32>
    %117 = vector.multi_reduction <add>, %116, %cst_61 [1] : vector<16x32xf32> to vector<16xf32>
    %118 = vector.shape_cast %117 : vector<16xf32> to vector<16x1xf32>
    %cst_62 = arith.constant 3.200000e+01 : f32
    %119 = vector.broadcast %cst_62 : f32 to vector<16x1xf32>
    %120 = arith.divf %118, %119 : vector<16x1xf32>
    %121 = vector.broadcast %120 : vector<16x1xf32> to vector<16x32xf32>
    %122 = arith.subf %116, %121 : vector<16x32xf32>
    %123 = arith.mulf %122, %122 : vector<16x32xf32>
    %cst_63 = arith.constant dense<0.000000e+00> : vector<16xf32>
    %124 = vector.multi_reduction <add>, %123, %cst_63 [1] : vector<16x32xf32> to vector<16xf32>
    %125 = vector.shape_cast %124 : vector<16xf32> to vector<16x1xf32>
    %cst_64 = arith.constant 3.200000e+01 : f32
    %126 = vector.broadcast %cst_64 : f32 to vector<16x1xf32>
    %127 = arith.divf %125, %126 : vector<16x1xf32>
    %128 = vector.broadcast %120 : vector<16x1xf32> to vector<16x32xf32>
    %129 = arith.subf %116, %128 : vector<16x32xf32>
    %cst_65 = arith.constant 9.99999974E-6 : f32
    %130 = vector.broadcast %cst_65 : f32 to vector<16x1xf32>
    %131 = arith.addf %127, %130 : vector<16x1xf32>
    %132 = math.rsqrt %131 : vector<16x1xf32>
    %133 = vector.broadcast %132 : vector<16x1xf32> to vector<16x32xf32>
    %134 = arith.mulf %129, %133 : vector<16x32xf32>
    %c5 = arith.constant 5 : index
    %c0_66 = arith.constant 0 : index
    %135 = vector.load %arg6[%c5, %c0_66] : memref<8x128xf32, #tpu.memory_space<vmem>>, vector<1x32xf32>
    %136 = vector.broadcast %135 : vector<1x32xf32> to vector<16x32xf32>
    %137 = arith.mulf %134, %136 : vector<16x32xf32>
    %c6 = arith.constant 6 : index
    %c0_67 = arith.constant 0 : index
    %138 = vector.load %arg6[%c6, %c0_67] : memref<8x128xf32, #tpu.memory_space<vmem>>, vector<1x32xf32>
    %139 = vector.broadcast %138 : vector<1x32xf32> to vector<16x32xf32>
    %140 = arith.addf %137, %139 : vector<16x32xf32>
    %141 = tpu.concatenate %140, %78 in 1 : vector<16x32xf32>, vector<16x32xf32> -> vector<16x64xf32>
    %c0_68 = arith.constant 0 : index
    %c0_69 = arith.constant 0 : index
    %142 = vector.load %arg7[%c0_68, %c0_69] : memref<16x64xf32, #tpu.memory_space<vmem>>, vector<16x64xf32>
    tpu.vector_store %arg7[%c0_68, %c0_69], %141 {strides = array<i32>} : memref<16x64xf32, #tpu.memory_space<vmem>>, vector<16x64xf32>,
    return
  }
  func.func @transform_0(%arg0: i32) -> (i32, i32) {
    %c0_i32 = arith.constant 0 : i32
    %c0_i32_0 = arith.constant 0 : i32
    %c0_i32_1 = arith.constant 0 : i32
    return %c0_i32, %c0_i32_0 : i32, i32
  }
  func.func @transform_1(%arg0: i32) -> (i32, i32, i32, i32) {
    %c0_i32 = arith.constant 0 : i32
    %c0_i32_0 = arith.constant 0 : i32
    %c0_i32_1 = arith.constant 0 : i32
    %c0_i32_2 = arith.constant 0 : i32
    %c0_i32_3 = arith.constant 0 : i32
    return %c0_i32, %c0_i32_0, %c0_i32_1, %c0_i32_2 : i32, i32, i32, i32
  }
  func.func @transform_2(%arg0: i32) -> (i32, i32, i32, i32) {
    %c0_i32 = arith.constant 0 : i32
    %c0_i32_0 = arith.constant 0 : i32
    %c0_i32_1 = arith.constant 0 : i32
    %c0_i32_2 = arith.constant 0 : i32
    %c0_i32_3 = arith.constant 0 : i32
    return %c0_i32, %c0_i32_0, %c0_i32_1, %c0_i32_2 : i32, i32, i32, i32
  }
  func.func @transform_3(%arg0: i32) -> (i32, i32) {
    %c0_i32 = arith.constant 0 : i32
    %c0_i32_0 = arith.constant 0 : i32
    %c0_i32_1 = arith.constant 0 : i32
    return %c0_i32, %c0_i32_0 : i32, i32
  }
  func.func @transform_4(%arg0: i32) -> (i32, i32) {
    %c0_i32 = arith.constant 0 : i32
    %c0_i32_0 = arith.constant 0 : i32
    %c0_i32_1 = arith.constant 0 : i32
    return %c0_i32, %c0_i32_0 : i32, i32
  }
  func.func @transform_5(%arg0: i32) -> (i32, i32) {
    %c0_i32 = arith.constant 0 : i32
    %c0_i32_0 = arith.constant 0 : i32
    %c0_i32_1 = arith.constant 0 : i32
    return %c0_i32, %c0_i32_0 : i32, i32
  }
  func.func @transform_6(%arg0: i32) -> (i32, i32) {
    %c0_i32 = arith.constant 0 : i32
    %c0_i32_0 = arith.constant 0 : i32
    %c0_i32_1 = arith.constant 0 : i32
    return %c0_i32, %c0_i32_0 : i32, i32
  }
}

</mosaic_0001>

<llo_original>
// kernel: transformer_encoder_layer.1
$region0: #{transformer_encoder_layer.1}
  #allocation0 [shape = 'u32[]', space=smem, size = 0x4, offset = 0x4, fixed_abs, tag = 'smem constant byte address 0x4 - core index']
  #allocation1 [shape = 'u32[144,128]{1,0:T(1,128)}', space=vmem, size = 0x12000, scoped, tag = 'internal scratch']
  %s0 = inlined_call_operand.vmem [shape: f32[16,32], index: 0, kind: input, shape index: {}]
  %s1 = inlined_call_operand.vmem [shape: f32[4,4,8,32], index: 1, kind: input, shape index: {}]
  %s2 = inlined_call_operand.vmem [shape: f32[3,4,16,8], index: 2, kind: input, shape index: {}]
  %s3 = inlined_call_operand.vmem [shape: f32[32,64], index: 3, kind: input, shape index: {}]
  %s4 = inlined_call_operand.vmem [shape: f32[64,32], index: 4, kind: input, shape index: {}]
  %s5 = inlined_call_operand.vmem [shape: f32[8,128], index: 5, kind: input, shape index: {}]
  %s6 = inlined_call_operand.vmem [shape: f32[16,64], index: 6, kind: output, shape index: {}]
  %s7 = sld [smem:[#allocation0]]
  $region34: #{transformer_encoder_layer.1} parent=0
    _
  %s9 = ssub.s32 1, %s7
  %s10 = scalar_select 0, %s9, %s7
  // Predicated region
  $region2: #{transformer_encoder_layer.1} parent=0 // pred_check
    _
  $region3: #{transformer_encoder_layer.1} parent=0 // pred_check_branch
    %12 = sbr.rel (0) target = $region5
  $region4: #{transformer_encoder_layer.1} parent=0 // pred_region
    _
  $region5: #{transformer_encoder_layer.1} parent=0 // pred_fallthru
    _
  // Predicated region
  $region6: #{transformer_encoder_layer.1} parent=0 // pred_check
    _
  $region7: #{transformer_encoder_layer.1} parent=0 // pred_check_branch
    %14 = sbr.rel (0) target = $region9
  $region8: #{transformer_encoder_layer.1} parent=0 // pred_region
    _
  $region9: #{transformer_encoder_layer.1} parent=0 // pred_fallthru
    _
  // Predicated region
  $region10: #{transformer_encoder_layer.1} parent=0 // pred_check
    _
  $region11: #{transformer_encoder_layer.1} parent=0 // pred_check_branch
    %16 = sbr.rel (0) target = $region13
  $region12: #{transformer_encoder_layer.1} parent=0 // pred_region
    _
  $region13: #{transformer_encoder_layer.1} parent=0 // pred_fallthru
    _
  // Predicated region
  $region14: #{transformer_encoder_layer.1} parent=0 // pred_check
    _
  $region15: #{transformer_encoder_layer.1} parent=0 // pred_check_branch
    %18 = sbr.rel (0) target = $region17
  $region16: #{transformer_encoder_layer.1} parent=0 // pred_region
    _
  $region17: #{transformer_encoder_layer.1} parent=0 // pred_fallthru
    _
  // Predicated region
  $region18: #{transformer_encoder_layer.1} parent=0 // pred_check
    _
  $region19: #{transformer_encoder_layer.1} parent=0 // pred_check_branch
    %20 = sbr.rel (0) target = $region21
  $region20: #{transformer_encoder_layer.1} parent=0 // pred_region
    _
  $region21: #{transformer_encoder_layer.1} parent=0 // pred_fallthru
    _
  // Predicated region
  $region22: #{transformer_encoder_layer.1} parent=0 // pred_check
    _
  $region23: #{transformer_encoder_layer.1} parent=0 // pred_check_branch
    %22 = sbr.rel (0) target = $region25
  $region24: #{transformer_encoder_layer.1} parent=0 // pred_region
    _
  $region25: #{transformer_encoder_layer.1} parent=0 // pred_fallthru
    _
  %v23 = vld [vmem:[%s0] sm:$0xff]
  %v24 = vld [vmem:[%s0 + $0x8] sm:$0xff]
  %v25 = vld [vmem:[%s1] sm:$0xff]
  %v26 = vld [vmem:[%s1 + $0x8] sm:$0xff]
  %v27 = vld [vmem:[%s1 + $0x10] sm:$0xff]
  %v28 = vld [vmem:[%s1 + $0x18] sm:$0xff]
  %v29 = vld [vmem:[%s2] sm:$0xff]
  %v30 = vld [vmem:[%s2 + $0x8] sm:$0xff]
  %v31 = vld [vmem:[%s2 + $0x10] sm:$0xff]
  %v32 = vld [vmem:[%s2 + $0x18] sm:$0xff]
  %v33 = vld [vmem:[%s2 + $0x20] sm:$0xff]
  %v34 = vld [vmem:[%s2 + $0x28] sm:$0xff]
  %v35 = vld [vmem:[%s2 + $0x30] sm:$0xff]
  %v36 = vld [vmem:[%s2 + $0x38] sm:$0xff]
  %vm37 = vcmask 261120
  %v39 = vsel %vm37, %v23, 0
  %v42 = vsel %vm37, %v24, 0
  %v45 = vsel %vm37, %v25, 0
  %47 = vmatprep.subr.mxu0 0.0
  %48 = vmatpush1.xpose.msra.mxu0 %v45
  %49 = vmatprep.subr.mxu0 0.0
  %50 = vmatpush1.xpose.msra.mxu0 0.0
  %51 = vmatprep.subr.mxu0 0.0
  %52 = vmatpush1.xpose.msra.mxu0 0.0
  %53 = vmatprep.subr.mxu0 0.0
  %54 = vmatpush1.xpose.msra.mxu0 0.0
  %55 = vmatprep.subr.mxu0 0.0
  %56 = vmatpush1.xpose.msra.mxu0 0.0
  %57 = vmatprep.subr.mxu0 0.0
  %58 = vmatpush1.xpose.msra.mxu0 0.0
  %59 = vmatprep.subr.mxu0 0.0
  %60 = vmatpush1.xpose.msra.mxu0 0.0
  %61 = vmatprep.subr.mxu0 0.0
  %62 = vmatpush1.xpose.msra.mxu0 0.0
  %63 = vmatprep.subr.mxu0 0.0
  %64 = vmatpush1.xpose.msra.mxu0 0.0
  %65 = vmatprep.subr.mxu0 0.0
  %66 = vmatpush1.xpose.msra.mxu0 0.0
  %67 = vmatprep.subr.mxu0 0.0
  %68 = vmatpush1.xpose.msra.mxu0 0.0
  %69 = vmatprep.subr.mxu0 0.0
  %70 = vmatpush1.xpose.msra.mxu0 0.0
  %71 = vmatprep.subr.mxu0 0.0
  %72 = vmatpush1.xpose.msra.mxu0 0.0
  %73 = vmatprep.subr.mxu0 0.0
  %74 = vmatpush1.xpose.msra.mxu0 0.0
  %75 = vmatprep.subr.mxu0 0.0
  %76 = vmatpush1.xpose.msra.mxu0 0.0
  %77 = vmatprep.subr.mxu0 0.0
  %78 = vmatpush1.xpose.msra.mxu0 0.0
  %79 = vmatprep.subr.mxu0 0.0
  %80 = vmatpush1.xpose.msra.mxu0 0.0
  %81 = vmatprep.subr.mxu0 0.0
  %82 = vmatpush1.xpose.msra.mxu0 0.0
  %83 = vmatprep.subr.mxu0 0.0
  %84 = vmatpush1.xpose.msra.mxu0 0.0
  %85 = vmatprep.subr.mxu0 0.0
  %86 = vmatpush1.xpose.msra.mxu0 0.0
  %87 = vmatprep.subr.mxu0 0.0
  %88 = vmatpush1.xpose.msra.mxu0 0.0
  %89 = vmatprep.subr.mxu0 0.0
  %90 = vmatpush1.xpose.msra.mxu0 0.0
  %91 = vmatprep.subr.mxu0 0.0
  %92 = vmatpush1.xpose.msra.mxu0 0.0
  %93 = vmatprep.subr.mxu0 0.0
  %94 = vmatpush1.xpose.msra.mxu0 0.0
  %95 = vmatprep.subr.mxu0 0.0
  %96 = vmatpush1.xpose.msra.mxu0 0.0
  %97 = vmatprep.subr.mxu0 0.0
  %98 = vmatpush1.xpose.msra.mxu0 0.0
  %99 = vmatprep.subr.mxu0 0.0
  %100 = vmatpush1.xpose.msra.mxu0 0.0
  %101 = vmatprep.subr.mxu0 0.0
  %102 = vmatpush1.xpose.msra.mxu0 0.0
  %103 = vmatprep.subr.mxu0 0.0
  %104 = vmatpush1.xpose.msra.mxu0 0.0
  %105 = vmatprep.subr.mxu0 0.0
  %106 = vmatpush1.xpose.msra.mxu0 0.0
  %107 = vmatprep.subr.mxu0 0.0
  %108 = vmatpush1.xpose.msra.mxu0 0.0
  %109 = vmatprep.subr.mxu0 0.0
  %110 = vmatpush1.xpose.msra.mxu0 0.0
  %111 = vmatprep.mubr.f32.mxu0 0.0
  %112 = vmatmul.mubr.f32.gmra.mrb[0].mxu0 %v39
  %v113 = vpop.f32.mrb[0].mxu0
  %v114 = vadd.f32 %v29, %v113
  %v115 = vpop.f32.mrb[0].mxu0
  %116 = vmatprep.mubr.f32.mxu0 0.0
  %117 = vmatmul.mubr.f32.gmra.mrb[0].mxu0 %v42
  %v118 = vpop.f32.mrb[0].mxu0
  %v119 = vadd.f32 %v30, %v118
  %v120 = vpop.f32.mrb[0].mxu0
  %121 = vdwg.mxu0
  %v123 = vsel %vm37, %v26, 0
  %125 = vmatprep.subr.mxu0 0.0
  %126 = vmatpush1.xpose.msra.mxu0 %v123
  %127 = vmatprep.subr.mxu0 0.0
  %128 = vmatpush1.xpose.msra.mxu0 0.0
  %129 = vmatprep.subr.mxu0 0.0
  %130 = vmatpush1.xpose.msra.mxu0 0.0
  %131 = vmatprep.subr.mxu0 0.0
  %132 = vmatpush1.xpose.msra.mxu0 0.0
  %133 = vmatprep.subr.mxu0 0.0
  %134 = vmatpush1.xpose.msra.mxu0 0.0
  %135 = vmatprep.subr.mxu0 0.0
  %136 = vmatpush1.xpose.msra.mxu0 0.0
  %137 = vmatprep.subr.mxu0 0.0
  %138 = vmatpush1.xpose.msra.mxu0 0.0
  %139 = vmatprep.subr.mxu0 0.0
  %140 = vmatpush1.xpose.msra.mxu0 0.0
  %141 = vmatprep.subr.mxu0 0.0
  %142 = vmatpush1.xpose.msra.mxu0 0.0
  %143 = vmatprep.subr.mxu0 0.0
  %144 = vmatpush1.xpose.msra.mxu0 0.0
  %145 = vmatprep.subr.mxu0 0.0
  %146 = vmatpush1.xpose.msra.mxu0 0.0
  %147 = vmatprep.subr.mxu0 0.0
  %148 = vmatpush1.xpose.msra.mxu0 0.0
  %149 = vmatprep.subr.mxu0 0.0
  %150 = vmatpush1.xpose.msra.mxu0 0.0
  %151 = vmatprep.subr.mxu0 0.0
  %152 = vmatpush1.xpose.msra.mxu0 0.0
  %153 = vmatprep.subr.mxu0 0.0
  %154 = vmatpush1.xpose.msra.mxu0 0.0
  %155 = vmatprep.subr.mxu0 0.0
  %156 = vmatpush1.xpose.msra.mxu0 0.0
  %157 = vmatprep.subr.mxu0 0.0
  %158 = vmatpush1.xpose.msra.mxu0 0.0
  %159 = vmatprep.subr.mxu0 0.0
  %160 = vmatpush1.xpose.msra.mxu0 0.0
  %161 = vmatprep.subr.mxu0 0.0
  %162 = vmatpush1.xpose.msra.mxu0 0.0
  %163 = vmatprep.subr.mxu0 0.0
  %164 = vmatpush1.xpose.msra.mxu0 0.0
  %165 = vmatprep.subr.mxu0 0.0
  %166 = vmatpush1.xpose.msra.mxu0 0.0
  %167 = vmatprep.subr.mxu0 0.0
  %168 = vmatpush1.xpose.msra.mxu0 0.0
  %169 = vmatprep.subr.mxu0 0.0
  %170 = vmatpush1.xpose.msra.mxu0 0.0
  %171 = vmatprep.subr.mxu0 0.0
  %172 = vmatpush1.xpose.msra.mxu0 0.0
  %173 = vmatprep.subr.mxu0 0.0
  %174 = vmatpush1.xpose.msra.mxu0 0.0
  %175 = vmatprep.subr.mxu0 0.0
  %176 = vmatpush1.xpose.msra.mxu0 0.0
  %177 = vmatprep.subr.mxu0 0.0
  %178 = vmatpush1.xpose.msra.mxu0 0.0
  %179 = vmatprep.subr.mxu0 0.0
  %180 = vmatpush1.xpose.msra.mxu0 0.0
  %181 = vmatprep.subr.mxu0 0.0
  %182 = vmatpush1.xpose.msra.mxu0 0.0
  %183 = vmatprep.subr.mxu0 0.0
  %184 = vmatpush1.xpose.msra.mxu0 0.0
  %185 = vmatprep.subr.mxu0 0.0
  %186 = vmatpush1.xpose.msra.mxu0 0.0
  %187 = vmatprep.subr.mxu0 0.0
  %188 = vmatpush1.xpose.msra.mxu0 0.0
  %189 = vmatprep.mubr.f32.mxu0 0.0
  %190 = vmatmul.mubr.f32.gmra.mrb[0].mxu0 %v39
  %v191 = vpop.f32.mrb[0].mxu0
  %v192 = vadd.f32 %v31, %v191
  %v193 = vpop.f32.mrb[0].mxu0
  %194 = vmatprep.mubr.f32.mxu0 0.0
  %195 = vmatmul.mubr.f32.gmra.mrb[0].mxu0 %v42
  %v196 = vpop.f32.mrb[0].mxu0
  %v197 = vadd.f32 %v32, %v196
  %v198 = vpop.f32.mrb[0].mxu0
  %199 = vdwg.mxu0
  %v201 = vsel %vm37, %v27, 0
  %203 = vmatprep.subr.mxu0 0.0
  %204 = vmatpush1.xpose.msra.mxu0 %v201
  %205 = vmatprep.subr.mxu0 0.0
  %206 = vmatpush1.xpose.msra.mxu0 0.0
  %207 = vmatprep.subr.mxu0 0.0
  %208 = vmatpush1.xpose.msra.mxu0 0.0
  %209 = vmatprep.subr.mxu0 0.0
  %210 = vmatpush1.xpose.msra.mxu0 0.0
  %211 = vmatprep.subr.mxu0 0.0
  %212 = vmatpush1.xpose.msra.mxu0 0.0
  %213 = vmatprep.subr.mxu0 0.0
  %214 = vmatpush1.xpose.msra.mxu0 0.0
  %215 = vmatprep.subr.mxu0 0.0
  %216 = vmatpush1.xpose.msra.mxu0 0.0
  %217 = vmatprep.subr.mxu0 0.0
  %218 = vmatpush1.xpose.msra.mxu0 0.0
  %219 = vmatprep.subr.mxu0 0.0
  %220 = vmatpush1.xpose.msra.mxu0 0.0
  %221 = vmatprep.subr.mxu0 0.0
  %222 = vmatpush1.xpose.msra.mxu0 0.0
  %223 = vmatprep.subr.mxu0 0.0
  %224 = vmatpush1.xpose.msra.mxu0 0.0
  %225 = vmatprep.subr.mxu0 0.0
  %226 = vmatpush1.xpose.msra.mxu0 0.0
  %227 = vmatprep.subr.mxu0 0.0
  %228 = vmatpush1.xpose.msra.mxu0 0.0
  %229 = vmatprep.subr.mxu0 0.0
  %230 = vmatpush1.xpose.msra.mxu0 0.0
  %231 = vmatprep.subr.mxu0 0.0
  %232 = vmatpush1.xpose.msra.mxu0 0.0
  %233 = vmatprep.subr.mxu0 0.0
  %234 = vmatpush1.xpose.msra.mxu0 0.0
  %235 = vmatprep.subr.mxu0 0.0
  %236 = vmatpush1.xpose.msra.mxu0 0.0
  %237 = vmatprep.subr.mxu0 0.0
  %238 = vmatpush1.xpose.msra.mxu0 0.0
  %239 = vmatprep.subr.mxu0 0.0
  %240 = vmatpush1.xpose.msra.mxu0 0.0
  %241 = vmatprep.subr.mxu0 0.0
  %242 = vmatpush1.xpose.msra.mxu0 0.0
  %243 = vmatprep.subr.mxu0 0.0
  %244 = vmatpush1.xpose.msra.mxu0 0.0
  %245 = vmatprep.subr.mxu0 0.0
  %246 = vmatpush1.xpose.msra.mxu0 0.0
  %247 = vmatprep.subr.mxu0 0.0
  %248 = vmatpush1.xpose.msra.mxu0 0.0
  %249 = vmatprep.subr.mxu0 0.0
  %250 = vmatpush1.xpose.msra.mxu0 0.0
  %251 = vmatprep.subr.mxu0 0.0
  %252 = vmatpush1.xpose.msra.mxu0 0.0
  %253 = vmatprep.subr.mxu0 0.0
  %254 = vmatpush1.xpose.msra.mxu0 0.0
  %255 = vmatprep.subr.mxu0 0.0
  %256 = vmatpush1.xpose.msra.mxu0 0.0
  %257 = vmatprep.subr.mxu0 0.0
  %258 = vmatpush1.xpose.msra.mxu0 0.0
  %259 = vmatprep.subr.mxu0 0.0
  %260 = vmatpush1.xpose.msra.mxu0 0.0
  %261 = vmatprep.subr.mxu0 0.0
  %262 = vmatpush1.xpose.msra.mxu0 0.0
  %263 = vmatprep.subr.mxu0 0.0
  %264 = vmatpush1.xpose.msra.mxu0 0.0
  %265 = vmatprep.subr.mxu0 0.0
  %266 = vmatpush1.xpose.msra.mxu0 0.0
  %267 = vmatprep.mubr.f32.mxu0 0.0
  %268 = vmatmul.mubr.f32.gmra.mrb[0].mxu0 %v39
  %v269 = vpop.f32.mrb[0].mxu0
  %v270 = vadd.f32 %v33, %v269
  %v271 = vpop.f32.mrb[0].mxu0
  %272 = vmatprep.mubr.f32.mxu0 0.0
  %273 = vmatmul.mubr.f32.gmra.mrb[0].mxu0 %v42
  %v274 = vpop.f32.mrb[0].mxu0
  %v275 = vadd.f32 %v34, %v274
  %v276 = vpop.f32.mrb[0].mxu0
  %277 = vdwg.mxu0
  %v279 = vsel %vm37, %v28, 0
  %281 = vmatprep.subr.mxu0 0.0
  %282 = vmatpush1.xpose.msra.mxu0 %v279
  %283 = vmatprep.subr.mxu0 0.0
  %284 = vmatpush1.xpose.msra.mxu0 0.0
  %285 = vmatprep.subr.mxu0 0.0
  %286 = vmatpush1.xpose.msra.mxu0 0.0
  %287 = vmatprep.subr.mxu0 0.0
  %288 = vmatpush1.xpose.msra.mxu0 0.0
  %289 = vmatprep.subr.mxu0 0.0
  %290 = vmatpush1.xpose.msra.mxu0 0.0
  %291 = vmatprep.subr.mxu0 0.0
  %292 = vmatpush1.xpose.msra.mxu0 0.0
  %293 = vmatprep.subr.mxu0 0.0
  %294 = vmatpush1.xpose.msra.mxu0 0.0
  %295 = vmatprep.subr.mxu0 0.0
  %296 = vmatpush1.xpose.msra.mxu0 0.0
  %297 = vmatprep.subr.mxu0 0.0
  %298 = vmatpush1.xpose.msra.mxu0 0.0
  %299 = vmatprep.subr.mxu0 0.0
  %300 = vmatpush1.xpose.msra.mxu0 0.0
  %301 = vmatprep.subr.mxu0 0.0
  %302 = vmatpush1.xpose.msra.mxu0 0.0
  %303 = vmatprep.subr.mxu0 0.0
  %304 = vmatpush1.xpose.msra.mxu0 0.0
  %305 = vmatprep.subr.mxu0 0.0
  %306 = vmatpush1.xpose.msra.mxu0 0.0
  %307 = vmatprep.subr.mxu0 0.0
  %308 = vmatpush1.xpose.msra.mxu0 0.0
  %309 = vmatprep.subr.mxu0 0.0
  %310 = vmatpush1.xpose.msra.mxu0 0.0
  %311 = vmatprep.subr.mxu0 0.0
  %312 = vmatpush1.xpose.msra.mxu0 0.0
  %313 = vmatprep.subr.mxu0 0.0
  %314 = vmatpush1.xpose.msra.mxu0 0.0
  %315 = vmatprep.subr.mxu0 0.0
  %316 = vmatpush1.xpose.msra.mxu0 0.0
  %317 = vmatprep.subr.mxu0 0.0
  %318 = vmatpush1.xpose.msra.mxu0 0.0
  %319 = vmatprep.subr.mxu0 0.0
  %320 = vmatpush1.xpose.msra.mxu0 0.0
  %321 = vmatprep.subr.mxu0 0.0
  %322 = vmatpush1.xpose.msra.mxu0 0.0
  %323 = vmatprep.subr.mxu0 0.0
  %324 = vmatpush1.xpose.msra.mxu0 0.0
  %325 = vmatprep.subr.mxu0 0.0
  %326 = vmatpush1.xpose.msra.mxu0 0.0
  %327 = vmatprep.subr.mxu0 0.0
  %328 = vmatpush1.xpose.msra.mxu0 0.0
  %329 = vmatprep.subr.mxu0 0.0
  %330 = vmatpush1.xpose.msra.mxu0 0.0
  %331 = vmatprep.subr.mxu0 0.0
  %332 = vmatpush1.xpose.msra.mxu0 0.0
  %333 = vmatprep.subr.mxu0 0.0
  %334 = vmatpush1.xpose.msra.mxu0 0.0
  %335 = vmatprep.subr.mxu0 0.0
  %336 = vmatpush1.xpose.msra.mxu0 0.0
  %337 = vmatprep.subr.mxu0 0.0
  %338 = vmatpush1.xpose.msra.mxu0 0.0
  %339 = vmatprep.subr.mxu0 0.0
  %340 = vmatpush1.xpose.msra.mxu0 0.0
  %341 = vmatprep.subr.mxu0 0.0
  %342 = vmatpush1.xpose.msra.mxu0 0.0
  %343 = vmatprep.subr.mxu0 0.0
  %344 = vmatpush1.xpose.msra.mxu0 0.0
  %345 = vmatprep.mubr.f32.mxu0 0.0
  %346 = vmatmul.mubr.f32.gmra.mrb[0].mxu0 %v39
  %v347 = vpop.f32.mrb[0].mxu0
  %v348 = vadd.f32 %v35, %v347
  %v349 = vpop.f32.mrb[0].mxu0
  %350 = vmatprep.mubr.f32.mxu0 0.0
  %351 = vmatmul.mubr.f32.gmra.mrb[0].mxu0 %v42
  %v352 = vpop.f32.mrb[0].mxu0
  %v353 = vadd.f32 %v36, %v352
  %v354 = vpop.f32.mrb[0].mxu0
  %355 = vdwg.mxu0
  %s356 = scalar_lea.vmem %s1, 32
  %v357 = vld [vmem:[%s356] sm:$0xff]
  %v358 = vld [vmem:[%s356 + $0x8] sm:$0xff]
  %v359 = vld [vmem:[%s356 + $0x10] sm:$0xff]
  %v360 = vld [vmem:[%s356 + $0x18] sm:$0xff]
  %s361 = scalar_lea.vmem %s2, 64
  %v362 = vld [vmem:[%s361] sm:$0xff]
  %v363 = vld [vmem:[%s361 + $0x8] sm:$0xff]
  %v364 = vld [vmem:[%s361 + $0x10] sm:$0xff]
  %v365 = vld [vmem:[%s361 + $0x18] sm:$0xff]
  %v366 = vld [vmem:[%s361 + $0x20] sm:$0xff]
  %v367 = vld [vmem:[%s361 + $0x28] sm:$0xff]
  %v368 = vld [vmem:[%s361 + $0x30] sm:$0xff]
  %v369 = vld [vmem:[%s361 + $0x38] sm:$0xff]
  %v371 = vsel %vm37, %v357, 0
  %373 = vmatprep.subr.mxu0 0.0
  %374 = vmatpush1.xpose.msra.mxu0 %v371
  %375 = vmatprep.subr.mxu0 0.0
  %376 = vmatpush1.xpose.msra.mxu0 0.0
  %377 = vmatprep.subr.mxu0 0.0
  %378 = vmatpush1.xpose.msra.mxu0 0.0
  %379 = vmatprep.subr.mxu0 0.0
  %380 = vmatpush1.xpose.msra.mxu0 0.0
  %381 = vmatprep.subr.mxu0 0.0
  %382 = vmatpush1.xpose.msra.mxu0 0.0
  %383 = vmatprep.subr.mxu0 0.0
  %384 = vmatpush1.xpose.msra.mxu0 0.0
  %385 = vmatprep.subr.mxu0 0.0
  %386 = vmatpush1.xpose.msra.mxu0 0.0
  %387 = vmatprep.subr.mxu0 0.0
  %388 = vmatpush1.xpose.msra.mxu0 0.0
  %389 = vmatprep.subr.mxu0 0.0
  %390 = vmatpush1.xpose.msra.mxu0 0.0
  %391 = vmatprep.subr.mxu0 0.0
  %392 = vmatpush1.xpose.msra.mxu0 0.0
  %393 = vmatprep.subr.mxu0 0.0
  %394 = vmatpush1.xpose.msra.mxu0 0.0
  %395 = vmatprep.subr.mxu0 0.0
  %396 = vmatpush1.xpose.msra.mxu0 0.0
  %397 = vmatprep.subr.mxu0 0.0
  %398 = vmatpush1.xpose.msra.mxu0 0.0
  %399 = vmatprep.subr.mxu0 0.0
  %400 = vmatpush1.xpose.msra.mxu0 0.0
  %401 = vmatprep.subr.mxu0 0.0
  %402 = vmatpush1.xpose.msra.mxu0 0.0
  %403 = vmatprep.subr.mxu0 0.0
  %404 = vmatpush1.xpose.msra.mxu0 0.0
  %405 = vmatprep.subr.mxu0 0.0
  %406 = vmatpush1.xpose.msra.mxu0 0.0
  %407 = vmatprep.subr.mxu0 0.0
  %408 = vmatpush1.xpose.msra.mxu0 0.0
  %409 = vmatprep.subr.mxu0 0.0
  %410 = vmatpush1.xpose.msra.mxu0 0.0
  %411 = vmatprep.subr.mxu0 0.0
  %412 = vmatpush1.xpose.msra.mxu0 0.0
  %413 = vmatprep.subr.mxu0 0.0
  %414 = vmatpush1.xpose.msra.mxu0 0.0
  %415 = vmatprep.subr.mxu0 0.0
  %416 = vmatpush1.xpose.msra.mxu0 0.0
  %417 = vmatprep.subr.mxu0 0.0
  %418 = vmatpush1.xpose.msra.mxu0 0.0
  %419 = vmatprep.subr.mxu0 0.0
  %420 = vmatpush1.xpose.msra.mxu0 0.0
  %421 = vmatprep.subr.mxu0 0.0
  %422 = vmatpush1.xpose.msra.mxu0 0.0
  %423 = vmatprep.subr.mxu0 0.0
  %424 = vmatpush1.xpose.msra.mxu0 0.0
  %425 = vmatprep.subr.mxu0 0.0
  %426 = vmatpush1.xpose.msra.mxu0 0.0
  %427 = vmatprep.subr.mxu0 0.0
  %428 = vmatpush1.xpose.msra.mxu0 0.0
  %429 = vmatprep.subr.mxu0 0.0
  %430 = vmatpush1.xpose.msra.mxu0 0.0
  %431 = vmatprep.subr.mxu0 0.0
  %432 = vmatpush1.xpose.msra.mxu0 0.0
  %433 = vmatprep.subr.mxu0 0.0
  %434 = vmatpush1.xpose.msra.mxu0 0.0
  %435 = vmatprep.subr.mxu0 0.0
  %436 = vmatpush1.xpose.msra.mxu0 0.0
  %437 = vmatprep.mubr.f32.mxu0 0.0
  %438 = vmatmul.mubr.f32.gmra.mrb[0].mxu0 %v39
  %v439 = vpop.f32.mrb[0].mxu0
  %v440 = vadd.f32 %v362, %v439
  %v441 = vpop.f32.mrb[0].mxu0
  %442 = vmatprep.mubr.f32.mxu0 0.0
  %443 = vmatmul.mubr.f32.gmra.mrb[0].mxu0 %v42
  %v444 = vpop.f32.mrb[0].mxu0
  %v445 = vadd.f32 %v363, %v444
  %v446 = vpop.f32.mrb[0].mxu0
  %447 = vdwg.mxu0
  %v449 = vsel %vm37, %v358, 0
  %451 = vmatprep.subr.mxu0 0.0
  %452 = vmatpush1.xpose.msra.mxu0 %v449
  %453 = vmatprep.subr.mxu0 0.0
  %454 = vmatpush1.xpose.msra.mxu0 0.0
  %455 = vmatprep.subr.mxu0 0.0
  %456 = vmatpush1.xpose.msra.mxu0 0.0
  %457 = vmatprep.subr.mxu0 0.0
  %458 = vmatpush1.xpose.msra.mxu0 0.0
  %459 = vmatprep.subr.mxu0 0.0
  %460 = vmatpush1.xpose.msra.mxu0 0.0
  %461 = vmatprep.subr.mxu0 0.0
  %462 = vmatpush1.xpose.msra.mxu0 0.0
  %463 = vmatprep.subr.mxu0 0.0
  %464 = vmatpush1.xpose.msra.mxu0 0.0
  %465 = vmatprep.subr.mxu0 0.0
  %466 = vmatpush1.xpose.msra.mxu0 0.0
  %467 = vmatprep.subr.mxu0 0.0
  %468 = vmatpush1.xpose.msra.mxu0 0.0
  %469 = vmatprep.subr.mxu0 0.0
  %470 = vmatpush1.xpose.msra.mxu0 0.0
  %471 = vmatprep.subr.mxu0 0.0
  %472 = vmatpush1.xpose.msra.mxu0 0.0
  %473 = vmatprep.subr.mxu0 0.0
  %474 = vmatpush1.xpose.msra.mxu0 0.0
  %475 = vmatprep.subr.mxu0 0.0
  %476 = vmatpush1.xpose.msra.mxu0 0.0
  %477 = vmatprep.subr.mxu0 0.0
  %478 = vmatpush1.xpose.msra.mxu0 0.0
  %479 = vmatprep.subr.mxu0 0.0
  %480 = vmatpush1.xpose.msra.mxu0 0.0
  %481 = vmatprep.subr.mxu0 0.0
  %482 = vmatpush1.xpose.msra.mxu0 0.0
  %483 = vmatprep.subr.mxu0 0.0
  %484 = vmatpush1.xpose.msra.mxu0 0.0
  %485 = vmatprep.subr.mxu0 0.0
  %486 = vmatpush1.xpose.msra.mxu0 0.0
  %487 = vmatprep.subr.mxu0 0.0
  %488 = vmatpush1.xpose.msra.mxu0 0.0
  %489 = vmatprep.subr.mxu0 0.0
  %490 = vmatpush1.xpose.msra.mxu0 0.0
  %491 = vmatprep.subr.mxu0 0.0
  %492 = vmatpush1.xpose.msra.mxu0 0.0
  %493 = vmatprep.subr.mxu0 0.0
  %494 = vmatpush1.xpose.msra.mxu0 0.0
  %495 = vmatprep.subr.mxu0 0.0
  %496 = vmatpush1.xpose.msra.mxu0 0.0
  %497 = vmatprep.subr.mxu0 0.0
  %498 = vmatpush1.xpose.msra.mxu0 0.0
  %499 = vmatprep.subr.mxu0 0.0
  %500 = vmatpush1.xpose.msra.mxu0 0.0
  %501 = vmatprep.subr.mxu0 0.0
  %502 = vmatpush1.xpose.msra.mxu0 0.0
  %503 = vmatprep.subr.mxu0 0.0
  %504 = vmatpush1.xpose.msra.mxu0 0.0
  %505 = vmatprep.subr.mxu0 0.0
  %506 = vmatpush1.xpose.msra.mxu0 0.0
  %507 = vmatprep.subr.mxu0 0.0
  %508 = vmatpush1.xpose.msra.mxu0 0.0
  %509 = vmatprep.subr.mxu0 0.0
  %510 = vmatpush1.xpose.msra.mxu0 0.0
  %511 = vmatprep.subr.mxu0 0.0
  %512 = vmatpush1.xpose.msra.mxu0 0.0
  %513 = vmatprep.subr.mxu0 0.0
  %514 = vmatpush1.xpose.msra.mxu0 0.0
  %515 = vmatprep.mubr.f32.mxu0 0.0
  %516 = vmatmul.mubr.f32.gmra.mrb[0].mxu0 %v39
  %v517 = vpop.f32.mrb[0].mxu0
  %v518 = vadd.f32 %v364, %v517
  %v519 = vpop.f32.mrb[0].mxu0
  %520 = vmatprep.mubr.f32.mxu0 0.0
  %521 = vmatmul.mubr.f32.gmra.mrb[0].mxu0 %v42
  %v522 = vpop.f32.mrb[0].mxu0
  %v523 = vadd.f32 %v365, %v522
  %v524 = vpop.f32.mrb[0].mxu0
  %525 = vdwg.mxu0
  %v527 = vsel %vm37, %v359, 0
  %529 = vmatprep.subr.mxu0 0.0
  %530 = vmatpush1.xpose.msra.mxu0 %v527
  %531 = vmatprep.subr.mxu0 0.0
  %532 = vmatpush1.xpose.msra.mxu0 0.0
  %533 = vmatprep.subr.mxu0 0.0
  %534 = vmatpush1.xpose.msra.mxu0 0.0
  %535 = vmatprep.subr.mxu0 0.0
  %536 = vmatpush1.xpose.msra.mxu0 0.0
  %537 = vmatprep.subr.mxu0 0.0
  %538 = vmatpush1.xpose.msra.mxu0 0.0
  %539 = vmatprep.subr.mxu0 0.0
  %540 = vmatpush1.xpose.msra.mxu0 0.0
  %541 = vmatprep.subr.mxu0 0.0
  %542 = vmatpush1.xpose.msra.mxu0 0.0
  %543 = vmatprep.subr.mxu0 0.0
  %544 = vmatpush1.xpose.msra.mxu0 0.0
  %545 = vmatprep.subr.mxu0 0.0
  %546 = vmatpush1.xpose.msra.mxu0 0.0
  %547 = vmatprep.subr.mxu0 0.0
  %548 = vmatpush1.xpose.msra.mxu0 0.0
  %549 = vmatprep.subr.mxu0 0.0
  %550 = vmatpush1.xpose.msra.mxu0 0.0
  %551 = vmatprep.subr.mxu0 0.0
  %552 = vmatpush1.xpose.msra.mxu0 0.0
  %553 = vmatprep.subr.mxu0 0.0
  %554 = vmatpush1.xpose.msra.mxu0 0.0
  %555 = vmatprep.subr.mxu0 0.0
  %556 = vmatpush1.xpose.msra.mxu0 0.0
  %557 = vmatprep.subr.mxu0 0.0
  %558 = vmatpush1.xpose.msra.mxu0 0.0
  %559 = vmatprep.subr.mxu0 0.0
  %560 = vmatpush1.xpose.msra.mxu0 0.0
  %561 = vmatprep.subr.mxu0 0.0
  %562 = vmatpush1.xpose.msra.mxu0 0.0
  %563 = vmatprep.subr.mxu0 0.0
  %564 = vmatpush1.xpose.msra.mxu0 0.0
  %565 = vmatprep.subr.mxu0 0.0
  %566 = vmatpush1.xpose.msra.mxu0 0.0
  %567 = vmatprep.subr.mxu0 0.0
  %568 = vmatpush1.xpose.msra.mxu0 0.0
  %569 = vmatprep.subr.mxu0 0.0
  %570 = vmatpush1.xpose.msra.mxu0 0.0
  %571 = vmatprep.subr.mxu0 0.0
  %572 = vmatpush1.xpose.msra.mxu0 0.0
  %573 = vmatprep.subr.mxu0 0.0
  %574 = vmatpush1.xpose.msra.mxu0 0.0
  %575 = vmatprep.subr.mxu0 0.0
  %576 = vmatpush1.xpose.msra.mxu0 0.0
  %577 = vmatprep.subr.mxu0 0.0
  %578 = vmatpush1.xpose.msra.mxu0 0.0
  %579 = vmatprep.subr.mxu0 0.0
  %580 = vmatpush1.xpose.msra.mxu0 0.0
  %581 = vmatprep.subr.mxu0 0.0
  %582 = vmatpush1.xpose.msra.mxu0 0.0
  %583 = vmatprep.subr.mxu0 0.0
  %584 = vmatpush1.xpose.msra.mxu0 0.0
  %585 = vmatprep.subr.mxu0 0.0
  %586 = vmatpush1.xpose.msra.mxu0 0.0
  %587 = vmatprep.subr.mxu0 0.0
  %588 = vmatpush1.xpose.msra.mxu0 0.0
  %589 = vmatprep.subr.mxu0 0.0
  %590 = vmatpush1.xpose.msra.mxu0 0.0
  %591 = vmatprep.subr.mxu0 0.0
  %592 = vmatpush1.xpose.msra.mxu0 0.0
  %593 = vmatprep.mubr.f32.mxu0 0.0
  %594 = vmatmul.mubr.f32.gmra.mrb[0].mxu0 %v39
  %v595 = vpop.f32.mrb[0].mxu0
  %v596 = vadd.f32 %v366, %v595
  %v597 = vpop.f32.mrb[0].mxu0
  %598 = vmatprep.mubr.f32.mxu0 0.0
  %599 = vmatmul.mubr.f32.gmra.mrb[0].mxu0 %v42
  %v600 = vpop.f32.mrb[0].mxu0
  %v601 = vadd.f32 %v367, %v600
  %v602 = vpop.f32.mrb[0].mxu0
  %603 = vdwg.mxu0
  %v605 = vsel %vm37, %v360, 0
  %607 = vmatprep.subr.mxu0 0.0
  %608 = vmatpush1.xpose.msra.mxu0 %v605
  %609 = vmatprep.subr.mxu0 0.0
  %610 = vmatpush1.xpose.msra.mxu0 0.0
  %611 = vmatprep.subr.mxu0 0.0
  %612 = vmatpush1.xpose.msra.mxu0 0.0
  %613 = vmatprep.subr.mxu0 0.0
  %614 = vmatpush1.xpose.msra.mxu0 0.0
  %615 = vmatprep.subr.mxu0 0.0
  %616 = vmatpush1.xpose.msra.mxu0 0.0
  %617 = vmatprep.subr.mxu0 0.0
  %618 = vmatpush1.xpose.msra.mxu0 0.0
  %619 = vmatprep.subr.mxu0 0.0
  %620 = vmatpush1.xpose.msra.mxu0 0.0
  %621 = vmatprep.subr.mxu0 0.0
  %622 = vmatpush1.xpose.msra.mxu0 0.0
  %623 = vmatprep.subr.mxu0 0.0
  %624 = vmatpush1.xpose.msra.mxu0 0.0
  %625 = vmatprep.subr.mxu0 0.0
  %626 = vmatpush1.xpose.msra.mxu0 0.0
  %627 = vmatprep.subr.mxu0 0.0
  %628 = vmatpush1.xpose.msra.mxu0 0.0
  %629 = vmatprep.subr.mxu0 0.0
  %630 = vmatpush1.xpose.msra.mxu0 0.0
  %631 = vmatprep.subr.mxu0 0.0
  %632 = vmatpush1.xpose.msra.mxu0 0.0
  %633 = vmatprep.subr.mxu0 0.0
  %634 = vmatpush1.xpose.msra.mxu0 0.0
  %635 = vmatprep.subr.mxu0 0.0
  %636 = vmatpush1.xpose.msra.mxu0 0.0
  %637 = vmatprep.subr.mxu0 0.0
  %638 = vmatpush1.xpose.msra.mxu0 0.0
  %639 = vmatprep.subr.mxu0 0.0
  %640 = vmatpush1.xpose.msra.mxu0 0.0
  %641 = vmatprep.subr.mxu0 0.0
  %642 = vmatpush1.xpose.msra.mxu0 0.0
  %643 = vmatprep.subr.mxu0 0.0
  %644 = vmatpush1.xpose.msra.mxu0 0.0
  %645 = vmatprep.subr.mxu0 0.0
  %646 = vmatpush1.xpose.msra.mxu0 0.0
  %647 = vmatprep.subr.mxu0 0.0
  %648 = vmatpush1.xpose.msra.mxu0 0.0
  %649 = vmatprep.subr.mxu0 0.0
  %650 = vmatpush1.xpose.msra.mxu0 0.0
  %651 = vmatprep.subr.mxu0 0.0
  %652 = vmatpush1.xpose.msra.mxu0 0.0
  %653 = vmatprep.subr.mxu0 0.0
  %654 = vmatpush1.xpose.msra.mxu0 0.0
  %655 = vmatprep.subr.mxu0 0.0
  %656 = vmatpush1.xpose.msra.mxu0 0.0
  %657 = vmatprep.subr.mxu0 0.0
  %658 = vmatpush1.xpose.msra.mxu0 0.0
  %659 = vmatprep.subr.mxu0 0.0
  %660 = vmatpush1.xpose.msra.mxu0 0.0
  %661 = vmatprep.subr.mxu0 0.0
  %662 = vmatpush1.xpose.msra.mxu0 0.0
  %663 = vmatprep.subr.mxu0 0.0
  %664 = vmatpush1.xpose.msra.mxu0 0.0
  %665 = vmatprep.subr.mxu0 0.0
  %666 = vmatpush1.xpose.msra.mxu0 0.0
  %667 = vmatprep.subr.mxu0 0.0
  %668 = vmatpush1.xpose.msra.mxu0 0.0
  %669 = vmatprep.subr.mxu0 0.0
  %670 = vmatpush1.xpose.msra.mxu0 0.0
  %671 = vmatprep.mubr.f32.mxu0 0.0
  %672 = vmatmul.mubr.f32.gmra.mrb[0].mxu0 %v39
  %v673 = vpop.f32.mrb[0].mxu0
  %v674 = vadd.f32 %v368, %v673
  %v675 = vpop.f32.mrb[0].mxu0
  %676 = vmatprep.mubr.f32.mxu0 0.0
  %677 = vmatmul.mubr.f32.gmra.mrb[0].mxu0 %v42
  %v678 = vpop.f32.mrb[0].mxu0
  %v679 = vadd.f32 %v369, %v678
  %v680 = vpop.f32.mrb[0].mxu0
  %681 = vdwg.mxu0
  %s682 = scalar_lea.vmem %s1, 64
  %v683 = vld [vmem:[%s682] sm:$0xff]
  %v684 = vld [vmem:[%s682 + $0x8] sm:$0xff]
  %v685 = vld [vmem:[%s682 + $0x10] sm:$0xff]
  %v686 = vld [vmem:[%s682 + $0x18] sm:$0xff]
  %s687 = scalar_lea.vmem %s2, 128
  %v688 = vld [vmem:[%s687] sm:$0xff]
  %v689 = vld [vmem:[%s687 + $0x8] sm:$0xff]
  %v690 = vld [vmem:[%s687 + $0x10] sm:$0xff]
  %v691 = vld [vmem:[%s687 + $0x18] sm:$0xff]
  %v692 = vld [vmem:[%s687 + $0x20] sm:$0xff]
  %v693 = vld [vmem:[%s687 + $0x28] sm:$0xff]
  %v694 = vld [vmem:[%s687 + $0x30] sm:$0xff]
  %v695 = vld [vmem:[%s687 + $0x38] sm:$0xff]
  %v697 = vsel %vm37, %v683, 0
  %699 = vmatprep.subr.mxu0 0.0
  %700 = vmatpush1.xpose.msra.mxu0 %v697
  %701 = vmatprep.subr.mxu0 0.0
  %702 = vmatpush1.xpose.msra.mxu0 0.0
  %703 = vmatprep.subr.mxu0 0.0
  %704 = vmatpush1.xpose.msra.mxu0 0.0
  %705 = vmatprep.subr.mxu0 0.0
  %706 = vmatpush1.xpose.msra.mxu0 0.0
  %707 = vmatprep.subr.mxu0 0.0
  %708 = vmatpush1.xpose.msra.mxu0 0.0
  %709 = vmatprep.subr.mxu0 0.0
  %710 = vmatpush1.xpose.msra.mxu0 0.0
  %711 = vmatprep.subr.mxu0 0.0
  %712 = vmatpush1.xpose.msra.mxu0 0.0
  %713 = vmatprep.subr.mxu0 0.0
  %714 = vmatpush1.xpose.msra.mxu0 0.0
  %715 = vmatprep.subr.mxu0 0.0
  %716 = vmatpush1.xpose.msra.mxu0 0.0
  %717 = vmatprep.subr.mxu0 0.0
  %718 = vmatpush1.xpose.msra.mxu0 0.0
  %719 = vmatprep.subr.mxu0 0.0
  %720 = vmatpush1.xpose.msra.mxu0 0.0
  %721 = vmatprep.subr.mxu0 0.0
  %722 = vmatpush1.xpose.msra.mxu0 0.0
  %723 = vmatprep.subr.mxu0 0.0
  %724 = vmatpush1.xpose.msra.mxu0 0.0
  %725 = vmatprep.subr.mxu0 0.0
  %726 = vmatpush1.xpose.msra.mxu0 0.0
  %727 = vmatprep.subr.mxu0 0.0
  %728 = vmatpush1.xpose.msra.mxu0 0.0
  %729 = vmatprep.subr.mxu0 0.0
  %730 = vmatpush1.xpose.msra.mxu0 0.0
  %731 = vmatprep.subr.mxu0 0.0
  %732 = vmatpush1.xpose.msra.mxu0 0.0
  %733 = vmatprep.subr.mxu0 0.0
  %734 = vmatpush1.xpose.msra.mxu0 0.0
  %735 = vmatprep.subr.mxu0 0.0
  %736 = vmatpush1.xpose.msra.mxu0 0.0
  %737 = vmatprep.subr.mxu0 0.0
  %738 = vmatpush1.xpose.msra.mxu0 0.0
  %739 = vmatprep.subr.mxu0 0.0
  %740 = vmatpush1.xpose.msra.mxu0 0.0
  %741 = vmatprep.subr.mxu0 0.0
  %742 = vmatpush1.xpose.msra.mxu0 0.0
  %743 = vmatprep.subr.mxu0 0.0
  %744 = vmatpush1.xpose.msra.mxu0 0.0
  %745 = vmatprep.subr.mxu0 0.0
  %746 = vmatpush1.xpose.msra.mxu0 0.0
  %747 = vmatprep.subr.mxu0 0.0
  %748 = vmatpush1.xpose.msra.mxu0 0.0
  %749 = vmatprep.subr.mxu0 0.0
  %750 = vmatpush1.xpose.msra.mxu0 0.0
  %751 = vmatprep.subr.mxu0 0.0
  %752 = vmatpush1.xpose.msra.mxu0 0.0
  %753 = vmatprep.subr.mxu0 0.0
  %754 = vmatpush1.xpose.msra.mxu0 0.0
  %755 = vmatprep.subr.mxu0 0.0
  %756 = vmatpush1.xpose.msra.mxu0 0.0
  %757 = vmatprep.subr.mxu0 0.0
  %758 = vmatpush1.xpose.msra.mxu0 0.0
  %759 = vmatprep.subr.mxu0 0.0
  %760 = vmatpush1.xpose.msra.mxu0 0.0
  %761 = vmatprep.subr.mxu0 0.0
  %762 = vmatpush1.xpose.msra.mxu0 0.0
  %763 = vmatprep.mubr.f32.mxu0 0.0
  %764 = vmatmul.mubr.f32.gmra.mrb[0].mxu0 %v39
  %v765 = vpop.f32.mrb[0].mxu0
  %v766 = vadd.f32 %v688, %v765
  %v767 = vpop.f32.mrb[0].mxu0
  %768 = vmatprep.mubr.f32.mxu0 0.0
  %769 = vmatmul.mubr.f32.gmra.mrb[0].mxu0 %v42
  %v770 = vpop.f32.mrb[0].mxu0
  %v771 = vadd.f32 %v689, %v770
  %v772 = vpop.f32.mrb[0].mxu0
  %773 = vdwg.mxu0
  %v775 = vsel %vm37, %v684, 0
  %777 = vmatprep.subr.mxu0 0.0
  %778 = vmatpush1.xpose.msra.mxu0 %v775
  %779 = vmatprep.subr.mxu0 0.0
  %780 = vmatpush1.xpose.msra.mxu0 0.0
  %781 = vmatprep.subr.mxu0 0.0
  %782 = vmatpush1.xpose.msra.mxu0 0.0
  %783 = vmatprep.subr.mxu0 0.0
  %784 = vmatpush1.xpose.msra.mxu0 0.0
  %785 = vmatprep.subr.mxu0 0.0
  %786 = vmatpush1.xpose.msra.mxu0 0.0
  %787 = vmatprep.subr.mxu0 0.0
  %788 = vmatpush1.xpose.msra.mxu0 0.0
  %789 = vmatprep.subr.mxu0 0.0
  %790 = vmatpush1.xpose.msra.mxu0 0.0
  %791 = vmatprep.subr.mxu0 0.0
  %792 = vmatpush1.xpose.msra.mxu0 0.0
  %793 = vmatprep.subr.mxu0 0.0
  %794 = vmatpush1.xpose.msra.mxu0 0.0
  %795 = vmatprep.subr.mxu0 0.0
  %796 = vmatpush1.xpose.msra.mxu0 0.0
  %797 = vmatprep.subr.mxu0 0.0
  %798 = vmatpush1.xpose.msra.mxu0 0.0
  %799 = vmatprep.subr.mxu0 0.0
  %800 = vmatpush1.xpose.msra.mxu0 0.0
  %801 = vmatprep.subr.mxu0 0.0
  %802 = vmatpush1.xpose.msra.mxu0 0.0
  %803 = vmatprep.subr.mxu0 0.0
  %804 = vmatpush1.xpose.msra.mxu0 0.0
  %805 = vmatprep.subr.mxu0 0.0
  %806 = vmatpush1.xpose.msra.mxu0 0.0
  %807 = vmatprep.subr.mxu0 0.0
  %808 = vmatpush1.xpose.msra.mxu0 0.0
  %809 = vmatprep.subr.mxu0 0.0
  %810 = vmatpush1.xpose.msra.mxu0 0.0
  %811 = vmatprep.subr.mxu0 0.0
  %812 = vmatpush1.xpose.msra.mxu0 0.0
  %813 = vmatprep.subr.mxu0 0.0
  %814 = vmatpush1.xpose.msra.mxu0 0.0
  %815 = vmatprep.subr.mxu0 0.0
  %816 = vmatpush1.xpose.msra.mxu0 0.0
  %817 = vmatprep.subr.mxu0 0.0
  %818 = vmatpush1.xpose.msra.mxu0 0.0
  %819 = vmatprep.subr.mxu0 0.0
  %820 = vmatpush1.xpose.msra.mxu0 0.0
  %821 = vmatprep.subr.mxu0 0.0
  %822 = vmatpush1.xpose.msra.mxu0 0.0
  %823 = vmatprep.subr.mxu0 0.0
  %824 = vmatpush1.xpose.msra.mxu0 0.0
  %825 = vmatprep.subr.mxu0 0.0
  %826 = vmatpush1.xpose.msra.mxu0 0.0
  %827 = vmatprep.subr.mxu0 0.0
  %828 = vmatpush1.xpose.msra.mxu0 0.0
  %829 = vmatprep.subr.mxu0 0.0
  %830 = vmatpush1.xpose.msra.mxu0 0.0
  %831 = vmatprep.subr.mxu0 0.0
  %832 = vmatpush1.xpose.msra.mxu0 0.0
  %833 = vmatprep.subr.mxu0 0.0
  %834 = vmatpush1.xpose.msra.mxu0 0.0
  %835 = vmatprep.subr.mxu0 0.0
  %836 = vmatpush1.xpose.msra.mxu0 0.0
  %837 = vmatprep.subr.mxu0 0.0
  %838 = vmatpush1.xpose.msra.mxu0 0.0
  %839 = vmatprep.subr.mxu0 0.0
  %840 = vmatpush1.xpose.msra.mxu0 0.0
  %841 = vmatprep.mubr.f32.mxu0 0.0
  %842 = vmatmul.mubr.f32.gmra.mrb[0].mxu0 %v39
  %v843 = vpop.f32.mrb[0].mxu0
  %v844 = vadd.f32 %v690, %v843
  %v845 = vpop.f32.mrb[0].mxu0
  %846 = vmatprep.mubr.f32.mxu0 0.0
  %847 = vmatmul.mubr.f32.gmra.mrb[0].mxu0 %v42
  %v848 = vpop.f32.mrb[0].mxu0
  %v849 = vadd.f32 %v691, %v848
  %v850 = vpop.f32.mrb[0].mxu0
  %851 = vdwg.mxu0
  %v853 = vsel %vm37, %v685, 0
  %855 = vmatprep.subr.mxu0 0.0
  %856 = vmatpush1.xpose.msra.mxu0 %v853
  %857 = vmatprep.subr.mxu0 0.0
  %858 = vmatpush1.xpose.msra.mxu0 0.0
  %859 = vmatprep.subr.mxu0 0.0
  %860 = vmatpush1.xpose.msra.mxu0 0.0
  %861 = vmatprep.subr.mxu0 0.0
  %862 = vmatpush1.xpose.msra.mxu0 0.0
  %863 = vmatprep.subr.mxu0 0.0
  %864 = vmatpush1.xpose.msra.mxu0 0.0
  %865 = vmatprep.subr.mxu0 0.0
  %866 = vmatpush1.xpose.msra.mxu0 0.0
  %867 = vmatprep.subr.mxu0 0.0
  %868 = vmatpush1.xpose.msra.mxu0 0.0
  %869 = vmatprep.subr.mxu0 0.0
  %870 = vmatpush1.xpose.msra.mxu0 0.0
  %871 = vmatprep.subr.mxu0 0.0
  %872 = vmatpush1.xpose.msra.mxu0 0.0
  %873 = vmatprep.subr.mxu0 0.0
  %874 = vmatpush1.xpose.msra.mxu0 0.0
  %875 = vmatprep.subr.mxu0 0.0
  %876 = vmatpush1.xpose.msra.mxu0 0.0
  %877 = vmatprep.subr.mxu0 0.0
  %878 = vmatpush1.xpose.msra.mxu0 0.0
  %879 = vmatprep.subr.mxu0 0.0
  %880 = vmatpush1.xpose.msra.mxu0 0.0
  %881 = vmatprep.subr.mxu0 0.0
  %882 = vmatpush1.xpose.msra.mxu0 0.0
  %883 = vmatprep.subr.mxu0 0.0
  %884 = vmatpush1.xpose.msra.mxu0 0.0
  %885 = vmatprep.subr.mxu0 0.0
  %886 = vmatpush1.xpose.msra.mxu0 0.0
  %887 = vmatprep.subr.mxu0 0.0
  %888 = vmatpush1.xpose.msra.mxu0 0.0
  %889 = vmatprep.subr.mxu0 0.0
  %890 = vmatpush1.xpose.msra.mxu0 0.0
  %891 = vmatprep.subr.mxu0 0.0
  %892 = vmatpush1.xpose.msra.mxu0 0.0
  %893 = vmatprep.subr.mxu0 0.0
  %894 = vmatpush1.xpose.msra.mxu0 0.0
  %895 = vmatprep.subr.mxu0 0.0
  %896 = vmatpush1.xpose.msra.mxu0 0.0
  %897 = vmatprep.subr.mxu0 0.0
  %898 = vmatpush1.xpose.msra.mxu0 0.0
  %899 = vmatprep.subr.mxu0 0.0
  %900 = vmatpush1.xpose.msra.mxu0 0.0
  %901 = vmatprep.subr.mxu0 0.0
  %902 = vmatpush1.xpose.msra.mxu0 0.0
  %903 = vmatprep.subr.mxu0 0.0
  %904 = vmatpush1.xpose.msra.mxu0 0.0
  %905 = vmatprep.subr.mxu0 0.0
  %906 = vmatpush1.xpose.msra.mxu0 0.0
  %907 = vmatprep.subr.mxu0 0.0
  %908 = vmatpush1.xpose.msra.mxu0 0.0
  %909 = vmatprep.subr.mxu0 0.0
  %910 = vmatpush1.xpose.msra.mxu0 0.0
  %911 = vmatprep.subr.mxu0 0.0
  %912 = vmatpush1.xpose.msra.mxu0 0.0
  %913 = vmatprep.subr.mxu0 0.0
  %914 = vmatpush1.xpose.msra.mxu0 0.0
  %915 = vmatprep.subr.mxu0 0.0
  %916 = vmatpush1.xpose.msra.mxu0 0.0
  %917 = vmatprep.subr.mxu0 0.0
  %918 = vmatpush1.xpose.msra.mxu0 0.0
  %919 = vmatprep.mubr.f32.mxu0 0.0
  %920 = vmatmul.mubr.f32.gmra.mrb[0].mxu0 %v39
  %v921 = vpop.f32.mrb[0].mxu0
  %v922 = vadd.f32 %v692, %v921
  %v923 = vpop.f32.mrb[0].mxu0
  %924 = vmatprep.mubr.f32.mxu0 0.0
  %925 = vmatmul.mubr.f32.gmra.mrb[0].mxu0 %v42
  %v926 = vpop.f32.mrb[0].mxu0
  %v927 = vadd.f32 %v693, %v926
  %v928 = vpop.f32.mrb[0].mxu0
  %929 = vdwg.mxu0
  %v931 = vsel %vm37, %v686, 0
  %933 = vmatprep.subr.mxu0 0.0
  %934 = vmatpush1.xpose.msra.mxu0 %v931
  %935 = vmatprep.subr.mxu0 0.0
  %936 = vmatpush1.xpose.msra.mxu0 0.0
  %937 = vmatprep.subr.mxu0 0.0
  %938 = vmatpush1.xpose.msra.mxu0 0.0
  %939 = vmatprep.subr.mxu0 0.0
  %940 = vmatpush1.xpose.msra.mxu0 0.0
  %941 = vmatprep.subr.mxu0 0.0
  %942 = vmatpush1.xpose.msra.mxu0 0.0
  %943 = vmatprep.subr.mxu0 0.0
  %944 = vmatpush1.xpose.msra.mxu0 0.0
  %945 = vmatprep.subr.mxu0 0.0
  %946 = vmatpush1.xpose.msra.mxu0 0.0
  %947 = vmatprep.subr.mxu0 0.0
  %948 = vmatpush1.xpose.msra.mxu0 0.0
  %949 = vmatprep.subr.mxu0 0.0
  %950 = vmatpush1.xpose.msra.mxu0 0.0
  %951 = vmatprep.subr.mxu0 0.0
  %952 = vmatpush1.xpose.msra.mxu0 0.0
  %953 = vmatprep.subr.mxu0 0.0
  %954 = vmatpush1.xpose.msra.mxu0 0.0
  %955 = vmatprep.subr.mxu0 0.0
  %956 = vmatpush1.xpose.msra.mxu0 0.0
  %957 = vmatprep.subr.mxu0 0.0
  %958 = vmatpush1.xpose.msra.mxu0 0.0
  %959 = vmatprep.subr.mxu0 0.0
  %960 = vmatpush1.xpose.msra.mxu0 0.0
  %961 = vmatprep.subr.mxu0 0.0
  %962 = vmatpush1.xpose.msra.mxu0 0.0
  %963 = vmatprep.subr.mxu0 0.0
  %964 = vmatpush1.xpose.msra.mxu0 0.0
  %965 = vmatprep.subr.mxu0 0.0
  %966 = vmatpush1.xpose.msra.mxu0 0.0
  %967 = vmatprep.subr.mxu0 0.0
  %968 = vmatpush1.xpose.msra.mxu0 0.0
  %969 = vmatprep.subr.mxu0 0.0
  %970 = vmatpush1.xpose.msra.mxu0 0.0
  %971 = vmatprep.subr.mxu0 0.0
  %972 = vmatpush1.xpose.msra.mxu0 0.0
  %973 = vmatprep.subr.mxu0 0.0
  %974 = vmatpush1.xpose.msra.mxu0 0.0
  %975 = vmatprep.subr.mxu0 0.0
  %976 = vmatpush1.xpose.msra.mxu0 0.0
  %977 = vmatprep.subr.mxu0 0.0
  %978 = vmatpush1.xpose.msra.mxu0 0.0
  %979 = vmatprep.subr.mxu0 0.0
  %980 = vmatpush1.xpose.msra.mxu0 0.0
  %981 = vmatprep.subr.mxu0 0.0
  %982 = vmatpush1.xpose.msra.mxu0 0.0
  %983 = vmatprep.subr.mxu0 0.0
  %984 = vmatpush1.xpose.msra.mxu0 0.0
  %985 = vmatprep.subr.mxu0 0.0
  %986 = vmatpush1.xpose.msra.mxu0 0.0
  %987 = vmatprep.subr.mxu0 0.0
  %988 = vmatpush1.xpose.msra.mxu0 0.0
  %989 = vmatprep.subr.mxu0 0.0
  %990 = vmatpush1.xpose.msra.mxu0 0.0
  %991 = vmatprep.subr.mxu0 0.0
  %992 = vmatpush1.xpose.msra.mxu0 0.0
  %993 = vmatprep.subr.mxu0 0.0
  %994 = vmatpush1.xpose.msra.mxu0 0.0
  %995 = vmatprep.subr.mxu0 0.0
  %996 = vmatpush1.xpose.msra.mxu0 0.0
  %997 = vmatprep.mubr.f32.mxu0 0.0
  %998 = vmatmul.mubr.f32.gmra.mrb[0].mxu0 %v39
  %v999 = vpop.f32.mrb[0].mxu0
  %v1000 = vadd.f32 %v694, %v999
  %v1001 = vpop.f32.mrb[0].mxu0
  %1002 = vmatprep.mubr.f32.mxu0 0.0
  %1003 = vmatmul.mubr.f32.gmra.mrb[0].mxu0 %v42
  %v1004 = vpop.f32.mrb[0].mxu0
  %v1005 = vadd.f32 %v695, %v1004
  %v1006 = vpop.f32.mrb[0].mxu0
  %1007 = vdwg.mxu0
  %s1008 = scalar_lea.vmem %s1, 96
  %v1009 = vld [vmem:[%s1008] sm:$0xff]
  %v1010 = vld [vmem:[%s1008 + $0x8] sm:$0xff]
  %v1011 = vld [vmem:[%s1008 + $0x10] sm:$0xff]
  %v1012 = vld [vmem:[%s1008 + $0x18] sm:$0xff]
  %vm1013 = vcmask 64512
  %v1015 = vsel %vm1013, %v114, 0
  %v1018 = vsel %vm1013, %v440, 0
  %1020 = vmatprep.subr.mxu0 0.0
  %1021 = vmatpush1.xpose.msra.mxu0 %v1018
  %1022 = vmatprep.subr.mxu0 0.0
  %1023 = vmatpush1.xpose.msra.mxu0 0.0
  %1024 = vmatprep.subr.mxu0 0.0
  %1025 = vmatpush1.xpose.msra.mxu0 0.0
  %1026 = vmatprep.subr.mxu0 0.0
  %1027 = vmatpush1.xpose.msra.mxu0 0.0
  %1028 = vmatprep.subr.mxu0 0.0
  %1029 = vmatpush1.xpose.msra.mxu0 0.0
  %1030 = vmatprep.subr.mxu0 0.0
  %1031 = vmatpush1.xpose.msra.mxu0 0.0
  %1032 = vmatprep.subr.mxu0 0.0
  %1033 = vmatpush1.xpose.msra.mxu0 0.0
  %1034 = vmatprep.subr.mxu0 0.0
  %1035 = vmatpush1.xpose.msra.mxu0 0.0
  %1036 = vmatprep.subr.mxu0 0.0
  %1037 = vmatpush1.xpose.msra.mxu0 0.0
  %1038 = vmatprep.subr.mxu0 0.0
  %1039 = vmatpush1.xpose.msra.mxu0 0.0
  %1040 = vmatprep.subr.mxu0 0.0
  %1041 = vmatpush1.xpose.msra.mxu0 0.0
  %1042 = vmatprep.subr.mxu0 0.0
  %1043 = vmatpush1.xpose.msra.mxu0 0.0
  %1044 = vmatprep.subr.mxu0 0.0
  %1045 = vmatpush1.xpose.msra.mxu0 0.0
  %1046 = vmatprep.subr.mxu0 0.0
  %1047 = vmatpush1.xpose.msra.mxu0 0.0
  %1048 = vmatprep.subr.mxu0 0.0
  %1049 = vmatpush1.xpose.msra.mxu0 0.0
  %1050 = vmatprep.subr.mxu0 0.0
  %1051 = vmatpush1.xpose.msra.mxu0 0.0
  %1052 = vmatprep.subr.mxu0 0.0
  %1053 = vmatpush1.xpose.msra.mxu0 0.0
  %1054 = vmatprep.subr.mxu0 0.0
  %1055 = vmatpush1.xpose.msra.mxu0 0.0
  %1056 = vmatprep.subr.mxu0 0.0
  %1057 = vmatpush1.xpose.msra.mxu0 0.0
  %1058 = vmatprep.subr.mxu0 0.0
  %1059 = vmatpush1.xpose.msra.mxu0 0.0
  %1060 = vmatprep.subr.mxu0 0.0
  %1061 = vmatpush1.xpose.msra.mxu0 0.0
  %1062 = vmatprep.subr.mxu0 0.0
  %1063 = vmatpush1.xpose.msra.mxu0 0.0
  %1064 = vmatprep.subr.mxu0 0.0
  %1065 = vmatpush1.xpose.msra.mxu0 0.0
  %1066 = vmatprep.subr.mxu0 0.0
  %1067 = vmatpush1.xpose.msra.mxu0 0.0
  %1068 = vmatprep.subr.mxu0 0.0
  %1069 = vmatpush1.xpose.msra.mxu0 0.0
  %1070 = vmatprep.subr.mxu0 0.0
  %1071 = vmatpush1.xpose.msra.mxu0 0.0
  %1072 = vmatprep.subr.mxu0 0.0
  %1073 = vmatpush1.xpose.msra.mxu0 0.0
  %1074 = vmatprep.subr.mxu0 0.0
  %1075 = vmatpush1.xpose.msra.mxu0 0.0
  %1076 = vmatprep.subr.mxu0 0.0
  %1077 = vmatpush1.xpose.msra.mxu0 0.0
  %1078 = vmatprep.subr.mxu0 0.0
  %1079 = vmatpush1.xpose.msra.mxu0 0.0
  %1080 = vmatprep.subr.mxu0 0.0
  %1081 = vmatpush1.xpose.msra.mxu0 0.0
  %1082 = vmatprep.subr.mxu0 0.0
  %1083 = vmatpush1.xpose.msra.mxu0 0.0
  %1084 = vmatprep.mubr.f32.mxu0 0.0
  %1085 = vmatmul.mubr.f32.gmra.mrb[0].mxu0 %v1015
  %v1086 = vpop.f32.mrb[0].mxu0
  %v1087 = vadd.f32 0.0, %v1086
  %v1088 = vpop.f32.mrb[0].mxu0
  %1089 = vdwg.mxu0
  %v1091 = vsel %vm1013, %v192, 0
  %v1094 = vsel %vm1013, %v518, 0
  %1096 = vmatprep.subr.mxu0 0.0
  %1097 = vmatpush1.xpose.msra.mxu0 %v1094
  %1098 = vmatprep.subr.mxu0 0.0
  %1099 = vmatpush1.xpose.msra.mxu0 0.0
  %1100 = vmatprep.subr.mxu0 0.0
  %1101 = vmatpush1.xpose.msra.mxu0 0.0
  %1102 = vmatprep.subr.mxu0 0.0
  %1103 = vmatpush1.xpose.msra.mxu0 0.0
  %1104 = vmatprep.subr.mxu0 0.0
  %1105 = vmatpush1.xpose.msra.mxu0 0.0
  %1106 = vmatprep.subr.mxu0 0.0
  %1107 = vmatpush1.xpose.msra.mxu0 0.0
  %1108 = vmatprep.subr.mxu0 0.0
  %1109 = vmatpush1.xpose.msra.mxu0 0.0
  %1110 = vmatprep.subr.mxu0 0.0
  %1111 = vmatpush1.xpose.msra.mxu0 0.0
  %1112 = vmatprep.subr.mxu0 0.0
  %1113 = vmatpush1.xpose.msra.mxu0 0.0
  %1114 = vmatprep.subr.mxu0 0.0
  %1115 = vmatpush1.xpose.msra.mxu0 0.0
  %1116 = vmatprep.subr.mxu0 0.0
  %1117 = vmatpush1.xpose.msra.mxu0 0.0
  %1118 = vmatprep.subr.mxu0 0.0
  %1119 = vmatpush1.xpose.msra.mxu0 0.0
  %1120 = vmatprep.subr.mxu0 0.0
  %1121 = vmatpush1.xpose.msra.mxu0 0.0
  %1122 = vmatprep.subr.mxu0 0.0
  %1123 = vmatpush1.xpose.msra.mxu0 0.0
  %1124 = vmatprep.subr.mxu0 0.0
  %1125 = vmatpush1.xpose.msra.mxu0 0.0
  %1126 = vmatprep.subr.mxu0 0.0
  %1127 = vmatpush1.xpose.msra.mxu0 0.0
  %1128 = vmatprep.subr.mxu0 0.0
  %1129 = vmatpush1.xpose.msra.mxu0 0.0
  %1130 = vmatprep.subr.mxu0 0.0
  %1131 = vmatpush1.xpose.msra.mxu0 0.0
  %1132 = vmatprep.subr.mxu0 0.0
  %1133 = vmatpush1.xpose.msra.mxu0 0.0
  %1134 = vmatprep.subr.mxu0 0.0
  %1135 = vmatpush1.xpose.msra.mxu0 0.0
  %1136 = vmatprep.subr.mxu0 0.0
  %1137 = vmatpush1.xpose.msra.mxu0 0.0
  %1138 = vmatprep.subr.mxu0 0.0
  %1139 = vmatpush1.xpose.msra.mxu0 0.0
  %1140 = vmatprep.subr.mxu0 0.0
  %1141 = vmatpush1.xpose.msra.mxu0 0.0
  %1142 = vmatprep.subr.mxu0 0.0
  %1143 = vmatpush1.xpose.msra.mxu0 0.0
  %1144 = vmatprep.subr.mxu0 0.0
  %1145 = vmatpush1.xpose.msra.mxu0 0.0
  %1146 = vmatprep.subr.mxu0 0.0
  %1147 = vmatpush1.xpose.msra.mxu0 0.0
  %1148 = vmatprep.subr.mxu0 0.0
  %1149 = vmatpush1.xpose.msra.mxu0 0.0
  %1150 = vmatprep.subr.mxu0 0.0
  %1151 = vmatpush1.xpose.msra.mxu0 0.0
  %1152 = vmatprep.subr.mxu0 0.0
  %1153 = vmatpush1.xpose.msra.mxu0 0.0
  %1154 = vmatprep.subr.mxu0 0.0
  %1155 = vmatpush1.xpose.msra.mxu0 0.0
  %1156 = vmatprep.subr.mxu0 0.0
  %1157 = vmatpush1.xpose.msra.mxu0 0.0
  %1158 = vmatprep.subr.mxu0 0.0
  %1159 = vmatpush1.xpose.msra.mxu0 0.0
  %1160 = vmatprep.mubr.f32.mxu0 0.0
  %1161 = vmatmul.mubr.f32.gmra.mrb[0].mxu0 %v1091
  %v1162 = vpop.f32.mrb[0].mxu0
  %v1163 = vadd.f32 0.0, %v1162
  %v1164 = vpop.f32.mrb[0].mxu0
  %1165 = vdwg.mxu0
  %v1167 = vsel %vm1013, %v270, 0
  %v1170 = vsel %vm1013, %v596, 0
  %1172 = vmatprep.subr.mxu0 0.0
  %1173 = vmatpush1.xpose.msra.mxu0 %v1170
  %1174 = vmatprep.subr.mxu0 0.0
  %1175 = vmatpush1.xpose.msra.mxu0 0.0
  %1176 = vmatprep.subr.mxu0 0.0
  %1177 = vmatpush1.xpose.msra.mxu0 0.0
  %1178 = vmatprep.subr.mxu0 0.0
  %1179 = vmatpush1.xpose.msra.mxu0 0.0
  %1180 = vmatprep.subr.mxu0 0.0
  %1181 = vmatpush1.xpose.msra.mxu0 0.0
  %1182 = vmatprep.subr.mxu0 0.0
  %1183 = vmatpush1.xpose.msra.mxu0 0.0
  %1184 = vmatprep.subr.mxu0 0.0
  %1185 = vmatpush1.xpose.msra.mxu0 0.0
  %1186 = vmatprep.subr.mxu0 0.0
  %1187 = vmatpush1.xpose.msra.mxu0 0.0
  %1188 = vmatprep.subr.mxu0 0.0
  %1189 = vmatpush1.xpose.msra.mxu0 0.0
  %1190 = vmatprep.subr.mxu0 0.0
  %1191 = vmatpush1.xpose.msra.mxu0 0.0
  %1192 = vmatprep.subr.mxu0 0.0
  %1193 = vmatpush1.xpose.msra.mxu0 0.0
  %1194 = vmatprep.subr.mxu0 0.0
  %1195 = vmatpush1.xpose.msra.mxu0 0.0
  %1196 = vmatprep.subr.mxu0 0.0
  %1197 = vmatpush1.xpose.msra.mxu0 0.0
  %1198 = vmatprep.subr.mxu0 0.0
  %1199 = vmatpush1.xpose.msra.mxu0 0.0
  %1200 = vmatprep.subr.mxu0 0.0
  %1201 = vmatpush1.xpose.msra.mxu0 0.0
  %1202 = vmatprep.subr.mxu0 0.0
  %1203 = vmatpush1.xpose.msra.mxu0 0.0
  %1204 = vmatprep.subr.mxu0 0.0
  %1205 = vmatpush1.xpose.msra.mxu0 0.0
  %1206 = vmatprep.subr.mxu0 0.0
  %1207 = vmatpush1.xpose.msra.mxu0 0.0
  %1208 = vmatprep.subr.mxu0 0.0
  %1209 = vmatpush1.xpose.msra.mxu0 0.0
  %1210 = vmatprep.subr.mxu0 0.0
  %1211 = vmatpush1.xpose.msra.mxu0 0.0
  %1212 = vmatprep.subr.mxu0 0.0
  %1213 = vmatpush1.xpose.msra.mxu0 0.0
  %1214 = vmatprep.subr.mxu0 0.0
  %1215 = vmatpush1.xpose.msra.mxu0 0.0
  %1216 = vmatprep.subr.mxu0 0.0
  %1217 = vmatpush1.xpose.msra.mxu0 0.0
  %1218 = vmatprep.subr.mxu0 0.0
  %1219 = vmatpush1.xpose.msra.mxu0 0.0
  %1220 = vmatprep.subr.mxu0 0.0
  %1221 = vmatpush1.xpose.msra.mxu0 0.0
  %1222 = vmatprep.subr.mxu0 0.0
  %1223 = vmatpush1.xpose.msra.mxu0 0.0
  %1224 = vmatprep.subr.mxu0 0.0
  %1225 = vmatpush1.xpose.msra.mxu0 0.0
  %1226 = vmatprep.subr.mxu0 0.0
  %1227 = vmatpush1.xpose.msra.mxu0 0.0
  %1228 = vmatprep.subr.mxu0 0.0
  %1229 = vmatpush1.xpose.msra.mxu0 0.0
  %1230 = vmatprep.subr.mxu0 0.0
  %1231 = vmatpush1.xpose.msra.mxu0 0.0
  %1232 = vmatprep.subr.mxu0 0.0
  %1233 = vmatpush1.xpose.msra.mxu0 0.0
  %1234 = vmatprep.subr.mxu0 0.0
  %1235 = vmatpush1.xpose.msra.mxu0 0.0
  %1236 = vmatprep.mubr.f32.mxu0 0.0
  %1237 = vmatmul.mubr.f32.gmra.mrb[0].mxu0 %v1167
  %v1238 = vpop.f32.mrb[0].mxu0
  %v1239 = vadd.f32 0.0, %v1238
  %v1240 = vpop.f32.mrb[0].mxu0
  %1241 = vdwg.mxu0
  %v1243 = vsel %vm1013, %v348, 0
  %v1246 = vsel %vm1013, %v674, 0
  %1248 = vmatprep.subr.mxu0 0.0
  %1249 = vmatpush1.xpose.msra.mxu0 %v1246
  %1250 = vmatprep.subr.mxu0 0.0
  %1251 = vmatpush1.xpose.msra.mxu0 0.0
  %1252 = vmatprep.subr.mxu0 0.0
  %1253 = vmatpush1.xpose.msra.mxu0 0.0
  %1254 = vmatprep.subr.mxu0 0.0
  %1255 = vmatpush1.xpose.msra.mxu0 0.0
  %1256 = vmatprep.subr.mxu0 0.0
  %1257 = vmatpush1.xpose.msra.mxu0 0.0
  %1258 = vmatprep.subr.mxu0 0.0
  %1259 = vmatpush1.xpose.msra.mxu0 0.0
  %1260 = vmatprep.subr.mxu0 0.0
  %1261 = vmatpush1.xpose.msra.mxu0 0.0
  %1262 = vmatprep.subr.mxu0 0.0
  %1263 = vmatpush1.xpose.msra.mxu0 0.0
  %1264 = vmatprep.subr.mxu0 0.0
  %1265 = vmatpush1.xpose.msra.mxu0 0.0
  %1266 = vmatprep.subr.mxu0 0.0
  %1267 = vmatpush1.xpose.msra.mxu0 0.0
  %1268 = vmatprep.subr.mxu0 0.0
  %1269 = vmatpush1.xpose.msra.mxu0 0.0
  %1270 = vmatprep.subr.mxu0 0.0
  %1271 = vmatpush1.xpose.msra.mxu0 0.0
  %1272 = vmatprep.subr.mxu0 0.0
  %1273 = vmatpush1.xpose.msra.mxu0 0.0
  %1274 = vmatprep.subr.mxu0 0.0
  %1275 = vmatpush1.xpose.msra.mxu0 0.0
  %1276 = vmatprep.subr.mxu0 0.0
  %1277 = vmatpush1.xpose.msra.mxu0 0.0
  %1278 = vmatprep.subr.mxu0 0.0
  %1279 = vmatpush1.xpose.msra.mxu0 0.0
  %1280 = vmatprep.subr.mxu0 0.0
  %1281 = vmatpush1.xpose.msra.mxu0 0.0
  %1282 = vmatprep.subr.mxu0 0.0
  %1283 = vmatpush1.xpose.msra.mxu0 0.0
  %1284 = vmatprep.subr.mxu0 0.0
  %1285 = vmatpush1.xpose.msra.mxu0 0.0
  %1286 = vmatprep.subr.mxu0 0.0
  %1287 = vmatpush1.xpose.msra.mxu0 0.0
  %1288 = vmatprep.subr.mxu0 0.0
  %1289 = vmatpush1.xpose.msra.mxu0 0.0
  %1290 = vmatprep.subr.mxu0 0.0
  %1291 = vmatpush1.xpose.msra.mxu0 0.0
  %1292 = vmatprep.subr.mxu0 0.0
  %1293 = vmatpush1.xpose.msra.mxu0 0.0
  %1294 = vmatprep.subr.mxu0 0.0
  %1295 = vmatpush1.xpose.msra.mxu0 0.0
  %1296 = vmatprep.subr.mxu0 0.0
  %1297 = vmatpush1.xpose.msra.mxu0 0.0
  %1298 = vmatprep.subr.mxu0 0.0
  %1299 = vmatpush1.xpose.msra.mxu0 0.0
  %1300 = vmatprep.subr.mxu0 0.0
  %1301 = vmatpush1.xpose.msra.mxu0 0.0
  %1302 = vmatprep.subr.mxu0 0.0
  %1303 = vmatpush1.xpose.msra.mxu0 0.0
  %1304 = vmatprep.subr.mxu0 0.0
  %1305 = vmatpush1.xpose.msra.mxu0 0.0
  %1306 = vmatprep.subr.mxu0 0.0
  %1307 = vmatpush1.xpose.msra.mxu0 0.0
  %1308 = vmatprep.subr.mxu0 0.0
  %1309 = vmatpush1.xpose.msra.mxu0 0.0
  %1310 = vmatprep.subr.mxu0 0.0
  %1311 = vmatpush1.xpose.msra.mxu0 0.0
  %1312 = vmatprep.mubr.f32.mxu0 0.0
  %1313 = vmatmul.mubr.f32.gmra.mrb[0].mxu0 %v1243
  %v1314 = vpop.f32.mrb[0].mxu0
  %v1315 = vadd.f32 0.0, %v1314
  %v1316 = vpop.f32.mrb[0].mxu0
  %1317 = vdwg.mxu0
  %v1318 = vsel %vm1013, %v1087, -inf
  %1319 = vmax.xlane.f32.xlu0 %v1318
  %v1320 = vpop.xlane.xlu0 %1319
  %v1321 = vsel %vm1013, %v1163, -inf
  %1322 = vmax.xlane.f32.xlu0 %v1321
  %v1323 = vpop.xlane.xlu0 %1322
  %v1324 = vsel %vm1013, %v1239, -inf
  %1325 = vmax.xlane.f32.xlu0 %v1324
  %v1326 = vpop.xlane.xlu0 %1325
  %v1327 = vsel %vm1013, %v1315, -inf
  %1328 = vmax.xlane.f32.xlu0 %v1327
  %v1329 = vpop.xlane.xlu0 %1328
  %v1330 = vsub.f32 %v1087, %v1320
  %v1331 = vsub.f32 %v1163, %v1323
  %v1332 = vsub.f32 %v1239, %v1326
  %v1333 = vsub.f32 %v1315, %v1329
  %v1334 = vmul.f32 %v1330, 1.442695
  %v1335 = vpow.pop %v1334
  %v1336 = vmul.f32 %v1331, 1.442695
  %v1337 = vpow.pop %v1336
  %v1338 = vmul.f32 %v1332, 1.442695
  %v1339 = vpow.pop %v1338
  %v1340 = vmul.f32 %v1333, 1.442695
  %v1341 = vpow.pop %v1340
  %v1342 = vsel %vm1013, %v1335, 0.0
  %1343 = vadd.xlane.f32.xlu0 %v1342
  %v1344 = vpop.xlane.xlu0 %1343
  %v1345 = vsel %vm1013, %v1337, 0.0
  %1346 = vadd.xlane.f32.xlu0 %v1345
  %v1347 = vpop.xlane.xlu0 %1346
  %v1348 = vsel %vm1013, %v1339, 0.0
  %1349 = vadd.xlane.f32.xlu0 %v1348
  %v1350 = vpop.xlane.xlu0 %1349
  %v1351 = vsel %vm1013, %v1341, 0.0
  %1352 = vadd.xlane.f32.xlu0 %v1351
  %v1353 = vpop.xlane.xlu0 %1352
  %v1354 = vrcp.pop %v1344
  %v1355 = vmul.f32 %v1335, %v1354
  %v1356 = vrcp.pop %v1347
  %v1357 = vmul.f32 %v1337, %v1356
  %v1358 = vrcp.pop %v1350
  %v1359 = vmul.f32 %v1339, %v1358
  %v1360 = vrcp.pop %v1353
  %v1361 = vmul.f32 %v1341, %v1360
  %v1363 = vsel %vm1013, %v1355, 0
  %1365 = vmatprep.subr.mxu0 0.0
  %1366 = vmatpush1.msra.mxu0 %v766
  %1367 = vmatprep.subr.mxu0 0.0
  %1368 = vmatpush1.msra.mxu0 0.0
  %1369 = vmatprep.subr.mxu0 0.0
  %1370 = vmatpush1.msra.mxu0 0.0
  %1371 = vmatprep.subr.mxu0 0.0
  %1372 = vmatpush1.msra.mxu0 0.0
  %1373 = vmatprep.subr.mxu0 0.0
  %1374 = vmatpush1.msra.mxu0 0.0
  %1375 = vmatprep.subr.mxu0 0.0
  %1376 = vmatpush1.msra.mxu0 0.0
  %1377 = vmatprep.subr.mxu0 0.0
  %1378 = vmatpush1.msra.mxu0 0.0
  %1379 = vmatprep.subr.mxu0 0.0
  %1380 = vmatpush1.msra.mxu0 0.0
  %1381 = vmatprep.subr.mxu0 0.0
  %1382 = vmatpush1.msra.mxu0 0.0
  %1383 = vmatprep.subr.mxu0 0.0
  %1384 = vmatpush1.msra.mxu0 0.0
  %1385 = vmatprep.subr.mxu0 0.0
  %1386 = vmatpush1.msra.mxu0 0.0
  %1387 = vmatprep.subr.mxu0 0.0
  %1388 = vmatpush1.msra.mxu0 0.0
  %1389 = vmatprep.subr.mxu0 0.0
  %1390 = vmatpush1.msra.mxu0 0.0
  %1391 = vmatprep.subr.mxu0 0.0
  %1392 = vmatpush1.msra.mxu0 0.0
  %1393 = vmatprep.subr.mxu0 0.0
  %1394 = vmatpush1.msra.mxu0 0.0
  %1395 = vmatprep.subr.mxu0 0.0
  %1396 = vmatpush1.msra.mxu0 0.0
  %1397 = vmatprep.subr.mxu0 0.0
  %1398 = vmatpush1.msra.mxu0 0.0
  %1399 = vmatprep.subr.mxu0 0.0
  %1400 = vmatpush1.msra.mxu0 0.0
  %1401 = vmatprep.subr.mxu0 0.0
  %1402 = vmatpush1.msra.mxu0 0.0
  %1403 = vmatprep.subr.mxu0 0.0
  %1404 = vmatpush1.msra.mxu0 0.0
  %1405 = vmatprep.subr.mxu0 0.0
  %1406 = vmatpush1.msra.mxu0 0.0
  %1407 = vmatprep.subr.mxu0 0.0
  %1408 = vmatpush1.msra.mxu0 0.0
  %1409 = vmatprep.subr.mxu0 0.0
  %1410 = vmatpush1.msra.mxu0 0.0
  %1411 = vmatprep.subr.mxu0 0.0
  %1412 = vmatpush1.msra.mxu0 0.0
  %1413 = vmatprep.subr.mxu0 0.0
  %1414 = vmatpush1.msra.mxu0 0.0
  %1415 = vmatprep.subr.mxu0 0.0
  %1416 = vmatpush1.msra.mxu0 0.0
  %1417 = vmatprep.subr.mxu0 0.0
  %1418 = vmatpush1.msra.mxu0 0.0
  %1419 = vmatprep.subr.mxu0 0.0
  %1420 = vmatpush1.msra.mxu0 0.0
  %1421 = vmatprep.subr.mxu0 0.0
  %1422 = vmatpush1.msra.mxu0 0.0
  %1423 = vmatprep.subr.mxu0 0.0
  %1424 = vmatpush1.msra.mxu0 0.0
  %1425 = vmatprep.subr.mxu0 0.0
  %1426 = vmatpush1.msra.mxu0 0.0
  %1427 = vmatprep.subr.mxu0 0.0
  %1428 = vmatpush1.msra.mxu0 0.0
  %1429 = vmatprep.mubr.f32.mxu0 0.0
  %1430 = vmatmul.mubr.f32.gmra.mrb[0].mxu0 %v1363
  %v1431 = vpop.f32.mrb[0].mxu0
  %v1432 = vadd.f32 0.0, %v1431
  %v1433 = vpop.f32.mrb[0].mxu0
  %1434 = vdwg.mxu0
  %v1436 = vsel %vm1013, %v1357, 0
  %1438 = vmatprep.subr.mxu0 0.0
  %1439 = vmatpush1.msra.mxu0 %v844
  %1440 = vmatprep.subr.mxu0 0.0
  %1441 = vmatpush1.msra.mxu0 0.0
  %1442 = vmatprep.subr.mxu0 0.0
  %1443 = vmatpush1.msra.mxu0 0.0
  %1444 = vmatprep.subr.mxu0 0.0
  %1445 = vmatpush1.msra.mxu0 0.0
  %1446 = vmatprep.subr.mxu0 0.0
  %1447 = vmatpush1.msra.mxu0 0.0
  %1448 = vmatprep.subr.mxu0 0.0
  %1449 = vmatpush1.msra.mxu0 0.0
  %1450 = vmatprep.subr.mxu0 0.0
  %1451 = vmatpush1.msra.mxu0 0.0
  %1452 = vmatprep.subr.mxu0 0.0
  %1453 = vmatpush1.msra.mxu0 0.0
  %1454 = vmatprep.subr.mxu0 0.0
  %1455 = vmatpush1.msra.mxu0 0.0
  %1456 = vmatprep.subr.mxu0 0.0
  %1457 = vmatpush1.msra.mxu0 0.0
  %1458 = vmatprep.subr.mxu0 0.0
  %1459 = vmatpush1.msra.mxu0 0.0
  %1460 = vmatprep.subr.mxu0 0.0
  %1461 = vmatpush1.msra.mxu0 0.0
  %1462 = vmatprep.subr.mxu0 0.0
  %1463 = vmatpush1.msra.mxu0 0.0
  %1464 = vmatprep.subr.mxu0 0.0
  %1465 = vmatpush1.msra.mxu0 0.0
  %1466 = vmatprep.subr.mxu0 0.0
  %1467 = vmatpush1.msra.mxu0 0.0
  %1468 = vmatprep.subr.mxu0 0.0
  %1469 = vmatpush1.msra.mxu0 0.0
  %1470 = vmatprep.subr.mxu0 0.0
  %1471 = vmatpush1.msra.mxu0 0.0
  %1472 = vmatprep.subr.mxu0 0.0
  %1473 = vmatpush1.msra.mxu0 0.0
  %1474 = vmatprep.subr.mxu0 0.0
  %1475 = vmatpush1.msra.mxu0 0.0
  %1476 = vmatprep.subr.mxu0 0.0
  %1477 = vmatpush1.msra.mxu0 0.0
  %1478 = vmatprep.subr.mxu0 0.0
  %1479 = vmatpush1.msra.mxu0 0.0
  %1480 = vmatprep.subr.mxu0 0.0
  %1481 = vmatpush1.msra.mxu0 0.0
  %1482 = vmatprep.subr.mxu0 0.0
  %1483 = vmatpush1.msra.mxu0 0.0
  %1484 = vmatprep.subr.mxu0 0.0
  %1485 = vmatpush1.msra.mxu0 0.0
  %1486 = vmatprep.subr.mxu0 0.0
  %1487 = vmatpush1.msra.mxu0 0.0
  %1488 = vmatprep.subr.mxu0 0.0
  %1489 = vmatpush1.msra.mxu0 0.0
  %1490 = vmatprep.subr.mxu0 0.0
  %1491 = vmatpush1.msra.mxu0 0.0
  %1492 = vmatprep.subr.mxu0 0.0
  %1493 = vmatpush1.msra.mxu0 0.0
  %1494 = vmatprep.subr.mxu0 0.0
  %1495 = vmatpush1.msra.mxu0 0.0
  %1496 = vmatprep.subr.mxu0 0.0
  %1497 = vmatpush1.msra.mxu0 0.0
  %1498 = vmatprep.subr.mxu0 0.0
  %1499 = vmatpush1.msra.mxu0 0.0
  %1500 = vmatprep.subr.mxu0 0.0
  %1501 = vmatpush1.msra.mxu0 0.0
  %1502 = vmatprep.mubr.f32.mxu0 0.0
  %1503 = vmatmul.mubr.f32.gmra.mrb[0].mxu0 %v1436
  %v1504 = vpop.f32.mrb[0].mxu0
  %v1505 = vadd.f32 0.0, %v1504
  %v1506 = vpop.f32.mrb[0].mxu0
  %1507 = vdwg.mxu0
  %v1509 = vsel %vm1013, %v1359, 0
  %1511 = vmatprep.subr.mxu0 0.0
  %1512 = vmatpush1.msra.mxu0 %v922
  %1513 = vmatprep.subr.mxu0 0.0
  %1514 = vmatpush1.msra.mxu0 0.0
  %1515 = vmatprep.subr.mxu0 0.0
  %1516 = vmatpush1.msra.mxu0 0.0
  %1517 = vmatprep.subr.mxu0 0.0
  %1518 = vmatpush1.msra.mxu0 0.0
  %1519 = vmatprep.subr.mxu0 0.0
  %1520 = vmatpush1.msra.mxu0 0.0
  %1521 = vmatprep.subr.mxu0 0.0
  %1522 = vmatpush1.msra.mxu0 0.0
  %1523 = vmatprep.subr.mxu0 0.0
  %1524 = vmatpush1.msra.mxu0 0.0
  %1525 = vmatprep.subr.mxu0 0.0
  %1526 = vmatpush1.msra.mxu0 0.0
  %1527 = vmatprep.subr.mxu0 0.0
  %1528 = vmatpush1.msra.mxu0 0.0
  %1529 = vmatprep.subr.mxu0 0.0
  %1530 = vmatpush1.msra.mxu0 0.0
  %1531 = vmatprep.subr.mxu0 0.0
  %1532 = vmatpush1.msra.mxu0 0.0
  %1533 = vmatprep.subr.mxu0 0.0
  %1534 = vmatpush1.msra.mxu0 0.0
  %1535 = vmatprep.subr.mxu0 0.0
  %1536 = vmatpush1.msra.mxu0 0.0
  %1537 = vmatprep.subr.mxu0 0.0
  %1538 = vmatpush1.msra.mxu0 0.0
  %1539 = vmatprep.subr.mxu0 0.0
  %1540 = vmatpush1.msra.mxu0 0.0
  %1541 = vmatprep.subr.mxu0 0.0
  %1542 = vmatpush1.msra.mxu0 0.0
  %1543 = vmatprep.subr.mxu0 0.0
  %1544 = vmatpush1.msra.mxu0 0.0
  %1545 = vmatprep.subr.mxu0 0.0
  %1546 = vmatpush1.msra.mxu0 0.0
  %1547 = vmatprep.subr.mxu0 0.0
  %1548 = vmatpush1.msra.mxu0 0.0
  %1549 = vmatprep.subr.mxu0 0.0
  %1550 = vmatpush1.msra.mxu0 0.0
  %1551 = vmatprep.subr.mxu0 0.0
  %1552 = vmatpush1.msra.mxu0 0.0
  %1553 = vmatprep.subr.mxu0 0.0
  %1554 = vmatpush1.msra.mxu0 0.0
  %1555 = vmatprep.subr.mxu0 0.0
  %1556 = vmatpush1.msra.mxu0 0.0
  %1557 = vmatprep.subr.mxu0 0.0
  %1558 = vmatpush1.msra.mxu0 0.0
  %1559 = vmatprep.subr.mxu0 0.0
  %1560 = vmatpush1.msra.mxu0 0.0
  %1561 = vmatprep.subr.mxu0 0.0
  %1562 = vmatpush1.msra.mxu0 0.0
  %1563 = vmatprep.subr.mxu0 0.0
  %1564 = vmatpush1.msra.mxu0 0.0
  %1565 = vmatprep.subr.mxu0 0.0
  %1566 = vmatpush1.msra.mxu0 0.0
  %1567 = vmatprep.subr.mxu0 0.0
  %1568 = vmatpush1.msra.mxu0 0.0
  %1569 = vmatprep.subr.mxu0 0.0
  %1570 = vmatpush1.msra.mxu0 0.0
  %1571 = vmatprep.subr.mxu0 0.0
  %1572 = vmatpush1.msra.mxu0 0.0
  %1573 = vmatprep.subr.mxu0 0.0
  %1574 = vmatpush1.msra.mxu0 0.0
  %1575 = vmatprep.mubr.f32.mxu0 0.0
  %1576 = vmatmul.mubr.f32.gmra.mrb[0].mxu0 %v1509
  %v1577 = vpop.f32.mrb[0].mxu0
  %v1578 = vadd.f32 0.0, %v1577
  %v1579 = vpop.f32.mrb[0].mxu0
  %1580 = vdwg.mxu0
  %v1582 = vsel %vm1013, %v1361, 0
  %1584 = vmatprep.subr.mxu0 0.0
  %1585 = vmatpush1.msra.mxu0 %v1000
  %1586 = vmatprep.subr.mxu0 0.0
  %1587 = vmatpush1.msra.mxu0 0.0
  %1588 = vmatprep.subr.mxu0 0.0
  %1589 = vmatpush1.msra.mxu0 0.0
  %1590 = vmatprep.subr.mxu0 0.0
  %1591 = vmatpush1.msra.mxu0 0.0
  %1592 = vmatprep.subr.mxu0 0.0
  %1593 = vmatpush1.msra.mxu0 0.0
  %1594 = vmatprep.subr.mxu0 0.0
  %1595 = vmatpush1.msra.mxu0 0.0
  %1596 = vmatprep.subr.mxu0 0.0
  %1597 = vmatpush1.msra.mxu0 0.0
  %1598 = vmatprep.subr.mxu0 0.0
  %1599 = vmatpush1.msra.mxu0 0.0
  %1600 = vmatprep.subr.mxu0 0.0
  %1601 = vmatpush1.msra.mxu0 0.0
  %1602 = vmatprep.subr.mxu0 0.0
  %1603 = vmatpush1.msra.mxu0 0.0
  %1604 = vmatprep.subr.mxu0 0.0
  %1605 = vmatpush1.msra.mxu0 0.0
  %1606 = vmatprep.subr.mxu0 0.0
  %1607 = vmatpush1.msra.mxu0 0.0
  %1608 = vmatprep.subr.mxu0 0.0
  %1609 = vmatpush1.msra.mxu0 0.0
  %1610 = vmatprep.subr.mxu0 0.0
  %1611 = vmatpush1.msra.mxu0 0.0
  %1612 = vmatprep.subr.mxu0 0.0
  %1613 = vmatpush1.msra.mxu0 0.0
  %1614 = vmatprep.subr.mxu0 0.0
  %1615 = vmatpush1.msra.mxu0 0.0
  %1616 = vmatprep.subr.mxu0 0.0
  %1617 = vmatpush1.msra.mxu0 0.0
  %1618 = vmatprep.subr.mxu0 0.0
  %1619 = vmatpush1.msra.mxu0 0.0
  %1620 = vmatprep.subr.mxu0 0.0
  %1621 = vmatpush1.msra.mxu0 0.0
  %1622 = vmatprep.subr.mxu0 0.0
  %1623 = vmatpush1.msra.mxu0 0.0
  %1624 = vmatprep.subr.mxu0 0.0
  %1625 = vmatpush1.msra.mxu0 0.0
  %1626 = vmatprep.subr.mxu0 0.0
  %1627 = vmatpush1.msra.mxu0 0.0
  %1628 = vmatprep.subr.mxu0 0.0
  %1629 = vmatpush1.msra.mxu0 0.0
  %1630 = vmatprep.subr.mxu0 0.0
  %1631 = vmatpush1.msra.mxu0 0.0
  %1632 = vmatprep.subr.mxu0 0.0
  %1633 = vmatpush1.msra.mxu0 0.0
  %1634 = vmatprep.subr.mxu0 0.0
  %1635 = vmatpush1.msra.mxu0 0.0
  %1636 = vmatprep.subr.mxu0 0.0
  %1637 = vmatpush1.msra.mxu0 0.0
  %1638 = vmatprep.subr.mxu0 0.0
  %1639 = vmatpush1.msra.mxu0 0.0
  %1640 = vmatprep.subr.mxu0 0.0
  %1641 = vmatpush1.msra.mxu0 0.0
  %1642 = vmatprep.subr.mxu0 0.0
  %1643 = vmatpush1.msra.mxu0 0.0
  %1644 = vmatprep.subr.mxu0 0.0
  %1645 = vmatpush1.msra.mxu0 0.0
  %1646 = vmatprep.subr.mxu0 0.0
  %1647 = vmatpush1.msra.mxu0 0.0
  %1648 = vmatprep.mubr.f32.mxu0 0.0
  %1649 = vmatmul.mubr.f32.gmra.mrb[0].mxu0 %v1582
  %v1650 = vpop.f32.mrb[0].mxu0
  %v1651 = vadd.f32 0.0, %v1650
  %v1652 = vpop.f32.mrb[0].mxu0
  %1653 = vdwg.mxu0
  %v1655 = vsel %vm1013, %v1432, 0
  %1657 = vmatprep.subr.mxu0 0.0
  %1658 = vmatpush1.msra.mxu0 %v1009
  %1659 = vmatprep.subr.mxu0 0.0
  %1660 = vmatpush1.msra.mxu0 0.0
  %1661 = vmatprep.subr.mxu0 0.0
  %1662 = vmatpush1.msra.mxu0 0.0
  %1663 = vmatprep.subr.mxu0 0.0
  %1664 = vmatpush1.msra.mxu0 0.0
  %1665 = vmatprep.subr.mxu0 0.0
  %1666 = vmatpush1.msra.mxu0 0.0
  %1667 = vmatprep.subr.mxu0 0.0
  %1668 = vmatpush1.msra.mxu0 0.0
  %1669 = vmatprep.subr.mxu0 0.0
  %1670 = vmatpush1.msra.mxu0 0.0
  %1671 = vmatprep.subr.mxu0 0.0
  %1672 = vmatpush1.msra.mxu0 0.0
  %1673 = vmatprep.subr.mxu0 0.0
  %1674 = vmatpush1.msra.mxu0 0.0
  %1675 = vmatprep.subr.mxu0 0.0
  %1676 = vmatpush1.msra.mxu0 0.0
  %1677 = vmatprep.subr.mxu0 0.0
  %1678 = vmatpush1.msra.mxu0 0.0
  %1679 = vmatprep.subr.mxu0 0.0
  %1680 = vmatpush1.msra.mxu0 0.0
  %1681 = vmatprep.subr.mxu0 0.0
  %1682 = vmatpush1.msra.mxu0 0.0
  %1683 = vmatprep.subr.mxu0 0.0
  %1684 = vmatpush1.msra.mxu0 0.0
  %1685 = vmatprep.subr.mxu0 0.0
  %1686 = vmatpush1.msra.mxu0 0.0
  %1687 = vmatprep.subr.mxu0 0.0
  %1688 = vmatpush1.msra.mxu0 0.0
  %1689 = vmatprep.subr.mxu0 0.0
  %1690 = vmatpush1.msra.mxu0 0.0
  %1691 = vmatprep.subr.mxu0 0.0
  %1692 = vmatpush1.msra.mxu0 0.0
  %1693 = vmatprep.subr.mxu0 0.0
  %1694 = vmatpush1.msra.mxu0 0.0
  %1695 = vmatprep.subr.mxu0 0.0
  %1696 = vmatpush1.msra.mxu0 0.0
  %1697 = vmatprep.subr.mxu0 0.0
  %1698 = vmatpush1.msra.mxu0 0.0
  %1699 = vmatprep.subr.mxu0 0.0
  %1700 = vmatpush1.msra.mxu0 0.0
  %1701 = vmatprep.subr.mxu0 0.0
  %1702 = vmatpush1.msra.mxu0 0.0
  %1703 = vmatprep.subr.mxu0 0.0
  %1704 = vmatpush1.msra.mxu0 0.0
  %1705 = vmatprep.subr.mxu0 0.0
  %1706 = vmatpush1.msra.mxu0 0.0
  %1707 = vmatprep.subr.mxu0 0.0
  %1708 = vmatpush1.msra.mxu0 0.0
  %1709 = vmatprep.subr.mxu0 0.0
  %1710 = vmatpush1.msra.mxu0 0.0
  %1711 = vmatprep.subr.mxu0 0.0
  %1712 = vmatpush1.msra.mxu0 0.0
  %1713 = vmatprep.subr.mxu0 0.0
  %1714 = vmatpush1.msra.mxu0 0.0
  %1715 = vmatprep.subr.mxu0 0.0
  %1716 = vmatpush1.msra.mxu0 0.0
  %1717 = vmatprep.subr.mxu0 0.0
  %1718 = vmatpush1.msra.mxu0 0.0
  %1719 = vmatprep.subr.mxu0 0.0
  %1720 = vmatpush1.msra.mxu0 0.0
  %1721 = vmatprep.mubr.f32.mxu0 0.0
  %1722 = vmatmul.mubr.f32.gmra.mrb[0].mxu0 %v1655
  %v1723 = vpop.f32.mrb[0].mxu0
  %v1724 = vadd.f32 0.0, %v1723
  %v1725 = vpop.f32.mrb[0].mxu0
  %1726 = vdwg.mxu0
  %v1728 = vsel %vm1013, %v1505, 0
  %1730 = vmatprep.subr.mxu0 0.0
  %1731 = vmatpush1.msra.mxu0 %v1010
  %1732 = vmatprep.subr.mxu0 0.0
  %1733 = vmatpush1.msra.mxu0 0.0
  %1734 = vmatprep.subr.mxu0 0.0
  %1735 = vmatpush1.msra.mxu0 0.0
  %1736 = vmatprep.subr.mxu0 0.0
  %1737 = vmatpush1.msra.mxu0 0.0
  %1738 = vmatprep.subr.mxu0 0.0
  %1739 = vmatpush1.msra.mxu0 0.0
  %1740 = vmatprep.subr.mxu0 0.0
  %1741 = vmatpush1.msra.mxu0 0.0
  %1742 = vmatprep.subr.mxu0 0.0
  %1743 = vmatpush1.msra.mxu0 0.0
  %1744 = vmatprep.subr.mxu0 0.0
  %1745 = vmatpush1.msra.mxu0 0.0
  %1746 = vmatprep.subr.mxu0 0.0
  %1747 = vmatpush1.msra.mxu0 0.0
  %1748 = vmatprep.subr.mxu0 0.0
  %1749 = vmatpush1.msra.mxu0 0.0
  %1750 = vmatprep.subr.mxu0 0.0
  %1751 = vmatpush1.msra.mxu0 0.0
  %1752 = vmatprep.subr.mxu0 0.0
  %1753 = vmatpush1.msra.mxu0 0.0
  %1754 = vmatprep.subr.mxu0 0.0
  %1755 = vmatpush1.msra.mxu0 0.0
  %1756 = vmatprep.subr.mxu0 0.0
  %1757 = vmatpush1.msra.mxu0 0.0
  %1758 = vmatprep.subr.mxu0 0.0
  %1759 = vmatpush1.msra.mxu0 0.0
  %1760 = vmatprep.subr.mxu0 0.0
  %1761 = vmatpush1.msra.mxu0 0.0
  %1762 = vmatprep.subr.mxu0 0.0
  %1763 = vmatpush1.msra.mxu0 0.0
  %1764 = vmatprep.subr.mxu0 0.0
  %1765 = vmatpush1.msra.mxu0 0.0
  %1766 = vmatprep.subr.mxu0 0.0
  %1767 = vmatpush1.msra.mxu0 0.0
  %1768 = vmatprep.subr.mxu0 0.0
  %1769 = vmatpush1.msra.mxu0 0.0
  %1770 = vmatprep.subr.mxu0 0.0
  %1771 = vmatpush1.msra.mxu0 0.0
  %1772 = vmatprep.subr.mxu0 0.0
  %1773 = vmatpush1.msra.mxu0 0.0
  %1774 = vmatprep.subr.mxu0 0.0
  %1775 = vmatpush1.msra.mxu0 0.0
  %1776 = vmatprep.subr.mxu0 0.0
  %1777 = vmatpush1.msra.mxu0 0.0
  %1778 = vmatprep.subr.mxu0 0.0
  %1779 = vmatpush1.msra.mxu0 0.0
  %1780 = vmatprep.subr.mxu0 0.0
  %1781 = vmatpush1.msra.mxu0 0.0
  %1782 = vmatprep.subr.mxu0 0.0
  %1783 = vmatpush1.msra.mxu0 0.0
  %1784 = vmatprep.subr.mxu0 0.0
  %1785 = vmatpush1.msra.mxu0 0.0
  %1786 = vmatprep.subr.mxu0 0.0
  %1787 = vmatpush1.msra.mxu0 0.0
  %1788 = vmatprep.subr.mxu0 0.0
  %1789 = vmatpush1.msra.mxu0 0.0
  %1790 = vmatprep.subr.mxu0 0.0
  %1791 = vmatpush1.msra.mxu0 0.0
  %1792 = vmatprep.subr.mxu0 0.0
  %1793 = vmatpush1.msra.mxu0 0.0
  %1794 = vmatprep.mubr.f32.mxu0 0.0
  %1795 = vmatmul.mubr.f32.gmra.mrb[0].mxu0 %v1728
  %v1796 = vpop.f32.mrb[0].mxu0
  %v1797 = vadd.f32 0.0, %v1796
  %v1798 = vpop.f32.mrb[0].mxu0
  %1799 = vdwg.mxu0
  %v1801 = vsel %vm1013, %v1578, 0
  %1803 = vmatprep.subr.mxu0 0.0
  %1804 = vmatpush1.msra.mxu0 %v1011
  %1805 = vmatprep.subr.mxu0 0.0
  %1806 = vmatpush1.msra.mxu0 0.0
  %1807 = vmatprep.subr.mxu0 0.0
  %1808 = vmatpush1.msra.mxu0 0.0
  %1809 = vmatprep.subr.mxu0 0.0
  %1810 = vmatpush1.msra.mxu0 0.0
  %1811 = vmatprep.subr.mxu0 0.0
  %1812 = vmatpush1.msra.mxu0 0.0
  %1813 = vmatprep.subr.mxu0 0.0
  %1814 = vmatpush1.msra.mxu0 0.0
  %1815 = vmatprep.subr.mxu0 0.0
  %1816 = vmatpush1.msra.mxu0 0.0
  %1817 = vmatprep.subr.mxu0 0.0
  %1818 = vmatpush1.msra.mxu0 0.0
  %1819 = vmatprep.subr.mxu0 0.0
  %1820 = vmatpush1.msra.mxu0 0.0
  %1821 = vmatprep.subr.mxu0 0.0
  %1822 = vmatpush1.msra.mxu0 0.0
  %1823 = vmatprep.subr.mxu0 0.0
  %1824 = vmatpush1.msra.mxu0 0.0
  %1825 = vmatprep.subr.mxu0 0.0
  %1826 = vmatpush1.msra.mxu0 0.0
  %1827 = vmatprep.subr.mxu0 0.0
  %1828 = vmatpush1.msra.mxu0 0.0
  %1829 = vmatprep.subr.mxu0 0.0
  %1830 = vmatpush1.msra.mxu0 0.0
  %1831 = vmatprep.subr.mxu0 0.0
  %1832 = vmatpush1.msra.mxu0 0.0
  %1833 = vmatprep.subr.mxu0 0.0
  %1834 = vmatpush1.msra.mxu0 0.0
  %1835 = vmatprep.subr.mxu0 0.0
  %1836 = vmatpush1.msra.mxu0 0.0
  %1837 = vmatprep.subr.mxu0 0.0
  %1838 = vmatpush1.msra.mxu0 0.0
  %1839 = vmatprep.subr.mxu0 0.0
  %1840 = vmatpush1.msra.mxu0 0.0
  %1841 = vmatprep.subr.mxu0 0.0
  %1842 = vmatpush1.msra.mxu0 0.0
  %1843 = vmatprep.subr.mxu0 0.0
  %1844 = vmatpush1.msra.mxu0 0.0
  %1845 = vmatprep.subr.mxu0 0.0
  %1846 = vmatpush1.msra.mxu0 0.0
  %1847 = vmatprep.subr.mxu0 0.0
  %1848 = vmatpush1.msra.mxu0 0.0
  %1849 = vmatprep.subr.mxu0 0.0
  %1850 = vmatpush1.msra.mxu0 0.0
  %1851 = vmatprep.subr.mxu0 0.0
  %1852 = vmatpush1.msra.mxu0 0.0
  %1853 = vmatprep.subr.mxu0 0.0
  %1854 = vmatpush1.msra.mxu0 0.0
  %1855 = vmatprep.subr.mxu0 0.0
  %1856 = vmatpush1.msra.mxu0 0.0
  %1857 = vmatprep.subr.mxu0 0.0
  %1858 = vmatpush1.msra.mxu0 0.0
  %1859 = vmatprep.subr.mxu0 0.0
  %1860 = vmatpush1.msra.mxu0 0.0
  %1861 = vmatprep.subr.mxu0 0.0
  %1862 = vmatpush1.msra.mxu0 0.0
  %1863 = vmatprep.subr.mxu0 0.0
  %1864 = vmatpush1.msra.mxu0 0.0
  %1865 = vmatprep.subr.mxu0 0.0
  %1866 = vmatpush1.msra.mxu0 0.0
  %1867 = vmatprep.mubr.f32.mxu0 0.0
  %1868 = vmatmul.mubr.f32.gmra.mrb[0].mxu0 %v1801
  %v1869 = vpop.f32.mrb[0].mxu0
  %v1870 = vadd.f32 0.0, %v1869
  %v1871 = vpop.f32.mrb[0].mxu0
  %1872 = vdwg.mxu0
  %v1874 = vsel %vm1013, %v1651, 0
  %1876 = vmatprep.subr.mxu0 0.0
  %1877 = vmatpush1.msra.mxu0 %v1012
  %1878 = vmatprep.subr.mxu0 0.0
  %1879 = vmatpush1.msra.mxu0 0.0
  %1880 = vmatprep.subr.mxu0 0.0
  %1881 = vmatpush1.msra.mxu0 0.0
  %1882 = vmatprep.subr.mxu0 0.0
  %1883 = vmatpush1.msra.mxu0 0.0
  %1884 = vmatprep.subr.mxu0 0.0
  %1885 = vmatpush1.msra.mxu0 0.0
  %1886 = vmatprep.subr.mxu0 0.0
  %1887 = vmatpush1.msra.mxu0 0.0
  %1888 = vmatprep.subr.mxu0 0.0
  %1889 = vmatpush1.msra.mxu0 0.0
  %1890 = vmatprep.subr.mxu0 0.0
  %1891 = vmatpush1.msra.mxu0 0.0
  %1892 = vmatprep.subr.mxu0 0.0
  %1893 = vmatpush1.msra.mxu0 0.0
  %1894 = vmatprep.subr.mxu0 0.0
  %1895 = vmatpush1.msra.mxu0 0.0
  %1896 = vmatprep.subr.mxu0 0.0
  %1897 = vmatpush1.msra.mxu0 0.0
  %1898 = vmatprep.subr.mxu0 0.0
  %1899 = vmatpush1.msra.mxu0 0.0
  %1900 = vmatprep.subr.mxu0 0.0
  %1901 = vmatpush1.msra.mxu0 0.0
  %1902 = vmatprep.subr.mxu0 0.0
  %1903 = vmatpush1.msra.mxu0 0.0
  %1904 = vmatprep.subr.mxu0 0.0
  %1905 = vmatpush1.msra.mxu0 0.0
  %1906 = vmatprep.subr.mxu0 0.0
  %1907 = vmatpush1.msra.mxu0 0.0
  %1908 = vmatprep.subr.mxu0 0.0
  %1909 = vmatpush1.msra.mxu0 0.0
  %1910 = vmatprep.subr.mxu0 0.0
  %1911 = vmatpush1.msra.mxu0 0.0
  %1912 = vmatprep.subr.mxu0 0.0
  %1913 = vmatpush1.msra.mxu0 0.0
  %1914 = vmatprep.subr.mxu0 0.0
  %1915 = vmatpush1.msra.mxu0 0.0
  %1916 = vmatprep.subr.mxu0 0.0
  %1917 = vmatpush1.msra.mxu0 0.0
  %1918 = vmatprep.subr.mxu0 0.0
  %1919 = vmatpush1.msra.mxu0 0.0
  %1920 = vmatprep.subr.mxu0 0.0
  %1921 = vmatpush1.msra.mxu0 0.0
  %1922 = vmatprep.subr.mxu0 0.0
  %1923 = vmatpush1.msra.mxu0 0.0
  %1924 = vmatprep.subr.mxu0 0.0
  %1925 = vmatpush1.msra.mxu0 0.0
  %1926 = vmatprep.subr.mxu0 0.0
  %1927 = vmatpush1.msra.mxu0 0.0
  %1928 = vmatprep.subr.mxu0 0.0
  %1929 = vmatpush1.msra.mxu0 0.0
  %1930 = vmatprep.subr.mxu0 0.0
  %1931 = vmatpush1.msra.mxu0 0.0
  %1932 = vmatprep.subr.mxu0 0.0
  %1933 = vmatpush1.msra.mxu0 0.0
  %1934 = vmatprep.subr.mxu0 0.0
  %1935 = vmatpush1.msra.mxu0 0.0
  %1936 = vmatprep.subr.mxu0 0.0
  %1937 = vmatpush1.msra.mxu0 0.0
  %1938 = vmatprep.subr.mxu0 0.0
  %1939 = vmatpush1.msra.mxu0 0.0
  %1940 = vmatprep.mubr.f32.mxu0 0.0
  %1941 = vmatmul.mubr.f32.gmra.mrb[0].mxu0 %v1874
  %v1942 = vpop.f32.mrb[0].mxu0
  %v1943 = vadd.f32 0.0, %v1942
  %v1944 = vpop.f32.mrb[0].mxu0
  %1945 = vdwg.mxu0
  %v1946 = vsel %vm37, %v1724, 0.0
  %v1947 = vsel %vm37, %v1797, 0.0
  %v1948 = vadd.f32 %v1946, %v1947
  %v1949 = vsel %vm37, %v1870, 0.0
  %v1950 = vadd.f32 %v1948, %v1949
  %v1951 = vsel %vm37, %v1943, 0.0
  %v1952 = vadd.f32 %v1950, %v1951
  %1953 = vrot.lane.b32.xlu0 %v1357, 8
  %v1954 = vpop.permute.xlu0 %1953
  %1956 = vrot.lane.b32.xlu0 %v1359, 16
  %v1957 = vpop.permute.xlu0 %1956
  %1959 = vrot.lane.b32.xlu0 %v1361, 24
  %v1960 = vpop.permute.xlu0 %1959
  %v1962 = vsel %vm1013, %v1355, %v1954
  %vm1963 = vcmask 130048
  %v1964 = vsel %vm1963, %v1962, %v1957
  %vm1965 = vcmask 195584
  %v1966 = vsel %vm1965, %v1964, %v1960
  %v1968 = vsel %vm1013, %v119, 0
  %v1971 = vsel %vm1013, %v445, 0
  %1973 = vmatprep.subr.mxu0 0.0
  %1974 = vmatpush1.xpose.msra.mxu0 %v1971
  %1975 = vmatprep.subr.mxu0 0.0
  %1976 = vmatpush1.xpose.msra.mxu0 0.0
  %1977 = vmatprep.subr.mxu0 0.0
  %1978 = vmatpush1.xpose.msra.mxu0 0.0
  %1979 = vmatprep.subr.mxu0 0.0
  %1980 = vmatpush1.xpose.msra.mxu0 0.0
  %1981 = vmatprep.subr.mxu0 0.0
  %1982 = vmatpush1.xpose.msra.mxu0 0.0
  %1983 = vmatprep.subr.mxu0 0.0
  %1984 = vmatpush1.xpose.msra.mxu0 0.0
  %1985 = vmatprep.subr.mxu0 0.0
  %1986 = vmatpush1.xpose.msra.mxu0 0.0
  %1987 = vmatprep.subr.mxu0 0.0
  %1988 = vmatpush1.xpose.msra.mxu0 0.0
  %1989 = vmatprep.subr.mxu0 0.0
  %1990 = vmatpush1.xpose.msra.mxu0 0.0
  %1991 = vmatprep.subr.mxu0 0.0
  %1992 = vmatpush1.xpose.msra.mxu0 0.0
  %1993 = vmatprep.subr.mxu0 0.0
  %1994 = vmatpush1.xpose.msra.mxu0 0.0
  %1995 = vmatprep.subr.mxu0 0.0
  %1996 = vmatpush1.xpose.msra.mxu0 0.0
  %1997 = vmatprep.subr.mxu0 0.0
  %1998 = vmatpush1.xpose.msra.mxu0 0.0
  %1999 = vmatprep.subr.mxu0 0.0
  %2000 = vmatpush1.xpose.msra.mxu0 0.0
  %2001 = vmatprep.subr.mxu0 0.0
  %2002 = vmatpush1.xpose.msra.mxu0 0.0
  %2003 = vmatprep.subr.mxu0 0.0
  %2004 = vmatpush1.xpose.msra.mxu0 0.0
  %2005 = vmatprep.subr.mxu0 0.0
  %2006 = vmatpush1.xpose.msra.mxu0 0.0
  %2007 = vmatprep.subr.mxu0 0.0
  %2008 = vmatpush1.xpose.msra.mxu0 0.0
  %2009 = vmatprep.subr.mxu0 0.0
  %2010 = vmatpush1.xpose.msra.mxu0 0.0
  %2011 = vmatprep.subr.mxu0 0.0
  %2012 = vmatpush1.xpose.msra.mxu0 0.0
  %2013 = vmatprep.subr.mxu0 0.0
  %2014 = vmatpush1.xpose.msra.mxu0 0.0
  %2015 = vmatprep.subr.mxu0 0.0
  %2016 = vmatpush1.xpose.msra.mxu0 0.0
  %2017 = vmatprep.subr.mxu0 0.0
  %2018 = vmatpush1.xpose.msra.mxu0 0.0
  %2019 = vmatprep.subr.mxu0 0.0
  %2020 = vmatpush1.xpose.msra.mxu0 0.0
  %2021 = vmatprep.subr.mxu0 0.0
  %2022 = vmatpush1.xpose.msra.mxu0 0.0
  %2023 = vmatprep.subr.mxu0 0.0
  %2024 = vmatpush1.xpose.msra.mxu0 0.0
  %2025 = vmatprep.subr.mxu0 0.0
  %2026 = vmatpush1.xpose.msra.mxu0 0.0
  %2027 = vmatprep.subr.mxu0 0.0
  %2028 = vmatpush1.xpose.msra.mxu0 0.0
  %2029 = vmatprep.subr.mxu0 0.0
  %2030 = vmatpush1.xpose.msra.mxu0 0.0
  %2031 = vmatprep.subr.mxu0 0.0
  %2032 = vmatpush1.xpose.msra.mxu0 0.0
  %2033 = vmatprep.subr.mxu0 0.0
  %2034 = vmatpush1.xpose.msra.mxu0 0.0
  %2035 = vmatprep.subr.mxu0 0.0
  %2036 = vmatpush1.xpose.msra.mxu0 0.0
  %2037 = vmatprep.mubr.f32.mxu0 0.0
  %2038 = vmatmul.mubr.f32.gmra.mrb[0].mxu0 %v1968
  %v2039 = vpop.f32.mrb[0].mxu0
  %v2040 = vadd.f32 0.0, %v2039
  %v2041 = vpop.f32.mrb[0].mxu0
  %2042 = vdwg.mxu0
  %v2044 = vsel %vm1013, %v197, 0
  %v2047 = vsel %vm1013, %v523, 0
  %2049 = vmatprep.subr.mxu0 0.0
  %2050 = vmatpush1.xpose.msra.mxu0 %v2047
  %2051 = vmatprep.subr.mxu0 0.0
  %2052 = vmatpush1.xpose.msra.mxu0 0.0
  %2053 = vmatprep.subr.mxu0 0.0
  %2054 = vmatpush1.xpose.msra.mxu0 0.0
  %2055 = vmatprep.subr.mxu0 0.0
  %2056 = vmatpush1.xpose.msra.mxu0 0.0
  %2057 = vmatprep.subr.mxu0 0.0
  %2058 = vmatpush1.xpose.msra.mxu0 0.0
  %2059 = vmatprep.subr.mxu0 0.0
  %2060 = vmatpush1.xpose.msra.mxu0 0.0
  %2061 = vmatprep.subr.mxu0 0.0
  %2062 = vmatpush1.xpose.msra.mxu0 0.0
  %2063 = vmatprep.subr.mxu0 0.0
  %2064 = vmatpush1.xpose.msra.mxu0 0.0
  %2065 = vmatprep.subr.mxu0 0.0
  %2066 = vmatpush1.xpose.msra.mxu0 0.0
  %2067 = vmatprep.subr.mxu0 0.0
  %2068 = vmatpush1.xpose.msra.mxu0 0.0
  %2069 = vmatprep.subr.mxu0 0.0
  %2070 = vmatpush1.xpose.msra.mxu0 0.0
  %2071 = vmatprep.subr.mxu0 0.0
  %2072 = vmatpush1.xpose.msra.mxu0 0.0
  %2073 = vmatprep.subr.mxu0 0.0
  %2074 = vmatpush1.xpose.msra.mxu0 0.0
  %2075 = vmatprep.subr.mxu0 0.0
  %2076 = vmatpush1.xpose.msra.mxu0 0.0
  %2077 = vmatprep.subr.mxu0 0.0
  %2078 = vmatpush1.xpose.msra.mxu0 0.0
  %2079 = vmatprep.subr.mxu0 0.0
  %2080 = vmatpush1.xpose.msra.mxu0 0.0
  %2081 = vmatprep.subr.mxu0 0.0
  %2082 = vmatpush1.xpose.msra.mxu0 0.0
  %2083 = vmatprep.subr.mxu0 0.0
  %2084 = vmatpush1.xpose.msra.mxu0 0.0
  %2085 = vmatprep.subr.mxu0 0.0
  %2086 = vmatpush1.xpose.msra.mxu0 0.0
  %2087 = vmatprep.subr.mxu0 0.0
  %2088 = vmatpush1.xpose.msra.mxu0 0.0
  %2089 = vmatprep.subr.mxu0 0.0
  %2090 = vmatpush1.xpose.msra.mxu0 0.0
  %2091 = vmatprep.subr.mxu0 0.0
  %2092 = vmatpush1.xpose.msra.mxu0 0.0
  %2093 = vmatprep.subr.mxu0 0.0
  %2094 = vmatpush1.xpose.msra.mxu0 0.0
  %2095 = vmatprep.subr.mxu0 0.0
  %2096 = vmatpush1.xpose.msra.mxu0 0.0
  %2097 = vmatprep.subr.mxu0 0.0
  %2098 = vmatpush1.xpose.msra.mxu0 0.0
  %2099 = vmatprep.subr.mxu0 0.0
  %2100 = vmatpush1.xpose.msra.mxu0 0.0
  %2101 = vmatprep.subr.mxu0 0.0
  %2102 = vmatpush1.xpose.msra.mxu0 0.0
  %2103 = vmatprep.subr.mxu0 0.0
  %2104 = vmatpush1.xpose.msra.mxu0 0.0
  %2105 = vmatprep.subr.mxu0 0.0
  %2106 = vmatpush1.xpose.msra.mxu0 0.0
  %2107 = vmatprep.subr.mxu0 0.0
  %2108 = vmatpush1.xpose.msra.mxu0 0.0
  %2109 = vmatprep.subr.mxu0 0.0
  %2110 = vmatpush1.xpose.msra.mxu0 0.0
  %2111 = vmatprep.subr.mxu0 0.0
  %2112 = vmatpush1.xpose.msra.mxu0 0.0
  %2113 = vmatprep.mubr.f32.mxu0 0.0
  %2114 = vmatmul.mubr.f32.gmra.mrb[0].mxu0 %v2044
  %v2115 = vpop.f32.mrb[0].mxu0
  %v2116 = vadd.f32 0.0, %v2115
  %v2117 = vpop.f32.mrb[0].mxu0
  %2118 = vdwg.mxu0
  %v2120 = vsel %vm1013, %v275, 0
  %v2123 = vsel %vm1013, %v601, 0
  %2125 = vmatprep.subr.mxu0 0.0
  %2126 = vmatpush1.xpose.msra.mxu0 %v2123
  %2127 = vmatprep.subr.mxu0 0.0
  %2128 = vmatpush1.xpose.msra.mxu0 0.0
  %2129 = vmatprep.subr.mxu0 0.0
  %2130 = vmatpush1.xpose.msra.mxu0 0.0
  %2131 = vmatprep.subr.mxu0 0.0
  %2132 = vmatpush1.xpose.msra.mxu0 0.0
  %2133 = vmatprep.subr.mxu0 0.0
  %2134 = vmatpush1.xpose.msra.mxu0 0.0
  %2135 = vmatprep.subr.mxu0 0.0
  %2136 = vmatpush1.xpose.msra.mxu0 0.0
  %2137 = vmatprep.subr.mxu0 0.0
  %2138 = vmatpush1.xpose.msra.mxu0 0.0
  %2139 = vmatprep.subr.mxu0 0.0
  %2140 = vmatpush1.xpose.msra.mxu0 0.0
  %2141 = vmatprep.subr.mxu0 0.0
  %2142 = vmatpush1.xpose.msra.mxu0 0.0
  %2143 = vmatprep.subr.mxu0 0.0
  %2144 = vmatpush1.xpose.msra.mxu0 0.0
  %2145 = vmatprep.subr.mxu0 0.0
  %2146 = vmatpush1.xpose.msra.mxu0 0.0
  %2147 = vmatprep.subr.mxu0 0.0
  %2148 = vmatpush1.xpose.msra.mxu0 0.0
  %2149 = vmatprep.subr.mxu0 0.0
  %2150 = vmatpush1.xpose.msra.mxu0 0.0
  %2151 = vmatprep.subr.mxu0 0.0
  %2152 = vmatpush1.xpose.msra.mxu0 0.0
  %2153 = vmatprep.subr.mxu0 0.0
  %2154 = vmatpush1.xpose.msra.mxu0 0.0
  %2155 = vmatprep.subr.mxu0 0.0
  %2156 = vmatpush1.xpose.msra.mxu0 0.0
  %2157 = vmatprep.subr.mxu0 0.0
  %2158 = vmatpush1.xpose.msra.mxu0 0.0
  %2159 = vmatprep.subr.mxu0 0.0
  %2160 = vmatpush1.xpose.msra.mxu0 0.0
  %2161 = vmatprep.subr.mxu0 0.0
  %2162 = vmatpush1.xpose.msra.mxu0 0.0
  %2163 = vmatprep.subr.mxu0 0.0
  %2164 = vmatpush1.xpose.msra.mxu0 0.0
  %2165 = vmatprep.subr.mxu0 0.0
  %2166 = vmatpush1.xpose.msra.mxu0 0.0
  %2167 = vmatprep.subr.mxu0 0.0
  %2168 = vmatpush1.xpose.msra.mxu0 0.0
  %2169 = vmatprep.subr.mxu0 0.0
  %2170 = vmatpush1.xpose.msra.mxu0 0.0
  %2171 = vmatprep.subr.mxu0 0.0
  %2172 = vmatpush1.xpose.msra.mxu0 0.0
  %2173 = vmatprep.subr.mxu0 0.0
  %2174 = vmatpush1.xpose.msra.mxu0 0.0
  %2175 = vmatprep.subr.mxu0 0.0
  %2176 = vmatpush1.xpose.msra.mxu0 0.0
  %2177 = vmatprep.subr.mxu0 0.0
  %2178 = vmatpush1.xpose.msra.mxu0 0.0
  %2179 = vmatprep.subr.mxu0 0.0
  %2180 = vmatpush1.xpose.msra.mxu0 0.0
  %2181 = vmatprep.subr.mxu0 0.0
  %2182 = vmatpush1.xpose.msra.mxu0 0.0
  %2183 = vmatprep.subr.mxu0 0.0
  %2184 = vmatpush1.xpose.msra.mxu0 0.0
  %2185 = vmatprep.subr.mxu0 0.0
  %2186 = vmatpush1.xpose.msra.mxu0 0.0
  %2187 = vmatprep.subr.mxu0 0.0
  %2188 = vmatpush1.xpose.msra.mxu0 0.0
  %2189 = vmatprep.mubr.f32.mxu0 0.0
  %2190 = vmatmul.mubr.f32.gmra.mrb[0].mxu0 %v2120
  %v2191 = vpop.f32.mrb[0].mxu0
  %v2192 = vadd.f32 0.0, %v2191
  %v2193 = vpop.f32.mrb[0].mxu0
  %2194 = vdwg.mxu0
  %v2196 = vsel %vm1013, %v353, 0
  %v2199 = vsel %vm1013, %v679, 0
  %2201 = vmatprep.subr.mxu0 0.0
  %2202 = vmatpush1.xpose.msra.mxu0 %v2199
  %2203 = vmatprep.subr.mxu0 0.0
  %2204 = vmatpush1.xpose.msra.mxu0 0.0
  %2205 = vmatprep.subr.mxu0 0.0
  %2206 = vmatpush1.xpose.msra.mxu0 0.0
  %2207 = vmatprep.subr.mxu0 0.0
  %2208 = vmatpush1.xpose.msra.mxu0 0.0
  %2209 = vmatprep.subr.mxu0 0.0
  %2210 = vmatpush1.xpose.msra.mxu0 0.0
  %2211 = vmatprep.subr.mxu0 0.0
  %2212 = vmatpush1.xpose.msra.mxu0 0.0
  %2213 = vmatprep.subr.mxu0 0.0
  %2214 = vmatpush1.xpose.msra.mxu0 0.0
  %2215 = vmatprep.subr.mxu0 0.0
  %2216 = vmatpush1.xpose.msra.mxu0 0.0
  %2217 = vmatprep.subr.mxu0 0.0
  %2218 = vmatpush1.xpose.msra.mxu0 0.0
  %2219 = vmatprep.subr.mxu0 0.0
  %2220 = vmatpush1.xpose.msra.mxu0 0.0
  %2221 = vmatprep.subr.mxu0 0.0
  %2222 = vmatpush1.xpose.msra.mxu0 0.0
  %2223 = vmatprep.subr.mxu0 0.0
  %2224 = vmatpush1.xpose.msra.mxu0 0.0
  %2225 = vmatprep.subr.mxu0 0.0
  %2226 = vmatpush1.xpose.msra.mxu0 0.0
  %2227 = vmatprep.subr.mxu0 0.0
  %2228 = vmatpush1.xpose.msra.mxu0 0.0
  %2229 = vmatprep.subr.mxu0 0.0
  %2230 = vmatpush1.xpose.msra.mxu0 0.0
  %2231 = vmatprep.subr.mxu0 0.0
  %2232 = vmatpush1.xpose.msra.mxu0 0.0
  %2233 = vmatprep.subr.mxu0 0.0
  %2234 = vmatpush1.xpose.msra.mxu0 0.0
  %2235 = vmatprep.subr.mxu0 0.0
  %2236 = vmatpush1.xpose.msra.mxu0 0.0
  %2237 = vmatprep.subr.mxu0 0.0
  %2238 = vmatpush1.xpose.msra.mxu0 0.0
  %2239 = vmatprep.subr.mxu0 0.0
  %2240 = vmatpush1.xpose.msra.mxu0 0.0
  %2241 = vmatprep.subr.mxu0 0.0
  %2242 = vmatpush1.xpose.msra.mxu0 0.0
  %2243 = vmatprep.subr.mxu0 0.0
  %2244 = vmatpush1.xpose.msra.mxu0 0.0
  %2245 = vmatprep.subr.mxu0 0.0
  %2246 = vmatpush1.xpose.msra.mxu0 0.0
  %2247 = vmatprep.subr.mxu0 0.0
  %2248 = vmatpush1.xpose.msra.mxu0 0.0
  %2249 = vmatprep.subr.mxu0 0.0
  %2250 = vmatpush1.xpose.msra.mxu0 0.0
  %2251 = vmatprep.subr.mxu0 0.0
  %2252 = vmatpush1.xpose.msra.mxu0 0.0
  %2253 = vmatprep.subr.mxu0 0.0
  %2254 = vmatpush1.xpose.msra.mxu0 0.0
  %2255 = vmatprep.subr.mxu0 0.0
  %2256 = vmatpush1.xpose.msra.mxu0 0.0
  %2257 = vmatprep.subr.mxu0 0.0
  %2258 = vmatpush1.xpose.msra.mxu0 0.0
  %2259 = vmatprep.subr.mxu0 0.0
  %2260 = vmatpush1.xpose.msra.mxu0 0.0
  %2261 = vmatprep.subr.mxu0 0.0
  %2262 = vmatpush1.xpose.msra.mxu0 0.0
  %2263 = vmatprep.subr.mxu0 0.0
  %2264 = vmatpush1.xpose.msra.mxu0 0.0
  %2265 = vmatprep.mubr.f32.mxu0 0.0
  %2266 = vmatmul.mubr.f32.gmra.mrb[0].mxu0 %v2196
  %v2267 = vpop.f32.mrb[0].mxu0
  %v2268 = vadd.f32 0.0, %v2267
  %v2269 = vpop.f32.mrb[0].mxu0
  %2270 = vdwg.mxu0
  %v2271 = vsel %vm1013, %v2040, -inf
  %2272 = vmax.xlane.f32.xlu0 %v2271
  %v2273 = vpop.xlane.xlu0 %2272
  %v2274 = vsel %vm1013, %v2116, -inf
  %2275 = vmax.xlane.f32.xlu0 %v2274
  %v2276 = vpop.xlane.xlu0 %2275
  %v2277 = vsel %vm1013, %v2192, -inf
  %2278 = vmax.xlane.f32.xlu0 %v2277
  %v2279 = vpop.xlane.xlu0 %2278
  %v2280 = vsel %vm1013, %v2268, -inf
  %2281 = vmax.xlane.f32.xlu0 %v2280
  %v2282 = vpop.xlane.xlu0 %2281
  %v2283 = vsub.f32 %v2040, %v2273
  %v2284 = vsub.f32 %v2116, %v2276
  %v2285 = vsub.f32 %v2192, %v2279
  %v2286 = vsub.f32 %v2268, %v2282
  %v2287 = vmul.f32 %v2283, 1.442695
  %v2288 = vpow.pop %v2287
  %v2289 = vmul.f32 %v2284, 1.442695
  %v2290 = vpow.pop %v2289
  %v2291 = vmul.f32 %v2285, 1.442695
  %v2292 = vpow.pop %v2291
  %v2293 = vmul.f32 %v2286, 1.442695
  %v2294 = vpow.pop %v2293
  %v2295 = vsel %vm1013, %v2288, 0.0
  %2296 = vadd.xlane.f32.xlu0 %v2295
  %v2297 = vpop.xlane.xlu0 %2296
  %v2298 = vsel %vm1013, %v2290, 0.0
  %2299 = vadd.xlane.f32.xlu0 %v2298
  %v2300 = vpop.xlane.xlu0 %2299
  %v2301 = vsel %vm1013, %v2292, 0.0
  %2302 = vadd.xlane.f32.xlu0 %v2301
  %v2303 = vpop.xlane.xlu0 %2302
  %v2304 = vsel %vm1013, %v2294, 0.0
  %2305 = vadd.xlane.f32.xlu0 %v2304
  %v2306 = vpop.xlane.xlu0 %2305
  %v2307 = vrcp.pop %v2297
  %v2308 = vmul.f32 %v2288, %v2307
  %v2309 = vrcp.pop %v2300
  %v2310 = vmul.f32 %v2290, %v2309
  %v2311 = vrcp.pop %v2303
  %v2312 = vmul.f32 %v2292, %v2311
  %v2313 = vrcp.pop %v2306
  %v2314 = vmul.f32 %v2294, %v2313
  %v2316 = vsel %vm1013, %v2308, 0
  %2318 = vmatprep.subr.mxu0 0.0
  %2319 = vmatpush1.msra.mxu0 %v771
  %2320 = vmatprep.subr.mxu0 0.0
  %2321 = vmatpush1.msra.mxu0 0.0
  %2322 = vmatprep.subr.mxu0 0.0
  %2323 = vmatpush1.msra.mxu0 0.0
  %2324 = vmatprep.subr.mxu0 0.0
  %2325 = vmatpush1.msra.mxu0 0.0
  %2326 = vmatprep.subr.mxu0 0.0
  %2327 = vmatpush1.msra.mxu0 0.0
  %2328 = vmatprep.subr.mxu0 0.0
  %2329 = vmatpush1.msra.mxu0 0.0
  %2330 = vmatprep.subr.mxu0 0.0
  %2331 = vmatpush1.msra.mxu0 0.0
  %2332 = vmatprep.subr.mxu0 0.0
  %2333 = vmatpush1.msra.mxu0 0.0
  %2334 = vmatprep.subr.mxu0 0.0
  %2335 = vmatpush1.msra.mxu0 0.0
  %2336 = vmatprep.subr.mxu0 0.0
  %2337 = vmatpush1.msra.mxu0 0.0
  %2338 = vmatprep.subr.mxu0 0.0
  %2339 = vmatpush1.msra.mxu0 0.0
  %2340 = vmatprep.subr.mxu0 0.0
  %2341 = vmatpush1.msra.mxu0 0.0
  %2342 = vmatprep.subr.mxu0 0.0
  %2343 = vmatpush1.msra.mxu0 0.0
  %2344 = vmatprep.subr.mxu0 0.0
  %2345 = vmatpush1.msra.mxu0 0.0
  %2346 = vmatprep.subr.mxu0 0.0
  %2347 = vmatpush1.msra.mxu0 0.0
  %2348 = vmatprep.subr.mxu0 0.0
  %2349 = vmatpush1.msra.mxu0 0.0
  %2350 = vmatprep.subr.mxu0 0.0
  %2351 = vmatpush1.msra.mxu0 0.0
  %2352 = vmatprep.subr.mxu0 0.0
  %2353 = vmatpush1.msra.mxu0 0.0
  %2354 = vmatprep.subr.mxu0 0.0
  %2355 = vmatpush1.msra.mxu0 0.0
  %2356 = vmatprep.subr.mxu0 0.0
  %2357 = vmatpush1.msra.mxu0 0.0
  %2358 = vmatprep.subr.mxu0 0.0
  %2359 = vmatpush1.msra.mxu0 0.0
  %2360 = vmatprep.subr.mxu0 0.0
  %2361 = vmatpush1.msra.mxu0 0.0
  %2362 = vmatprep.subr.mxu0 0.0
  %2363 = vmatpush1.msra.mxu0 0.0
  %2364 = vmatprep.subr.mxu0 0.0
  %2365 = vmatpush1.msra.mxu0 0.0
  %2366 = vmatprep.subr.mxu0 0.0
  %2367 = vmatpush1.msra.mxu0 0.0
  %2368 = vmatprep.subr.mxu0 0.0
  %2369 = vmatpush1.msra.mxu0 0.0
  %2370 = vmatprep.subr.mxu0 0.0
  %2371 = vmatpush1.msra.mxu0 0.0
  %2372 = vmatprep.subr.mxu0 0.0
  %2373 = vmatpush1.msra.mxu0 0.0
  %2374 = vmatprep.subr.mxu0 0.0
  %2375 = vmatpush1.msra.mxu0 0.0
  %2376 = vmatprep.subr.mxu0 0.0
  %2377 = vmatpush1.msra.mxu0 0.0
  %2378 = vmatprep.subr.mxu0 0.0
  %2379 = vmatpush1.msra.mxu0 0.0
  %2380 = vmatprep.subr.mxu0 0.0
  %2381 = vmatpush1.msra.mxu0 0.0
  %2382 = vmatprep.mubr.f32.mxu0 0.0
  %2383 = vmatmul.mubr.f32.gmra.mrb[0].mxu0 %v2316
  %v2384 = vpop.f32.mrb[0].mxu0
  %v2385 = vadd.f32 0.0, %v2384
  %v2386 = vpop.f32.mrb[0].mxu0
  %2387 = vdwg.mxu0
  %v2389 = vsel %vm1013, %v2310, 0
  %2391 = vmatprep.subr.mxu0 0.0
  %2392 = vmatpush1.msra.mxu0 %v849
  %2393 = vmatprep.subr.mxu0 0.0
  %2394 = vmatpush1.msra.mxu0 0.0
  %2395 = vmatprep.subr.mxu0 0.0
  %2396 = vmatpush1.msra.mxu0 0.0
  %2397 = vmatprep.subr.mxu0 0.0
  %2398 = vmatpush1.msra.mxu0 0.0
  %2399 = vmatprep.subr.mxu0 0.0
  %2400 = vmatpush1.msra.mxu0 0.0
  %2401 = vmatprep.subr.mxu0 0.0
  %2402 = vmatpush1.msra.mxu0 0.0
  %2403 = vmatprep.subr.mxu0 0.0
  %2404 = vmatpush1.msra.mxu0 0.0
  %2405 = vmatprep.subr.mxu0 0.0
  %2406 = vmatpush1.msra.mxu0 0.0
  %2407 = vmatprep.subr.mxu0 0.0
  %2408 = vmatpush1.msra.mxu0 0.0
  %2409 = vmatprep.subr.mxu0 0.0
  %2410 = vmatpush1.msra.mxu0 0.0
  %2411 = vmatprep.subr.mxu0 0.0
  %2412 = vmatpush1.msra.mxu0 0.0
  %2413 = vmatprep.subr.mxu0 0.0
  %2414 = vmatpush1.msra.mxu0 0.0
  %2415 = vmatprep.subr.mxu0 0.0
  %2416 = vmatpush1.msra.mxu0 0.0
  %2417 = vmatprep.subr.mxu0 0.0
  %2418 = vmatpush1.msra.mxu0 0.0
  %2419 = vmatprep.subr.mxu0 0.0
  %2420 = vmatpush1.msra.mxu0 0.0
  %2421 = vmatprep.subr.mxu0 0.0
  %2422 = vmatpush1.msra.mxu0 0.0
  %2423 = vmatprep.subr.mxu0 0.0
  %2424 = vmatpush1.msra.mxu0 0.0
  %2425 = vmatprep.subr.mxu0 0.0
  %2426 = vmatpush1.msra.mxu0 0.0
  %2427 = vmatprep.subr.mxu0 0.0
  %2428 = vmatpush1.msra.mxu0 0.0
  %2429 = vmatprep.subr.mxu0 0.0
  %2430 = vmatpush1.msra.mxu0 0.0
  %2431 = vmatprep.subr.mxu0 0.0
  %2432 = vmatpush1.msra.mxu0 0.0
  %2433 = vmatprep.subr.mxu0 0.0
  %2434 = vmatpush1.msra.mxu0 0.0
  %2435 = vmatprep.subr.mxu0 0.0
  %2436 = vmatpush1.msra.mxu0 0.0
  %2437 = vmatprep.subr.mxu0 0.0
  %2438 = vmatpush1.msra.mxu0 0.0
  %2439 = vmatprep.subr.mxu0 0.0
  %2440 = vmatpush1.msra.mxu0 0.0
  %2441 = vmatprep.subr.mxu0 0.0
  %2442 = vmatpush1.msra.mxu0 0.0
  %2443 = vmatprep.subr.mxu0 0.0
  %2444 = vmatpush1.msra.mxu0 0.0
  %2445 = vmatprep.subr.mxu0 0.0
  %2446 = vmatpush1.msra.mxu0 0.0
  %2447 = vmatprep.subr.mxu0 0.0
  %2448 = vmatpush1.msra.mxu0 0.0
  %2449 = vmatprep.subr.mxu0 0.0
  %2450 = vmatpush1.msra.mxu0 0.0
  %2451 = vmatprep.subr.mxu0 0.0
  %2452 = vmatpush1.msra.mxu0 0.0
  %2453 = vmatprep.subr.mxu0 0.0
  %2454 = vmatpush1.msra.mxu0 0.0
  %2455 = vmatprep.mubr.f32.mxu0 0.0
  %2456 = vmatmul.mubr.f32.gmra.mrb[0].mxu0 %v2389
  %v2457 = vpop.f32.mrb[0].mxu0
  %v2458 = vadd.f32 0.0, %v2457
  %v2459 = vpop.f32.mrb[0].mxu0
  %2460 = vdwg.mxu0
  %v2462 = vsel %vm1013, %v2312, 0
  %2464 = vmatprep.subr.mxu0 0.0
  %2465 = vmatpush1.msra.mxu0 %v927
  %2466 = vmatprep.subr.mxu0 0.0
  %2467 = vmatpush1.msra.mxu0 0.0
  %2468 = vmatprep.subr.mxu0 0.0
  %2469 = vmatpush1.msra.mxu0 0.0
  %2470 = vmatprep.subr.mxu0 0.0
  %2471 = vmatpush1.msra.mxu0 0.0
  %2472 = vmatprep.subr.mxu0 0.0
  %2473 = vmatpush1.msra.mxu0 0.0
  %2474 = vmatprep.subr.mxu0 0.0
  %2475 = vmatpush1.msra.mxu0 0.0
  %2476 = vmatprep.subr.mxu0 0.0
  %2477 = vmatpush1.msra.mxu0 0.0
  %2478 = vmatprep.subr.mxu0 0.0
  %2479 = vmatpush1.msra.mxu0 0.0
  %2480 = vmatprep.subr.mxu0 0.0
  %2481 = vmatpush1.msra.mxu0 0.0
  %2482 = vmatprep.subr.mxu0 0.0
  %2483 = vmatpush1.msra.mxu0 0.0
  %2484 = vmatprep.subr.mxu0 0.0
  %2485 = vmatpush1.msra.mxu0 0.0
  %2486 = vmatprep.subr.mxu0 0.0
  %2487 = vmatpush1.msra.mxu0 0.0
  %2488 = vmatprep.subr.mxu0 0.0
  %2489 = vmatpush1.msra.mxu0 0.0
  %2490 = vmatprep.subr.mxu0 0.0
  %2491 = vmatpush1.msra.mxu0 0.0
  %2492 = vmatprep.subr.mxu0 0.0
  %2493 = vmatpush1.msra.mxu0 0.0
  %2494 = vmatprep.subr.mxu0 0.0
  %2495 = vmatpush1.msra.mxu0 0.0
  %2496 = vmatprep.subr.mxu0 0.0
  %2497 = vmatpush1.msra.mxu0 0.0
  %2498 = vmatprep.subr.mxu0 0.0
  %2499 = vmatpush1.msra.mxu0 0.0
  %2500 = vmatprep.subr.mxu0 0.0
  %2501 = vmatpush1.msra.mxu0 0.0
  %2502 = vmatprep.subr.mxu0 0.0
  %2503 = vmatpush1.msra.mxu0 0.0
  %2504 = vmatprep.subr.mxu0 0.0
  %2505 = vmatpush1.msra.mxu0 0.0
  %2506 = vmatprep.subr.mxu0 0.0
  %2507 = vmatpush1.msra.mxu0 0.0
  %2508 = vmatprep.subr.mxu0 0.0
  %2509 = vmatpush1.msra.mxu0 0.0
  %2510 = vmatprep.subr.mxu0 0.0
  %2511 = vmatpush1.msra.mxu0 0.0
  %2512 = vmatprep.subr.mxu0 0.0
  %2513 = vmatpush1.msra.mxu0 0.0
  %2514 = vmatprep.subr.mxu0 0.0
  %2515 = vmatpush1.msra.mxu0 0.0
  %2516 = vmatprep.subr.mxu0 0.0
  %2517 = vmatpush1.msra.mxu0 0.0
  %2518 = vmatprep.subr.mxu0 0.0
  %2519 = vmatpush1.msra.mxu0 0.0
  %2520 = vmatprep.subr.mxu0 0.0
  %2521 = vmatpush1.msra.mxu0 0.0
  %2522 = vmatprep.subr.mxu0 0.0
  %2523 = vmatpush1.msra.mxu0 0.0
  %2524 = vmatprep.subr.mxu0 0.0
  %2525 = vmatpush1.msra.mxu0 0.0
  %2526 = vmatprep.subr.mxu0 0.0
  %2527 = vmatpush1.msra.mxu0 0.0
  %2528 = vmatprep.mubr.f32.mxu0 0.0
  %2529 = vmatmul.mubr.f32.gmra.mrb[0].mxu0 %v2462
  %v2530 = vpop.f32.mrb[0].mxu0
  %v2531 = vadd.f32 0.0, %v2530
  %v2532 = vpop.f32.mrb[0].mxu0
  %2533 = vdwg.mxu0
  %v2535 = vsel %vm1013, %v2314, 0
  %2537 = vmatprep.subr.mxu0 0.0
  %2538 = vmatpush1.msra.mxu0 %v1005
  %2539 = vmatprep.subr.mxu0 0.0
  %2540 = vmatpush1.msra.mxu0 0.0
  %2541 = vmatprep.subr.mxu0 0.0
  %2542 = vmatpush1.msra.mxu0 0.0
  %2543 = vmatprep.subr.mxu0 0.0
  %2544 = vmatpush1.msra.mxu0 0.0
  %2545 = vmatprep.subr.mxu0 0.0
  %2546 = vmatpush1.msra.mxu0 0.0
  %2547 = vmatprep.subr.mxu0 0.0
  %2548 = vmatpush1.msra.mxu0 0.0
  %2549 = vmatprep.subr.mxu0 0.0
  %2550 = vmatpush1.msra.mxu0 0.0
  %2551 = vmatprep.subr.mxu0 0.0
  %2552 = vmatpush1.msra.mxu0 0.0
  %2553 = vmatprep.subr.mxu0 0.0
  %2554 = vmatpush1.msra.mxu0 0.0
  %2555 = vmatprep.subr.mxu0 0.0
  %2556 = vmatpush1.msra.mxu0 0.0
  %2557 = vmatprep.subr.mxu0 0.0
  %2558 = vmatpush1.msra.mxu0 0.0
  %2559 = vmatprep.subr.mxu0 0.0
  %2560 = vmatpush1.msra.mxu0 0.0
  %2561 = vmatprep.subr.mxu0 0.0
  %2562 = vmatpush1.msra.mxu0 0.0
  %2563 = vmatprep.subr.mxu0 0.0
  %2564 = vmatpush1.msra.mxu0 0.0
  %2565 = vmatprep.subr.mxu0 0.0
  %2566 = vmatpush1.msra.mxu0 0.0
  %2567 = vmatprep.subr.mxu0 0.0
  %2568 = vmatpush1.msra.mxu0 0.0
  %2569 = vmatprep.subr.mxu0 0.0
  %2570 = vmatpush1.msra.mxu0 0.0
  %2571 = vmatprep.subr.mxu0 0.0
  %2572 = vmatpush1.msra.mxu0 0.0
  %2573 = vmatprep.subr.mxu0 0.0
  %2574 = vmatpush1.msra.mxu0 0.0
  %2575 = vmatprep.subr.mxu0 0.0
  %2576 = vmatpush1.msra.mxu0 0.0
  %2577 = vmatprep.subr.mxu0 0.0
  %2578 = vmatpush1.msra.mxu0 0.0
  %2579 = vmatprep.subr.mxu0 0.0
  %2580 = vmatpush1.msra.mxu0 0.0
  %2581 = vmatprep.subr.mxu0 0.0
  %2582 = vmatpush1.msra.mxu0 0.0
  %2583 = vmatprep.subr.mxu0 0.0
  %2584 = vmatpush1.msra.mxu0 0.0
  %2585 = vmatprep.subr.mxu0 0.0
  %2586 = vmatpush1.msra.mxu0 0.0
  %2587 = vmatprep.subr.mxu0 0.0
  %2588 = vmatpush1.msra.mxu0 0.0
  %2589 = vmatprep.subr.mxu0 0.0
  %2590 = vmatpush1.msra.mxu0 0.0
  %2591 = vmatprep.subr.mxu0 0.0
  %2592 = vmatpush1.msra.mxu0 0.0
  %2593 = vmatprep.subr.mxu0 0.0
  %2594 = vmatpush1.msra.mxu0 0.0
  %2595 = vmatprep.subr.mxu0 0.0
  %2596 = vmatpush1.msra.mxu0 0.0
  %2597 = vmatprep.subr.mxu0 0.0
  %2598 = vmatpush1.msra.mxu0 0.0
  %2599 = vmatprep.subr.mxu0 0.0
  %2600 = vmatpush1.msra.mxu0 0.0
  %2601 = vmatprep.mubr.f32.mxu0 0.0
  %2602 = vmatmul.mubr.f32.gmra.mrb[0].mxu0 %v2535
  %v2603 = vpop.f32.mrb[0].mxu0
  %v2604 = vadd.f32 0.0, %v2603
  %v2605 = vpop.f32.mrb[0].mxu0
  %2606 = vdwg.mxu0
  %v2608 = vsel %vm1013, %v2385, 0
  %2610 = vmatprep.subr.mxu0 0.0
  %2611 = vmatpush1.msra.mxu0 %v1009
  %2612 = vmatprep.subr.mxu0 0.0
  %2613 = vmatpush1.msra.mxu0 0.0
  %2614 = vmatprep.subr.mxu0 0.0
  %2615 = vmatpush1.msra.mxu0 0.0
  %2616 = vmatprep.subr.mxu0 0.0
  %2617 = vmatpush1.msra.mxu0 0.0
  %2618 = vmatprep.subr.mxu0 0.0
  %2619 = vmatpush1.msra.mxu0 0.0
  %2620 = vmatprep.subr.mxu0 0.0
  %2621 = vmatpush1.msra.mxu0 0.0
  %2622 = vmatprep.subr.mxu0 0.0
  %2623 = vmatpush1.msra.mxu0 0.0
  %2624 = vmatprep.subr.mxu0 0.0
  %2625 = vmatpush1.msra.mxu0 0.0
  %2626 = vmatprep.subr.mxu0 0.0
  %2627 = vmatpush1.msra.mxu0 0.0
  %2628 = vmatprep.subr.mxu0 0.0
  %2629 = vmatpush1.msra.mxu0 0.0
  %2630 = vmatprep.subr.mxu0 0.0
  %2631 = vmatpush1.msra.mxu0 0.0
  %2632 = vmatprep.subr.mxu0 0.0
  %2633 = vmatpush1.msra.mxu0 0.0
  %2634 = vmatprep.subr.mxu0 0.0
  %2635 = vmatpush1.msra.mxu0 0.0
  %2636 = vmatprep.subr.mxu0 0.0
  %2637 = vmatpush1.msra.mxu0 0.0
  %2638 = vmatprep.subr.mxu0 0.0
  %2639 = vmatpush1.msra.mxu0 0.0
  %2640 = vmatprep.subr.mxu0 0.0
  %2641 = vmatpush1.msra.mxu0 0.0
  %2642 = vmatprep.subr.mxu0 0.0
  %2643 = vmatpush1.msra.mxu0 0.0
  %2644 = vmatprep.subr.mxu0 0.0
  %2645 = vmatpush1.msra.mxu0 0.0
  %2646 = vmatprep.subr.mxu0 0.0
  %2647 = vmatpush1.msra.mxu0 0.0
  %2648 = vmatprep.subr.mxu0 0.0
  %2649 = vmatpush1.msra.mxu0 0.0
  %2650 = vmatprep.subr.mxu0 0.0
  %2651 = vmatpush1.msra.mxu0 0.0
  %2652 = vmatprep.subr.mxu0 0.0
  %2653 = vmatpush1.msra.mxu0 0.0
  %2654 = vmatprep.subr.mxu0 0.0
  %2655 = vmatpush1.msra.mxu0 0.0
  %2656 = vmatprep.subr.mxu0 0.0
  %2657 = vmatpush1.msra.mxu0 0.0
  %2658 = vmatprep.subr.mxu0 0.0
  %2659 = vmatpush1.msra.mxu0 0.0
  %2660 = vmatprep.subr.mxu0 0.0
  %2661 = vmatpush1.msra.mxu0 0.0
  %2662 = vmatprep.subr.mxu0 0.0
  %2663 = vmatpush1.msra.mxu0 0.0
  %2664 = vmatprep.subr.mxu0 0.0
  %2665 = vmatpush1.msra.mxu0 0.0
  %2666 = vmatprep.subr.mxu0 0.0
  %2667 = vmatpush1.msra.mxu0 0.0
  %2668 = vmatprep.subr.mxu0 0.0
  %2669 = vmatpush1.msra.mxu0 0.0
  %2670 = vmatprep.subr.mxu0 0.0
  %2671 = vmatpush1.msra.mxu0 0.0
  %2672 = vmatprep.subr.mxu0 0.0
  %2673 = vmatpush1.msra.mxu0 0.0
  %2674 = vmatprep.mubr.f32.mxu0 0.0
  %2675 = vmatmul.mubr.f32.gmra.mrb[0].mxu0 %v2608
  %v2676 = vpop.f32.mrb[0].mxu0
  %v2677 = vadd.f32 0.0, %v2676
  %v2678 = vpop.f32.mrb[0].mxu0
  %2679 = vdwg.mxu0
  %v2681 = vsel %vm1013, %v2458, 0
  %2683 = vmatprep.subr.mxu0 0.0
  %2684 = vmatpush1.msra.mxu0 %v1010
  %2685 = vmatprep.subr.mxu0 0.0
  %2686 = vmatpush1.msra.mxu0 0.0
  %2687 = vmatprep.subr.mxu0 0.0
  %2688 = vmatpush1.msra.mxu0 0.0
  %2689 = vmatprep.subr.mxu0 0.0
  %2690 = vmatpush1.msra.mxu0 0.0
  %2691 = vmatprep.subr.mxu0 0.0
  %2692 = vmatpush1.msra.mxu0 0.0
  %2693 = vmatprep.subr.mxu0 0.0
  %2694 = vmatpush1.msra.mxu0 0.0
  %2695 = vmatprep.subr.mxu0 0.0
  %2696 = vmatpush1.msra.mxu0 0.0
  %2697 = vmatprep.subr.mxu0 0.0
  %2698 = vmatpush1.msra.mxu0 0.0
  %2699 = vmatprep.subr.mxu0 0.0
  %2700 = vmatpush1.msra.mxu0 0.0
  %2701 = vmatprep.subr.mxu0 0.0
  %2702 = vmatpush1.msra.mxu0 0.0
  %2703 = vmatprep.subr.mxu0 0.0
  %2704 = vmatpush1.msra.mxu0 0.0
  %2705 = vmatprep.subr.mxu0 0.0
  %2706 = vmatpush1.msra.mxu0 0.0
  %2707 = vmatprep.subr.mxu0 0.0
  %2708 = vmatpush1.msra.mxu0 0.0
  %2709 = vmatprep.subr.mxu0 0.0
  %2710 = vmatpush1.msra.mxu0 0.0
  %2711 = vmatprep.subr.mxu0 0.0
  %2712 = vmatpush1.msra.mxu0 0.0
  %2713 = vmatprep.subr.mxu0 0.0
  %2714 = vmatpush1.msra.mxu0 0.0
  %2715 = vmatprep.subr.mxu0 0.0
  %2716 = vmatpush1.msra.mxu0 0.0
  %2717 = vmatprep.subr.mxu0 0.0
  %2718 = vmatpush1.msra.mxu0 0.0
  %2719 = vmatprep.subr.mxu0 0.0
  %2720 = vmatpush1.msra.mxu0 0.0
  %2721 = vmatprep.subr.mxu0 0.0
  %2722 = vmatpush1.msra.mxu0 0.0
  %2723 = vmatprep.subr.mxu0 0.0
  %2724 = vmatpush1.msra.mxu0 0.0
  %2725 = vmatprep.subr.mxu0 0.0
  %2726 = vmatpush1.msra.mxu0 0.0
  %2727 = vmatprep.subr.mxu0 0.0
  %2728 = vmatpush1.msra.mxu0 0.0
  %2729 = vmatprep.subr.mxu0 0.0
  %2730 = vmatpush1.msra.mxu0 0.0
  %2731 = vmatprep.subr.mxu0 0.0
  %2732 = vmatpush1.msra.mxu0 0.0
  %2733 = vmatprep.subr.mxu0 0.0
  %2734 = vmatpush1.msra.mxu0 0.0
  %2735 = vmatprep.subr.mxu0 0.0
  %2736 = vmatpush1.msra.mxu0 0.0
  %2737 = vmatprep.subr.mxu0 0.0
  %2738 = vmatpush1.msra.mxu0 0.0
  %2739 = vmatprep.subr.mxu0 0.0
  %2740 = vmatpush1.msra.mxu0 0.0
  %2741 = vmatprep.subr.mxu0 0.0
  %2742 = vmatpush1.msra.mxu0 0.0
  %2743 = vmatprep.subr.mxu0 0.0
  %2744 = vmatpush1.msra.mxu0 0.0
  %2745 = vmatprep.subr.mxu0 0.0
  %2746 = vmatpush1.msra.mxu0 0.0
  %2747 = vmatprep.mubr.f32.mxu0 0.0
  %2748 = vmatmul.mubr.f32.gmra.mrb[0].mxu0 %v2681
  %v2749 = vpop.f32.mrb[0].mxu0
  %v2750 = vadd.f32 0.0, %v2749
  %v2751 = vpop.f32.mrb[0].mxu0
  %2752 = vdwg.mxu0
  %v2754 = vsel %vm1013, %v2531, 0
  %2756 = vmatprep.subr.mxu0 0.0
  %2757 = vmatpush1.msra.mxu0 %v1011
  %2758 = vmatprep.subr.mxu0 0.0
  %2759 = vmatpush1.msra.mxu0 0.0
  %2760 = vmatprep.subr.mxu0 0.0
  %2761 = vmatpush1.msra.mxu0 0.0
  %2762 = vmatprep.subr.mxu0 0.0
  %2763 = vmatpush1.msra.mxu0 0.0
  %2764 = vmatprep.subr.mxu0 0.0
  %2765 = vmatpush1.msra.mxu0 0.0
  %2766 = vmatprep.subr.mxu0 0.0
  %2767 = vmatpush1.msra.mxu0 0.0
  %2768 = vmatprep.subr.mxu0 0.0
  %2769 = vmatpush1.msra.mxu0 0.0
  %2770 = vmatprep.subr.mxu0 0.0
  %2771 = vmatpush1.msra.mxu0 0.0
  %2772 = vmatprep.subr.mxu0 0.0
  %2773 = vmatpush1.msra.mxu0 0.0
  %2774 = vmatprep.subr.mxu0 0.0
  %2775 = vmatpush1.msra.mxu0 0.0
  %2776 = vmatprep.subr.mxu0 0.0
  %2777 = vmatpush1.msra.mxu0 0.0
  %2778 = vmatprep.subr.mxu0 0.0
  %2779 = vmatpush1.msra.mxu0 0.0
  %2780 = vmatprep.subr.mxu0 0.0
  %2781 = vmatpush1.msra.mxu0 0.0
  %2782 = vmatprep.subr.mxu0 0.0
  %2783 = vmatpush1.msra.mxu0 0.0
  %2784 = vmatprep.subr.mxu0 0.0
  %2785 = vmatpush1.msra.mxu0 0.0
  %2786 = vmatprep.subr.mxu0 0.0
  %2787 = vmatpush1.msra.mxu0 0.0
  %2788 = vmatprep.subr.mxu0 0.0
  %2789 = vmatpush1.msra.mxu0 0.0
  %2790 = vmatprep.subr.mxu0 0.0
  %2791 = vmatpush1.msra.mxu0 0.0
  %2792 = vmatprep.subr.mxu0 0.0
  %2793 = vmatpush1.msra.mxu0 0.0
  %2794 = vmatprep.subr.mxu0 0.0
  %2795 = vmatpush1.msra.mxu0 0.0
  %2796 = vmatprep.subr.mxu0 0.0
  %2797 = vmatpush1.msra.mxu0 0.0
  %2798 = vmatprep.subr.mxu0 0.0
  %2799 = vmatpush1.msra.mxu0 0.0
  %2800 = vmatprep.subr.mxu0 0.0
  %2801 = vmatpush1.msra.mxu0 0.0
  %2802 = vmatprep.subr.mxu0 0.0
  %2803 = vmatpush1.msra.mxu0 0.0
  %2804 = vmatprep.subr.mxu0 0.0
  %2805 = vmatpush1.msra.mxu0 0.0
  %2806 = vmatprep.subr.mxu0 0.0
  %2807 = vmatpush1.msra.mxu0 0.0
  %2808 = vmatprep.subr.mxu0 0.0
  %2809 = vmatpush1.msra.mxu0 0.0
  %2810 = vmatprep.subr.mxu0 0.0
  %2811 = vmatpush1.msra.mxu0 0.0
  %2812 = vmatprep.subr.mxu0 0.0
  %2813 = vmatpush1.msra.mxu0 0.0
  %2814 = vmatprep.subr.mxu0 0.0
  %2815 = vmatpush1.msra.mxu0 0.0
  %2816 = vmatprep.subr.mxu0 0.0
  %2817 = vmatpush1.msra.mxu0 0.0
  %2818 = vmatprep.subr.mxu0 0.0
  %2819 = vmatpush1.msra.mxu0 0.0
  %2820 = vmatprep.mubr.f32.mxu0 0.0
  %2821 = vmatmul.mubr.f32.gmra.mrb[0].mxu0 %v2754
  %v2822 = vpop.f32.mrb[0].mxu0
  %v2823 = vadd.f32 0.0, %v2822
  %v2824 = vpop.f32.mrb[0].mxu0
  %2825 = vdwg.mxu0
  %v2827 = vsel %vm1013, %v2604, 0
  %2829 = vmatprep.subr.mxu0 0.0
  %2830 = vmatpush1.msra.mxu0 %v1012
  %2831 = vmatprep.subr.mxu0 0.0
  %2832 = vmatpush1.msra.mxu0 0.0
  %2833 = vmatprep.subr.mxu0 0.0
  %2834 = vmatpush1.msra.mxu0 0.0
  %2835 = vmatprep.subr.mxu0 0.0
  %2836 = vmatpush1.msra.mxu0 0.0
  %2837 = vmatprep.subr.mxu0 0.0
  %2838 = vmatpush1.msra.mxu0 0.0
  %2839 = vmatprep.subr.mxu0 0.0
  %2840 = vmatpush1.msra.mxu0 0.0
  %2841 = vmatprep.subr.mxu0 0.0
  %2842 = vmatpush1.msra.mxu0 0.0
  %2843 = vmatprep.subr.mxu0 0.0
  %2844 = vmatpush1.msra.mxu0 0.0
  %2845 = vmatprep.subr.mxu0 0.0
  %2846 = vmatpush1.msra.mxu0 0.0
  %2847 = vmatprep.subr.mxu0 0.0
  %2848 = vmatpush1.msra.mxu0 0.0
  %2849 = vmatprep.subr.mxu0 0.0
  %2850 = vmatpush1.msra.mxu0 0.0
  %2851 = vmatprep.subr.mxu0 0.0
  %2852 = vmatpush1.msra.mxu0 0.0
  %2853 = vmatprep.subr.mxu0 0.0
  %2854 = vmatpush1.msra.mxu0 0.0
  %2855 = vmatprep.subr.mxu0 0.0
  %2856 = vmatpush1.msra.mxu0 0.0
  %2857 = vmatprep.subr.mxu0 0.0
  %2858 = vmatpush1.msra.mxu0 0.0
  %2859 = vmatprep.subr.mxu0 0.0
  %2860 = vmatpush1.msra.mxu0 0.0
  %2861 = vmatprep.subr.mxu0 0.0
  %2862 = vmatpush1.msra.mxu0 0.0
  %2863 = vmatprep.subr.mxu0 0.0
  %2864 = vmatpush1.msra.mxu0 0.0
  %2865 = vmatprep.subr.mxu0 0.0
  %2866 = vmatpush1.msra.mxu0 0.0
  %2867 = vmatprep.subr.mxu0 0.0
  %2868 = vmatpush1.msra.mxu0 0.0
  %2869 = vmatprep.subr.mxu0 0.0
  %2870 = vmatpush1.msra.mxu0 0.0
  %2871 = vmatprep.subr.mxu0 0.0
  %2872 = vmatpush1.msra.mxu0 0.0
  %2873 = vmatprep.subr.mxu0 0.0
  %2874 = vmatpush1.msra.mxu0 0.0
  %2875 = vmatprep.subr.mxu0 0.0
  %2876 = vmatpush1.msra.mxu0 0.0
  %2877 = vmatprep.subr.mxu0 0.0
  %2878 = vmatpush1.msra.mxu0 0.0
  %2879 = vmatprep.subr.mxu0 0.0
  %2880 = vmatpush1.msra.mxu0 0.0
  %2881 = vmatprep.subr.mxu0 0.0
  %2882 = vmatpush1.msra.mxu0 0.0
  %2883 = vmatprep.subr.mxu0 0.0
  %2884 = vmatpush1.msra.mxu0 0.0
  %2885 = vmatprep.subr.mxu0 0.0
  %2886 = vmatpush1.msra.mxu0 0.0
  %2887 = vmatprep.subr.mxu0 0.0
  %2888 = vmatpush1.msra.mxu0 0.0
  %2889 = vmatprep.subr.mxu0 0.0
  %2890 = vmatpush1.msra.mxu0 0.0
  %2891 = vmatprep.subr.mxu0 0.0
  %2892 = vmatpush1.msra.mxu0 0.0
  %2893 = vmatprep.mubr.f32.mxu0 0.0
  %2894 = vmatmul.mubr.f32.gmra.mrb[0].mxu0 %v2827
  %v2895 = vpop.f32.mrb[0].mxu0
  %v2896 = vadd.f32 0.0, %v2895
  %v2897 = vpop.f32.mrb[0].mxu0
  %2898 = vdwg.mxu0
  %v2899 = vsel %vm37, %v2677, 0.0
  %v2900 = vsel %vm37, %v2750, 0.0
  %v2901 = vadd.f32 %v2899, %v2900
  %v2902 = vsel %vm37, %v2823, 0.0
  %v2903 = vadd.f32 %v2901, %v2902
  %v2904 = vsel %vm37, %v2896, 0.0
  %v2905 = vadd.f32 %v2903, %v2904
  %2906 = vrot.lane.b32.xlu0 %v2310, 8
  %v2907 = vpop.permute.xlu0 %2906
  %2909 = vrot.lane.b32.xlu0 %v2312, 16
  %v2910 = vpop.permute.xlu0 %2909
  %2912 = vrot.lane.b32.xlu0 %v2314, 24
  %v2913 = vpop.permute.xlu0 %2912
  %v2915 = vsel %vm1013, %v2308, %v2907
  %v2916 = vsel %vm1963, %v2915, %v2910
  %v2917 = vsel %vm1965, %v2916, %v2913
  %v2918 = vld [vmem:[%s5] sm:$0x1]
  %v2919 = vlaneseq
  %v2920 = vshrl.u32 %v2919, 7
  %v2921 = vsub.s32 0, %v2920
  %v2922 = vrot.slane %v2918, %v2921
  %v2923 = vadd.f32 %v1952, %v2922
  %v2924 = vadd.f32 %v2905, %v2922
  %v2925 = vadd.f32 %v23, %v2923
  %v2926 = vadd.f32 %v24, %v2924
  %v2927 = vsel %vm37, %v2925, 0.0
  %2928 = vadd.xlane.f32.xlu0 %v2927
  %v2929 = vpop.xlane.xlu0 %2928
  %v2930 = vsel %vm37, %v2926, 0.0
  %2931 = vadd.xlane.f32.xlu0 %v2930
  %v2932 = vpop.xlane.xlu0 %2931
  %v2933 = vrcp.pop 32.0
  %v2934 = vmul.f32 %v2929, %v2933
  %v2935 = vmul.f32 %v2932, %v2933
  %v2936 = vsub.f32 %v2925, %v2934
  %v2937 = vsub.f32 %v2926, %v2935
  %v2938 = vmul.f32 %v2936, %v2936
  %v2939 = vmul.f32 %v2937, %v2937
  %v2940 = vsel %vm37, %v2938, 0.0
  %2941 = vadd.xlane.f32.xlu0 %v2940
  %v2942 = vpop.xlane.xlu0 %2941
  %v2943 = vsel %vm37, %v2939, 0.0
  %2944 = vadd.xlane.f32.xlu0 %v2943
  %v2945 = vpop.xlane.xlu0 %2944
  %v2946 = vmul.f32 %v2942, %v2933
  %v2947 = vmul.f32 %v2945, %v2933
  %v2948 = vadd.f32 %v2946, 1e-05
  %v2949 = vadd.f32 %v2947, 1e-05
  %v2950 = vrsqrt.pop %v2948
  %v2951 = vrsqrt.pop %v2949
  %v2952 = vmul.f32 %v2936, %v2950
  %v2953 = vmul.f32 %v2937, %v2951
  %v2954 = vld [vmem:[%s5 + $0x3] sm:$0x1]
  %v2955 = vlaneseq
  %v2956 = vshrl.u32 %v2955, 7
  %v2957 = vsub.s32 0, %v2956
  %v2958 = vrot.slane %v2954, %v2957
  %v2959 = vmul.f32 %v2952, %v2958
  %v2960 = vmul.f32 %v2953, %v2958
  %v2961 = vld [vmem:[%s5 + $0x4] sm:$0x1]
  %v2962 = vlaneseq
  %v2963 = vshrl.u32 %v2962, 7
  %v2964 = vsub.s32 0, %v2963
  %v2965 = vrot.slane %v2961, %v2964
  %v2966 = vadd.f32 %v2959, %v2965
  %v2967 = vadd.f32 %v2960, %v2965
  %v2968 = vld [vmem:[%s3] sm:$0xff]
  %v2969 = vld [vmem:[%s3 + $0x8] sm:$0xff]
  %v2970 = vld [vmem:[%s3 + $0x10] sm:$0xff]
  %v2971 = vld [vmem:[%s3 + $0x18] sm:$0xff]
  %v2972 = vld [vmem:[%s5 + $0x1] sm:$0x1]
  %v2973 = vlaneseq
  %v2974 = vshrl.u32 %v2973, 7
  %v2975 = vsub.s32 0, %v2974
  %v2976 = vrot.slane %v2972, %v2975
  %v2978 = vsel %vm37, %v2966, 0
  %v2981 = vsel %vm37, %v2967, 0
  %2983 = vmatprep.subr.mxu0 0.0
  %2984 = vmatpush1.msra.mxu0 %v2968
  %2985 = vmatprep.subr.mxu0 0.0
  %2986 = vmatpush1.msra.mxu0 %v2969
  %2987 = vmatprep.subr.mxu0 0.0
  %2988 = vmatpush1.msra.mxu0 %v2970
  %2989 = vmatprep.subr.mxu0 0.0
  %2990 = vmatpush1.msra.mxu0 %v2971
  %2991 = vmatprep.subr.mxu0 0.0
  %2992 = vmatpush1.msra.mxu0 0.0
  %2993 = vmatprep.subr.mxu0 0.0
  %2994 = vmatpush1.msra.mxu0 0.0
  %2995 = vmatprep.subr.mxu0 0.0
  %2996 = vmatpush1.msra.mxu0 0.0
  %2997 = vmatprep.subr.mxu0 0.0
  %2998 = vmatpush1.msra.mxu0 0.0
  %2999 = vmatprep.subr.mxu0 0.0
  %3000 = vmatpush1.msra.mxu0 0.0
  %3001 = vmatprep.subr.mxu0 0.0
  %3002 = vmatpush1.msra.mxu0 0.0
  %3003 = vmatprep.subr.mxu0 0.0
  %3004 = vmatpush1.msra.mxu0 0.0
  %3005 = vmatprep.subr.mxu0 0.0
  %3006 = vmatpush1.msra.mxu0 0.0
  %3007 = vmatprep.subr.mxu0 0.0
  %3008 = vmatpush1.msra.mxu0 0.0
  %3009 = vmatprep.subr.mxu0 0.0
  %3010 = vmatpush1.msra.mxu0 0.0
  %3011 = vmatprep.subr.mxu0 0.0
  %3012 = vmatpush1.msra.mxu0 0.0
  %3013 = vmatprep.subr.mxu0 0.0
  %3014 = vmatpush1.msra.mxu0 0.0
  %3015 = vmatprep.subr.mxu0 0.0
  %3016 = vmatpush1.msra.mxu0 0.0
  %3017 = vmatprep.subr.mxu0 0.0
  %3018 = vmatpush1.msra.mxu0 0.0
  %3019 = vmatprep.subr.mxu0 0.0
  %3020 = vmatpush1.msra.mxu0 0.0
  %3021 = vmatprep.subr.mxu0 0.0
  %3022 = vmatpush1.msra.mxu0 0.0
  %3023 = vmatprep.subr.mxu0 0.0
  %3024 = vmatpush1.msra.mxu0 0.0
  %3025 = vmatprep.subr.mxu0 0.0
  %3026 = vmatpush1.msra.mxu0 0.0
  %3027 = vmatprep.subr.mxu0 0.0
  %3028 = vmatpush1.msra.mxu0 0.0
  %3029 = vmatprep.subr.mxu0 0.0
  %3030 = vmatpush1.msra.mxu0 0.0
  %3031 = vmatprep.subr.mxu0 0.0
  %3032 = vmatpush1.msra.mxu0 0.0
  %3033 = vmatprep.subr.mxu0 0.0
  %3034 = vmatpush1.msra.mxu0 0.0
  %3035 = vmatprep.subr.mxu0 0.0
  %3036 = vmatpush1.msra.mxu0 0.0
  %3037 = vmatprep.subr.mxu0 0.0
  %3038 = vmatpush1.msra.mxu0 0.0
  %3039 = vmatprep.subr.mxu0 0.0
  %3040 = vmatpush1.msra.mxu0 0.0
  %3041 = vmatprep.subr.mxu0 0.0
  %3042 = vmatpush1.msra.mxu0 0.0
  %3043 = vmatprep.subr.mxu0 0.0
  %3044 = vmatpush1.msra.mxu0 0.0
  %3045 = vmatprep.subr.mxu0 0.0
  %3046 = vmatpush1.msra.mxu0 0.0
  %3047 = vmatprep.mubr.f32.mxu0 0.0
  %3048 = vmatmul.mubr.f32.gmra.mrb[0].mxu0 %v2978
  %v3049 = vpop.f32.mrb[0].mxu0
  %v3050 = vadd.f32 %v2976, %v3049
  %v3051 = vpop.f32.mrb[0].mxu0
  %3052 = vmatprep.mubr.f32.mxu0 0.0
  %3053 = vmatmul.mubr.f32.gmra.mrb[0].mxu0 %v2981
  %v3054 = vpop.f32.mrb[0].mxu0
  %v3055 = vadd.f32 %v2976, %v3054
  %v3056 = vpop.f32.mrb[0].mxu0
  %3057 = vdwg.mxu0
  %v3058 = vmax.f32 %v3050, 0.0
  %v3059 = vmax.f32 %v3055, 0.0
  %v3060 = vld [vmem:[%s4] sm:$0xff]
  %v3061 = vld [vmem:[%s4 + $0x8] sm:$0xff]
  %v3062 = vld [vmem:[%s4 + $0x10] sm:$0xff]
  %v3063 = vld [vmem:[%s4 + $0x18] sm:$0xff]
  %v3064 = vld [vmem:[%s4 + $0x20] sm:$0xff]
  %v3065 = vld [vmem:[%s4 + $0x28] sm:$0xff]
  %v3066 = vld [vmem:[%s4 + $0x30] sm:$0xff]
  %v3067 = vld [vmem:[%s4 + $0x38] sm:$0xff]
  %v3068 = vld [vmem:[%s5 + $0x2] sm:$0x1]
  %v3069 = vlaneseq
  %v3070 = vshrl.u32 %v3069, 7
  %v3071 = vsub.s32 0, %v3070
  %v3072 = vrot.slane %v3068, %v3071
  %vm3073 = vcmask 523264
  %v3075 = vsel %vm3073, %v3058, 0
  %v3078 = vsel %vm3073, %v3059, 0
  %3080 = vmatprep.subr.mxu0 0.0
  %3081 = vmatpush1.msra.mxu0 %v3060
  %3082 = vmatprep.subr.mxu0 0.0
  %3083 = vmatpush1.msra.mxu0 %v3061
  %3084 = vmatprep.subr.mxu0 0.0
  %3085 = vmatpush1.msra.mxu0 %v3062
  %3086 = vmatprep.subr.mxu0 0.0
  %3087 = vmatpush1.msra.mxu0 %v3063
  %3088 = vmatprep.subr.mxu0 0.0
  %3089 = vmatpush1.msra.mxu0 %v3064
  %3090 = vmatprep.subr.mxu0 0.0
  %3091 = vmatpush1.msra.mxu0 %v3065
  %3092 = vmatprep.subr.mxu0 0.0
  %3093 = vmatpush1.msra.mxu0 %v3066
  %3094 = vmatprep.subr.mxu0 0.0
  %3095 = vmatpush1.msra.mxu0 %v3067
  %3096 = vmatprep.subr.mxu0 0.0
  %3097 = vmatpush1.msra.mxu0 0.0
  %3098 = vmatprep.subr.mxu0 0.0
  %3099 = vmatpush1.msra.mxu0 0.0
  %3100 = vmatprep.subr.mxu0 0.0
  %3101 = vmatpush1.msra.mxu0 0.0
  %3102 = vmatprep.subr.mxu0 0.0
  %3103 = vmatpush1.msra.mxu0 0.0
  %3104 = vmatprep.subr.mxu0 0.0
  %3105 = vmatpush1.msra.mxu0 0.0
  %3106 = vmatprep.subr.mxu0 0.0
  %3107 = vmatpush1.msra.mxu0 0.0
  %3108 = vmatprep.subr.mxu0 0.0
  %3109 = vmatpush1.msra.mxu0 0.0
  %3110 = vmatprep.subr.mxu0 0.0
  %3111 = vmatpush1.msra.mxu0 0.0
  %3112 = vmatprep.subr.mxu0 0.0
  %3113 = vmatpush1.msra.mxu0 0.0
  %3114 = vmatprep.subr.mxu0 0.0
  %3115 = vmatpush1.msra.mxu0 0.0
  %3116 = vmatprep.subr.mxu0 0.0
  %3117 = vmatpush1.msra.mxu0 0.0
  %3118 = vmatprep.subr.mxu0 0.0
  %3119 = vmatpush1.msra.mxu0 0.0
  %3120 = vmatprep.subr.mxu0 0.0
  %3121 = vmatpush1.msra.mxu0 0.0
  %3122 = vmatprep.subr.mxu0 0.0
  %3123 = vmatpush1.msra.mxu0 0.0
  %3124 = vmatprep.subr.mxu0 0.0
  %3125 = vmatpush1.msra.mxu0 0.0
  %3126 = vmatprep.subr.mxu0 0.0
  %3127 = vmatpush1.msra.mxu0 0.0
  %3128 = vmatprep.subr.mxu0 0.0
  %3129 = vmatpush1.msra.mxu0 0.0
  %3130 = vmatprep.subr.mxu0 0.0
  %3131 = vmatpush1.msra.mxu0 0.0
  %3132 = vmatprep.subr.mxu0 0.0
  %3133 = vmatpush1.msra.mxu0 0.0
  %3134 = vmatprep.subr.mxu0 0.0
  %3135 = vmatpush1.msra.mxu0 0.0
  %3136 = vmatprep.subr.mxu0 0.0
  %3137 = vmatpush1.msra.mxu0 0.0
  %3138 = vmatprep.subr.mxu0 0.0
  %3139 = vmatpush1.msra.mxu0 0.0
  %3140 = vmatprep.subr.mxu0 0.0
  %3141 = vmatpush1.msra.mxu0 0.0
  %3142 = vmatprep.subr.mxu0 0.0
  %3143 = vmatpush1.msra.mxu0 0.0
  %3144 = vmatprep.mubr.f32.mxu0 0.0
  %3145 = vmatmul.mubr.f32.gmra.mrb[0].mxu0 %v3075
  %v3146 = vpop.f32.mrb[0].mxu0
  %v3147 = vadd.f32 %v3072, %v3146
  %v3148 = vpop.f32.mrb[0].mxu0
  %3149 = vmatprep.mubr.f32.mxu0 0.0
  %3150 = vmatmul.mubr.f32.gmra.mrb[0].mxu0 %v3078
  %v3151 = vpop.f32.mrb[0].mxu0
  %v3152 = vadd.f32 %v3072, %v3151
  %v3153 = vpop.f32.mrb[0].mxu0
  %3154 = vdwg.mxu0
  %v3155 = vadd.f32 %v2966, %v3147
  %v3156 = vadd.f32 %v2967, %v3152
  %v3157 = vsel %vm37, %v3155, 0.0
  %3158 = vadd.xlane.f32.xlu0 %v3157
  %v3159 = vpop.xlane.xlu0 %3158
  %v3160 = vsel %vm37, %v3156, 0.0
  %3161 = vadd.xlane.f32.xlu0 %v3160
  %v3162 = vpop.xlane.xlu0 %3161
  %v3163 = vmul.f32 %v3159, %v2933
  %v3164 = vmul.f32 %v3162, %v2933
  %v3165 = vsub.f32 %v3155, %v3163
  %v3166 = vsub.f32 %v3156, %v3164
  %v3167 = vmul.f32 %v3165, %v3165
  %v3168 = vmul.f32 %v3166, %v3166
  %v3169 = vsel %vm37, %v3167, 0.0
  %3170 = vadd.xlane.f32.xlu0 %v3169
  %v3171 = vpop.xlane.xlu0 %3170
  %v3172 = vsel %vm37, %v3168, 0.0
  %3173 = vadd.xlane.f32.xlu0 %v3172
  %v3174 = vpop.xlane.xlu0 %3173
  %v3175 = vmul.f32 %v3171, %v2933
  %v3176 = vmul.f32 %v3174, %v2933
  %v3177 = vadd.f32 %v3175, 1e-05
  %v3178 = vadd.f32 %v3176, 1e-05
  %v3179 = vrsqrt.pop %v3177
  %v3180 = vrsqrt.pop %v3178
  %v3181 = vmul.f32 %v3165, %v3179
  %v3182 = vmul.f32 %v3166, %v3180
  %v3183 = vld [vmem:[%s5 + $0x5] sm:$0x1]
  %v3184 = vlaneseq
  %v3185 = vshrl.u32 %v3184, 7
  %v3186 = vsub.s32 0, %v3185
  %v3187 = vrot.slane %v3183, %v3186
  %v3188 = vmul.f32 %v3181, %v3187
  %v3189 = vmul.f32 %v3182, %v3187
  %v3190 = vld [vmem:[%s5 + $0x6] sm:$0x1]
  %v3191 = vlaneseq
  %v3192 = vshrl.u32 %v3191, 7
  %v3193 = vsub.s32 0, %v3192
  %v3194 = vrot.slane %v3190, %v3193
  %v3195 = vadd.f32 %v3188, %v3194
  %v3196 = vadd.f32 %v3189, %v3194
  %3199 = vrot.lane.b32.xlu0 %v1966, 32
  %v3200 = vpop.permute.xlu0 %3199
  %3201 = vrot.lane.b32.xlu0 %v2917, 32
  %v3202 = vpop.permute.xlu0 %3201
  %v3205 = vsel %vm37, %v3195, %v3200
  %v3206 = vsel %vm37, %v3196, %v3202
  %3207 = vst.msk [vmem:[%s6] sm:$0xff] %vm3073, %v3205
  %3208 = vst.msk [vmem:[%s6 + $0x8] sm:$0xff] %vm3073, %v3206
  // Predicated region
  $region26: #{transformer_encoder_layer.1} parent=0 // pred_check
    _
  $region27: #{transformer_encoder_layer.1} parent=0 // pred_check_branch
    %3210 = sbr.rel (0) target = $region29
  $region28: #{transformer_encoder_layer.1} parent=0 // pred_region
    _
  $region29: #{transformer_encoder_layer.1} parent=0 // pred_fallthru
    _
  // Predicated region
  $region30: #{transformer_encoder_layer.1} parent=0 // pred_check
    _
  $region31: #{transformer_encoder_layer.1} parent=0 // pred_check_branch
    %3212 = sbr.rel (0) target = $region33
  $region32: #{transformer_encoder_layer.1} parent=0 // pred_region
    _
  $region33: #{transformer_encoder_layer.1} parent=0 // pred_fallthru
    _

</llo_original>
